<compile_context>
chip_gen: v7x
topology: tpu7x:2x2x1
jax: 0.10.0
libtpu: 0.0.40
codegen_flags: <defaults>
</compile_context>

<pallas_src>
import math

import jax
import jax.numpy as jnp
from jax.experimental import pallas as pl
from jax.experimental.pallas import tpu as pltpu


# ----------------------------------------------------------------------------
# Fused BasicBlock kernel (no scratch refs: everything is value-based)
# ----------------------------------------------------------------------------
def _make_block_kernel(B, Ho, Wo, Cin, width, scale, out_c, has_sc, mm_dtype):
    Hp = Ho + 2
    M = B * Ho * Wo
    ws = width * scale

    def kernel(x_ref, w1_ref, b1_ref, w2_ref, b2_ref, w3_ref, b3_ref, o_ref):
        x_in = x_ref[...].reshape(M, Cin)                    # (M, Cin) f32
        x_mm = x_in.astype(mm_dtype)                         # matmul operand

        # ---- conv1 (1x1) [+ shortcut 1x1 fused: same LHS, wider MXU N] ----
        u_all = jnp.dot(x_mm, w1_ref[...],
                        preferred_element_type=jnp.float32) + b1_ref[...]
        u = jnp.clip(u_all[:, :ws], 0.0, 20.0)               # (M, ws) f32
        if has_sc:
            res = u_all[:, ws:]                              # (M, out_c) f32
        else:
            res = x_in                                       # exact identity

        # ---- Res2Net hierarchical 3x3 convs, all in registers/VMEM ----
        zrow = jnp.zeros((B, 1, Wo, width), jnp.float32)     # hoisted consts
        zcol = jnp.zeros((B, Hp, 1, width), jnp.float32)
        outs = []
        sp = None
        for i in range(scale):
            xi = u[:, i * width:(i + 1) * width]
            sp_in = xi if i == 0 else sp + xi                # f32
            xp = sp_in.reshape(B, Ho, Wo, width)
            xp = jnp.concatenate([zrow, xp, zrow], axis=1)   # pad H (major)
            xp = jnp.concatenate([zcol, xp, zcol], axis=2)   # pad W (sublane)
            # fold the 9 shifted taps into the contraction axis (K = 9*width)
            taps = jnp.concatenate(
                [xp[:, dy:dy + Ho, dx:dx + Wo, :].reshape(M, width)
                 for dy in range(3) for dx in range(3)],
                axis=-1).astype(mm_dtype)                    # (M, 9*width)
            y = jnp.dot(taps, w2_ref[i],
                        preferred_element_type=jnp.float32) + b2_ref[i]
            sp = jnp.clip(y, 0.0, 20.0)                      # (M, width) f32
            outs.append(sp)

        # ---- conv3 (1x1, BN folded) on the concatenated branch outputs ----
        cat = jnp.concatenate(outs, axis=-1).astype(mm_dtype)   # (M, ws)
        out = jnp.dot(cat, w3_ref[...],
                      preferred_element_type=jnp.float32) + b3_ref[...]

        # ---- shortcut add + Hardtanh(0, 20), bf16 writeback ----
        out = jnp.clip(out + res, 0.0, 20.0).astype(o_ref.dtype)
        o_ref[...] = out.reshape(B, Ho * Wo, out_c)

    return kernel


def _fold_bn(bn, eps=1e-5):
    s = bn["gamma"] / jnp.sqrt(bn["var"] + eps)
    b = bn["beta"] - bn["mean"] * s
    return s, b


def _pick_batch_block(N, per_frame_bytes, budget=4 << 20):
    """Largest divisor of N that fits the VMEM budget while keeping >= 2
    grid steps (so v7x megacore can split the batch across its 2 cores)."""
    best = 1
    for d in range(1, N + 1):
        if N % d != 0:
            continue
        if N >= 2 and N // d < 2:
            continue
        if d * per_frame_bytes > budget:
            continue
        best = d
    return best


# ----------------------------------------------------------------------------
# Wrapper: layout glue + BN folding, one pallas_call for the whole block
# ----------------------------------------------------------------------------
def basic_block_eres2net(x_nchw, params, *, use_bf16=True, batch_block=None):
    stride = params["stride"]
    width = params["width"]
    scale = params["scale"]
    ws = width * scale
    mm_dtype = jnp.bfloat16 if use_bf16 else jnp.float32

    # NCHW -> NHWC; the 1x1-conv stride is pure spatial subsampling, so it is
    # folded into the same relayout (a single XLA copy).
    # TODO(synk): in a multi-block network keep activations NHWC between
    #             blocks so this transpose disappears entirely.
    xs = jnp.transpose(x_nchw[:, :, ::stride, ::stride],
                       (0, 2, 3, 1)).astype(jnp.float32)
    N, Ho, Wo, Cin = xs.shape
    Mf = Ho * Wo

    out_c = params["w3"].shape[-1]
    has_sc = "wsc" in params

    # Fold inference-mode BN scales into the conv weights; biases stay f32.
    s1, b1 = _fold_bn(params["bn1"])
    w1 = params["w1"] * s1[None, :]
    if has_sc:
        ssc, bsc = _fold_bn(params["bnsc"])
        wsc = params["wsc"] * ssc[None, :]
        # conv1 and shortcut fused into one matmul (shared LHS).
        w1f = jnp.concatenate([w1, wsc], axis=1).astype(mm_dtype)
        b1f = jnp.concatenate([b1, bsc])[None, :]
    else:
        assert Cin == out_c and stride == 1    # identity shortcut precondition
        w1f = w1.astype(mm_dtype)
        b1f = b1[None, :]
    n1 = w1f.shape[1]

    w2_list, b2_list = [], []
    for i in range(scale):
        s2, b2 = _fold_bn(params["bn2"][i])
        w2_list.append(params["w2"][i].reshape(9 * width, width) * s2[None, :])
        b2_list.append(b2)
    w2_all = jnp.stack(w2_list, 0).astype(mm_dtype)          # (scale, 9w, w)
    b2_all = jnp.stack(b2_list, 0)[:, None, :]               # (scale, 1, w)

    s3, b3 = _fold_bn(params["bn3"])
    w3 = (params["w3"] * s3[None, :]).astype(mm_dtype)
    b3f = b3[None, :]

    # Batch blocking: amortize per-grid-step overhead, keep >= 2 parallel
    # steps for v7x megacore, stay well inside VMEM on every generation.
    per_frame = Mf * (Cin + n1 + 10 * width + ws + 2 * out_c) * 4
    B_blk = _pick_batch_block(N, per_frame) if batch_block is None \
        else batch_block
    assert N % B_blk == 0
    grid = (N // B_blk,)

    kernel = _make_block_kernel(B_blk, Ho, Wo, Cin, width, scale, out_c,
                                has_sc, mm_dtype)
    out = pl.pallas_call(
        kernel,
        out_shape=jax.ShapeDtypeStruct((N, Mf, out_c), mm_dtype),
        grid=grid,
        in_specs=[
            pl.BlockSpec((B_blk, Ho, Wo, Cin), lambda n: (n, 0, 0, 0)),
            pl.BlockSpec((Cin, n1), lambda n: (0, 0)),
            pl.BlockSpec((1, n1), lambda n: (0, 0)),
            pl.BlockSpec((scale, 9 * width, width), lambda n: (0, 0, 0)),
            pl.BlockSpec((scale, 1, width), lambda n: (0, 0, 0)),
            pl.BlockSpec((ws, out_c), lambda n: (0, 0)),
            pl.BlockSpec((1, out_c), lambda n: (0, 0)),
        ],
        out_specs=pl.BlockSpec((B_blk, Mf, out_c), lambda n: (n, 0, 0)),
        compiler_params=pltpu.CompilerParams(
            dimension_semantics=("parallel",)),
    )(xs, w1f, b1f, w2_all, b2_all, w3, b3f)

    out = out.reshape(N, Ho, Wo, out_c)
    return jnp.transpose(out, (0, 3, 1, 2))                   # NCHW, mm_dtype


# ----------------------------------------------------------------------------
# Parameter init (deterministic, synthetic)
# ----------------------------------------------------------------------------
def init_params(key, in_planes, planes, stride=1, baseWidth=32, scale=2,
                expansion=2):
    width = int(math.floor(planes * (baseWidth / 64.0)))
    p = {"width": width, "scale": scale, "expansion": expansion,
         "stride": stride}

    def bn_init(k, c):
        k1, k2, k3, k4 = jax.random.split(k, 4)
        return {"gamma": jax.random.uniform(k1, (c,), minval=0.5, maxval=1.5),
                "beta": 0.1 * jax.random.normal(k2, (c,)),
                "mean": 0.1 * jax.random.normal(k3, (c,)),
                "var": jax.random.uniform(k4, (c,), minval=0.5, maxval=1.5)}

    keys = jax.random.split(key, 16)
    ws = width * scale
    out_c = planes * expansion

    p["w1"] = 0.2 * jax.random.normal(keys[0], (in_planes, ws))          # 1x1
    p["bn1"] = bn_init(keys[1], ws)

    p["w2"] = []   # each (3,3,width,width) in HWIO
    p["bn2"] = []
    for i in range(scale):
        p["w2"].append(0.2 * jax.random.normal(keys[2 + i],
                                               (3, 3, width, width)))
        p["bn2"].append(bn_init(keys[6 + i], width))

    p["w3"] = 0.2 * jax.random.normal(keys[10], (ws, out_c))             # 1x1
    p["bn3"] = bn_init(keys[11], out_c)

    if stride != 1 or in_planes != out_c:
        p["wsc"] = 0.2 * jax.random.normal(keys[12], (in_planes, out_c))
        p["bnsc"] = bn_init(keys[13], out_c)
    return p


# ----------------------------------------------------------------------------
# Pure-JAX f32 reference (for correctness check)
# ----------------------------------------------------------------------------
def reference_forward(x_nchw, params):
    stride = params["stride"]
    width = params["width"]
    scale = params["scale"]
    x = jnp.transpose(x_nchw, (0, 2, 3, 1)).astype(jnp.float32)
    dn = ("NHWC", "HWIO", "NHWC")

    def conv(x, w, s, pad):
        return jax.lax.conv_general_dilated(x, w, (s, s), pad,
                                            dimension_numbers=dn)

    def bn(x, p):
        s, b = _fold_bn(p)
        return x * s + b

    relu = lambda v: jnp.clip(v, 0.0, 20.0)

    out = relu(bn(conv(x, params["w1"].reshape(1, 1, *params["w1"].shape),
                       stride, "VALID"), params["bn1"]))
    spx = [out[..., i * width:(i + 1) * width] for i in range(scale)]
    outs, sp = [], None
    for i in range(scale):
        sp = spx[i] if i == 0 else sp + spx[i]
        sp = relu(bn(conv(sp, params["w2"][i], 1, "SAME"), params["bn2"][i]))
        outs.append(sp)
    cat = jnp.concatenate(outs, axis=-1)
    out = bn(conv(cat, params["w3"].reshape(1, 1, *params["w3"].shape),
                  1, "VALID"), params["bn3"])
    if "wsc" in params:
        residual = bn(conv(x, params["wsc"].reshape(1, 1, *params["wsc"].shape),
                           stride, "VALID"), params["bnsc"])
    else:
        residual = x[:, ::stride, ::stride, :]
    out = relu(out + residual)
    return jnp.transpose(out, (0, 3, 1, 2))


# ----------------------------------------------------------------------------
if __name__ == "__main__":
    key = jax.random.PRNGKey(0)
    k_x, k_p, k_x2, k_p2 = jax.random.split(key, 4)

    def check(out, ref, mean_tol, max_tol):
        d = jnp.abs(out.astype(jnp.float32) - ref.astype(jnp.float32))
        assert float(jnp.mean(d)) < mean_tol, float(jnp.mean(d))
        assert float(jnp.max(d)) < max_tol, float(jnp.max(d))

    # Config A: in_planes=4, planes=8, stride=1 -> conv shortcut path.
    x = jax.random.normal(k_x, (2, 4, 16, 16), dtype=jnp.float32)
    params = init_params(k_p, 4, 8, stride=1)

    out = jax.block_until_ready(basic_block_eres2net(x, params))
    ref = jax.block_until_ready(reference_forward(x, params))
    assert out.shape == (2, 16, 16, 16), out.shape
    check(out, ref, 4e-2, 3e-1)                               # bf16 MXU path

    # Same config with f32 matmuls: tighter structural check.
    out32 = jax.block_until_ready(
        basic_block_eres2net(x, params, use_bf16=False))
    check(out32, ref, 1e-2, 5e-2)

    # Config B: identity shortcut (in_planes == expansion*planes, stride=1).
    x2 = jax.random.normal(k_x2, (2, 16, 16, 16), dtype=jnp.float32)
    params2 = init_params(k_p2, 16, 8, stride=1)
    out2 = jax.block_until_ready(basic_block_eres2net(x2, params2))
    ref2 = jax.block_until_ready(reference_forward(x2, params2))
    assert out2.shape == (2, 16, 16, 16), out2.shape
    check(out2, ref2, 4e-2, 3e-1)

    # Config C: stride=2 with conv shortcut.
    params3 = init_params(jax.random.fold_in(k_p, 3), 4, 8, stride=2)
    out3 = jax.block_until_ready(basic_block_eres2net(x, params3))
    ref3 = jax.block_until_ready(reference_forward(x, params3))
    assert out3.shape == (2, 16, 8, 8), out3.shape
    check(out3, ref3, 4e-2, 3e-1)

    print("KERNEL_OK")
</pallas_src>

<mosaic_0001>
module attributes {stable_mosaic.version = 11 : i64} {
  func.func @kernel(%arg0: i32, %arg1: memref<1x16x16x4xf32, #tpu.memory_space<vmem>>, %arg2: memref<4x24xbf16, #tpu.memory_space<vmem>>, %arg3: memref<1x24xf32, #tpu.memory_space<vmem>>, %arg4: memref<2x36x4xbf16, #tpu.memory_space<vmem>>, %arg5: memref<2x1x4xf32, #tpu.memory_space<vmem>>, %arg6: memref<8x16xbf16, #tpu.memory_space<vmem>>, %arg7: memref<1x16xf32, #tpu.memory_space<vmem>>, %arg8: memref<1x256x16xbf16, #tpu.memory_space<vmem>>) attributes {dimension_semantics = [#tpu.dimension_semantics<parallel>], iteration_bounds = array<i64: 2>, scalar_prefetch = 0 : i64, scratch_operands = 0 : i64, tpu.core_type = #tpu.core_type<tc>, window_params = [{transform_indices = @transform_0, window_bounds = array<i64: 1, 16, 16, 4>}, {pipeline_mode = #tpu.pipeline_mode<synchronous>, transform_indices = @transform_1, window_bounds = array<i64: 4, 24>}, {pipeline_mode = #tpu.pipeline_mode<synchronous>, transform_indices = @transform_2, window_bounds = array<i64: 1, 24>}, {pipeline_mode = #tpu.pipeline_mode<synchronous>, transform_indices = @transform_3, window_bounds = array<i64: 2, 36, 4>}, {pipeline_mode = #tpu.pipeline_mode<synchronous>, transform_indices = @transform_4, window_bounds = array<i64: 2, 1, 4>}, {pipeline_mode = #tpu.pipeline_mode<synchronous>, transform_indices = @transform_5, window_bounds = array<i64: 8, 16>}, {pipeline_mode = #tpu.pipeline_mode<synchronous>, transform_indices = @transform_6, window_bounds = array<i64: 1, 16>}, {transform_indices = @transform_7, window_bounds = array<i64: 1, 256, 16>}]} {
    %c0 = arith.constant 0 : index
    %c0_0 = arith.constant 0 : index
    %c0_1 = arith.constant 0 : index
    %c0_2 = arith.constant 0 : index
    %0 = vector.load %arg1[%c0, %c0_0, %c0_1, %c0_2] : memref<1x16x16x4xf32, #tpu.memory_space<vmem>>, vector<1x16x16x4xf32>
    %1 = vector.shape_cast %0 : vector<1x16x16x4xf32> to vector<256x4xf32>
    %2 = arith.truncf %1 : vector<256x4xf32> to vector<256x4xbf16>
    %c0_3 = arith.constant 0 : index
    %c0_4 = arith.constant 0 : index
    %3 = vector.load %arg2[%c0_3, %c0_4] : memref<4x24xbf16, #tpu.memory_space<vmem>>, vector<4x24xbf16>
    %cst = arith.constant dense<0.000000e+00> : vector<256x24xf32>
    %4 = tpu.matmul %2, %3, %cst {dimension_numbers = #tpu.dot_dimension_numbers<[1], [0], [0], [1], [0, 0, 1, 1], [], []>} : vector<256x4xbf16>, vector<4x24xbf16>, vector<256x24xf32> -> vector<256x24xf32>
    %c0_5 = arith.constant 0 : index
    %c0_6 = arith.constant 0 : index
    %5 = vector.load %arg3[%c0_5, %c0_6] : memref<1x24xf32, #tpu.memory_space<vmem>>, vector<1x24xf32>
    %6 = vector.broadcast %5 : vector<1x24xf32> to vector<256x24xf32>
    %7 = arith.addf %4, %6 : vector<256x24xf32>
    %8 = vector.extract_strided_slice %7 {offsets = [0, 0], sizes = [256, 8], strides = [1, 1]} : vector<256x24xf32> to vector<256x8xf32>
    %cst_7 = arith.constant 0.000000e+00 : f32
    %cst_8 = arith.constant 2.000000e+01 : f32
    %9 = vector.broadcast %cst_7 : f32 to vector<256x8xf32>
    %10 = arith.maximumf %9, %8 : vector<256x8xf32>
    %11 = vector.broadcast %cst_8 : f32 to vector<256x8xf32>
    %12 = arith.minimumf %11, %10 : vector<256x8xf32>
    %13 = vector.extract_strided_slice %7 {offsets = [0, 8], sizes = [256, 16], strides = [1, 1]} : vector<256x24xf32> to vector<256x16xf32>
    %cst_9 = arith.constant 0.000000e+00 : f32
    %14 = vector.broadcast %cst_9 : f32 to vector<1x1x16x4xf32>
    %cst_10 = arith.constant 0.000000e+00 : f32
    %15 = vector.broadcast %cst_10 : f32 to vector<1x18x1x4xf32>
    %16 = vector.extract_strided_slice %12 {offsets = [0, 0], sizes = [256, 4], strides = [1, 1]} : vector<256x8xf32> to vector<256x4xf32>
    %17 = vector.shape_cast %16 : vector<256x4xf32> to vector<1x16x16x4xf32>
    %18 = tpu.concatenate %14, %17, %14 in 1 : vector<1x1x16x4xf32>, vector<1x16x16x4xf32>, vector<1x1x16x4xf32> -> vector<1x18x16x4xf32>
    %19 = tpu.concatenate %15, %18, %15 in 2 : vector<1x18x1x4xf32>, vector<1x18x16x4xf32>, vector<1x18x1x4xf32> -> vector<1x18x18x4xf32>
    %20 = vector.extract_strided_slice %19 {offsets = [0, 0, 0, 0], sizes = [1, 16, 16, 4], strides = [1, 1, 1, 1]} : vector<1x18x18x4xf32> to vector<1x16x16x4xf32>
    %21 = vector.shape_cast %20 : vector<1x16x16x4xf32> to vector<256x4xf32>
    %22 = vector.extract_strided_slice %19 {offsets = [0, 0, 1, 0], sizes = [1, 16, 16, 4], strides = [1, 1, 1, 1]} : vector<1x18x18x4xf32> to vector<1x16x16x4xf32>
    %23 = vector.shape_cast %22 : vector<1x16x16x4xf32> to vector<256x4xf32>
    %24 = vector.extract_strided_slice %19 {offsets = [0, 0, 2, 0], sizes = [1, 16, 16, 4], strides = [1, 1, 1, 1]} : vector<1x18x18x4xf32> to vector<1x16x16x4xf32>
    %25 = vector.shape_cast %24 : vector<1x16x16x4xf32> to vector<256x4xf32>
    %26 = vector.extract_strided_slice %19 {offsets = [0, 1, 0, 0], sizes = [1, 16, 16, 4], strides = [1, 1, 1, 1]} : vector<1x18x18x4xf32> to vector<1x16x16x4xf32>
    %27 = vector.shape_cast %26 : vector<1x16x16x4xf32> to vector<256x4xf32>
    %28 = vector.extract_strided_slice %19 {offsets = [0, 1, 1, 0], sizes = [1, 16, 16, 4], strides = [1, 1, 1, 1]} : vector<1x18x18x4xf32> to vector<1x16x16x4xf32>
    %29 = vector.shape_cast %28 : vector<1x16x16x4xf32> to vector<256x4xf32>
    %30 = vector.extract_strided_slice %19 {offsets = [0, 1, 2, 0], sizes = [1, 16, 16, 4], strides = [1, 1, 1, 1]} : vector<1x18x18x4xf32> to vector<1x16x16x4xf32>
    %31 = vector.shape_cast %30 : vector<1x16x16x4xf32> to vector<256x4xf32>
    %32 = vector.extract_strided_slice %19 {offsets = [0, 2, 0, 0], sizes = [1, 16, 16, 4], strides = [1, 1, 1, 1]} : vector<1x18x18x4xf32> to vector<1x16x16x4xf32>
    %33 = vector.shape_cast %32 : vector<1x16x16x4xf32> to vector<256x4xf32>
    %34 = vector.extract_strided_slice %19 {offsets = [0, 2, 1, 0], sizes = [1, 16, 16, 4], strides = [1, 1, 1, 1]} : vector<1x18x18x4xf32> to vector<1x16x16x4xf32>
    %35 = vector.shape_cast %34 : vector<1x16x16x4xf32> to vector<256x4xf32>
    %36 = vector.extract_strided_slice %19 {offsets = [0, 2, 2, 0], sizes = [1, 16, 16, 4], strides = [1, 1, 1, 1]} : vector<1x18x18x4xf32> to vector<1x16x16x4xf32>
    %37 = vector.shape_cast %36 : vector<1x16x16x4xf32> to vector<256x4xf32>
    %38 = tpu.concatenate %21, %23, %25, %27, %29, %31, %33, %35, %37 in 1 : vector<256x4xf32>, vector<256x4xf32>, vector<256x4xf32>, vector<256x4xf32>, vector<256x4xf32>, vector<256x4xf32>, vector<256x4xf32>, vector<256x4xf32>, vector<256x4xf32> -> vector<256x36xf32>
    %39 = arith.truncf %38 : vector<256x36xf32> to vector<256x36xbf16>
    %c0_11 = arith.constant 0 : index
    %c0_12 = arith.constant 0 : index
    %c0_13 = arith.constant 0 : index
    %40 = vector.load %arg4[%c0_11, %c0_12, %c0_13] : memref<2x36x4xbf16, #tpu.memory_space<vmem>>, vector<1x36x4xbf16>
    %41 = vector.shape_cast %40 : vector<1x36x4xbf16> to vector<36x4xbf16>
    %cst_14 = arith.constant dense<0.000000e+00> : vector<256x4xf32>
    %42 = tpu.matmul %39, %41, %cst_14 {dimension_numbers = #tpu.dot_dimension_numbers<[1], [0], [0], [1], [0, 0, 1, 1], [], []>} : vector<256x36xbf16>, vector<36x4xbf16>, vector<256x4xf32> -> vector<256x4xf32>
    %c0_15 = arith.constant 0 : index
    %c0_16 = arith.constant 0 : index
    %c0_17 = arith.constant 0 : index
    %43 = vector.load %arg5[%c0_15, %c0_16, %c0_17] : memref<2x1x4xf32, #tpu.memory_space<vmem>>, vector<1x1x4xf32>
    %44 = vector.shape_cast %43 : vector<1x1x4xf32> to vector<1x4xf32>
    %45 = vector.broadcast %44 : vector<1x4xf32> to vector<256x4xf32>
    %46 = arith.addf %42, %45 : vector<256x4xf32>
    %cst_18 = arith.constant 0.000000e+00 : f32
    %cst_19 = arith.constant 2.000000e+01 : f32
    %47 = vector.broadcast %cst_18 : f32 to vector<256x4xf32>
    %48 = arith.maximumf %47, %46 : vector<256x4xf32>
    %49 = vector.broadcast %cst_19 : f32 to vector<256x4xf32>
    %50 = arith.minimumf %49, %48 : vector<256x4xf32>
    %51 = vector.extract_strided_slice %12 {offsets = [0, 4], sizes = [256, 4], strides = [1, 1]} : vector<256x8xf32> to vector<256x4xf32>
    %52 = arith.addf %50, %51 : vector<256x4xf32>
    %53 = vector.shape_cast %52 : vector<256x4xf32> to vector<1x16x16x4xf32>
    %54 = tpu.concatenate %14, %53, %14 in 1 : vector<1x1x16x4xf32>, vector<1x16x16x4xf32>, vector<1x1x16x4xf32> -> vector<1x18x16x4xf32>
    %55 = tpu.concatenate %15, %54, %15 in 2 : vector<1x18x1x4xf32>, vector<1x18x16x4xf32>, vector<1x18x1x4xf32> -> vector<1x18x18x4xf32>
    %56 = vector.extract_strided_slice %55 {offsets = [0, 0, 0, 0], sizes = [1, 16, 16, 4], strides = [1, 1, 1, 1]} : vector<1x18x18x4xf32> to vector<1x16x16x4xf32>
    %57 = vector.shape_cast %56 : vector<1x16x16x4xf32> to vector<256x4xf32>
    %58 = vector.extract_strided_slice %55 {offsets = [0, 0, 1, 0], sizes = [1, 16, 16, 4], strides = [1, 1, 1, 1]} : vector<1x18x18x4xf32> to vector<1x16x16x4xf32>
    %59 = vector.shape_cast %58 : vector<1x16x16x4xf32> to vector<256x4xf32>
    %60 = vector.extract_strided_slice %55 {offsets = [0, 0, 2, 0], sizes = [1, 16, 16, 4], strides = [1, 1, 1, 1]} : vector<1x18x18x4xf32> to vector<1x16x16x4xf32>
    %61 = vector.shape_cast %60 : vector<1x16x16x4xf32> to vector<256x4xf32>
    %62 = vector.extract_strided_slice %55 {offsets = [0, 1, 0, 0], sizes = [1, 16, 16, 4], strides = [1, 1, 1, 1]} : vector<1x18x18x4xf32> to vector<1x16x16x4xf32>
    %63 = vector.shape_cast %62 : vector<1x16x16x4xf32> to vector<256x4xf32>
    %64 = vector.extract_strided_slice %55 {offsets = [0, 1, 1, 0], sizes = [1, 16, 16, 4], strides = [1, 1, 1, 1]} : vector<1x18x18x4xf32> to vector<1x16x16x4xf32>
    %65 = vector.shape_cast %64 : vector<1x16x16x4xf32> to vector<256x4xf32>
    %66 = vector.extract_strided_slice %55 {offsets = [0, 1, 2, 0], sizes = [1, 16, 16, 4], strides = [1, 1, 1, 1]} : vector<1x18x18x4xf32> to vector<1x16x16x4xf32>
    %67 = vector.shape_cast %66 : vector<1x16x16x4xf32> to vector<256x4xf32>
    %68 = vector.extract_strided_slice %55 {offsets = [0, 2, 0, 0], sizes = [1, 16, 16, 4], strides = [1, 1, 1, 1]} : vector<1x18x18x4xf32> to vector<1x16x16x4xf32>
    %69 = vector.shape_cast %68 : vector<1x16x16x4xf32> to vector<256x4xf32>
    %70 = vector.extract_strided_slice %55 {offsets = [0, 2, 1, 0], sizes = [1, 16, 16, 4], strides = [1, 1, 1, 1]} : vector<1x18x18x4xf32> to vector<1x16x16x4xf32>
    %71 = vector.shape_cast %70 : vector<1x16x16x4xf32> to vector<256x4xf32>
    %72 = vector.extract_strided_slice %55 {offsets = [0, 2, 2, 0], sizes = [1, 16, 16, 4], strides = [1, 1, 1, 1]} : vector<1x18x18x4xf32> to vector<1x16x16x4xf32>
    %73 = vector.shape_cast %72 : vector<1x16x16x4xf32> to vector<256x4xf32>
    %74 = tpu.concatenate %57, %59, %61, %63, %65, %67, %69, %71, %73 in 1 : vector<256x4xf32>, vector<256x4xf32>, vector<256x4xf32>, vector<256x4xf32>, vector<256x4xf32>, vector<256x4xf32>, vector<256x4xf32>, vector<256x4xf32>, vector<256x4xf32> -> vector<256x36xf32>
    %75 = arith.truncf %74 : vector<256x36xf32> to vector<256x36xbf16>
    %c1 = arith.constant 1 : index
    %c0_20 = arith.constant 0 : index
    %c0_21 = arith.constant 0 : index
    %76 = vector.load %arg4[%c1, %c0_20, %c0_21] : memref<2x36x4xbf16, #tpu.memory_space<vmem>>, vector<1x36x4xbf16>
    %77 = vector.shape_cast %76 : vector<1x36x4xbf16> to vector<36x4xbf16>
    %cst_22 = arith.constant dense<0.000000e+00> : vector<256x4xf32>
    %78 = tpu.matmul %75, %77, %cst_22 {dimension_numbers = #tpu.dot_dimension_numbers<[1], [0], [0], [1], [0, 0, 1, 1], [], []>} : vector<256x36xbf16>, vector<36x4xbf16>, vector<256x4xf32> -> vector<256x4xf32>
    %c1_23 = arith.constant 1 : index
    %c0_24 = arith.constant 0 : index
    %c0_25 = arith.constant 0 : index
    %79 = vector.load %arg5[%c1_23, %c0_24, %c0_25] : memref<2x1x4xf32, #tpu.memory_space<vmem>>, vector<1x1x4xf32>
    %80 = vector.shape_cast %79 : vector<1x1x4xf32> to vector<1x4xf32>
    %81 = vector.broadcast %80 : vector<1x4xf32> to vector<256x4xf32>
    %82 = arith.addf %78, %81 : vector<256x4xf32>
    %cst_26 = arith.constant 0.000000e+00 : f32
    %cst_27 = arith.constant 2.000000e+01 : f32
    %83 = vector.broadcast %cst_26 : f32 to vector<256x4xf32>
    %84 = arith.maximumf %83, %82 : vector<256x4xf32>
    %85 = vector.broadcast %cst_27 : f32 to vector<256x4xf32>
    %86 = arith.minimumf %85, %84 : vector<256x4xf32>
    %87 = tpu.concatenate %50, %86 in 1 : vector<256x4xf32>, vector<256x4xf32> -> vector<256x8xf32>
    %88 = arith.truncf %87 : vector<256x8xf32> to vector<256x8xbf16>
    %c0_28 = arith.constant 0 : index
    %c0_29 = arith.constant 0 : index
    %89 = vector.load %arg6[%c0_28, %c0_29] : memref<8x16xbf16, #tpu.memory_space<vmem>>, vector<8x16xbf16>
    %cst_30 = arith.constant dense<0.000000e+00> : vector<256x16xf32>
    %90 = tpu.matmul %88, %89, %cst_30 {dimension_numbers = #tpu.dot_dimension_numbers<[1], [0], [0], [1], [0, 0, 1, 1], [], []>} : vector<256x8xbf16>, vector<8x16xbf16>, vector<256x16xf32> -> vector<256x16xf32>
    %c0_31 = arith.constant 0 : index
    %c0_32 = arith.constant 0 : index
    %91 = vector.load %arg7[%c0_31, %c0_32] : memref<1x16xf32, #tpu.memory_space<vmem>>, vector<1x16xf32>
    %92 = vector.broadcast %91 : vector<1x16xf32> to vector<256x16xf32>
    %93 = arith.addf %90, %92 : vector<256x16xf32>
    %94 = arith.addf %93, %13 : vector<256x16xf32>
    %cst_33 = arith.constant 0.000000e+00 : f32
    %cst_34 = arith.constant 2.000000e+01 : f32
    %95 = vector.broadcast %cst_33 : f32 to vector<256x16xf32>
    %96 = arith.maximumf %95, %94 : vector<256x16xf32>
    %97 = vector.broadcast %cst_34 : f32 to vector<256x16xf32>
    %98 = arith.minimumf %97, %96 : vector<256x16xf32>
    %99 = arith.truncf %98 : vector<256x16xf32> to vector<256x16xbf16>
    %100 = vector.shape_cast %99 : vector<256x16xbf16> to vector<1x256x16xbf16>
    %c0_35 = arith.constant 0 : index
    %c0_36 = arith.constant 0 : index
    %c0_37 = arith.constant 0 : index
    %101 = vector.load %arg8[%c0_35, %c0_36, %c0_37] : memref<1x256x16xbf16, #tpu.memory_space<vmem>>, vector<1x256x16xbf16>
    tpu.vector_store %arg8[%c0_35, %c0_36, %c0_37], %100 {strides = array<i32>} : memref<1x256x16xbf16, #tpu.memory_space<vmem>>, vector<1x256x16xbf16>,
    return
  }
  func.func @transform_0(%arg0: i32) -> (i32, i32, i32, i32) {
    %c0_i32 = arith.constant 0 : i32
    %c0_i32_0 = arith.constant 0 : i32
    %c0_i32_1 = arith.constant 0 : i32
    %c0_i32_2 = arith.constant 0 : i32
    return %arg0, %c0_i32, %c0_i32_0, %c0_i32_1 : i32, i32, i32, i32
  }
  func.func @transform_1(%arg0: i32) -> (i32, i32) {
    %c0_i32 = arith.constant 0 : i32
    %c0_i32_0 = arith.constant 0 : i32
    %c0_i32_1 = arith.constant 0 : i32
    return %c0_i32, %c0_i32_0 : i32, i32
  }
  func.func @transform_2(%arg0: i32) -> (i32, i32) {
    %c0_i32 = arith.constant 0 : i32
    %c0_i32_0 = arith.constant 0 : i32
    %c0_i32_1 = arith.constant 0 : i32
    return %c0_i32, %c0_i32_0 : i32, i32
  }
  func.func @transform_3(%arg0: i32) -> (i32, i32, i32) {
    %c0_i32 = arith.constant 0 : i32
    %c0_i32_0 = arith.constant 0 : i32
    %c0_i32_1 = arith.constant 0 : i32
    %c0_i32_2 = arith.constant 0 : i32
    return %c0_i32, %c0_i32_0, %c0_i32_1 : i32, i32, i32
  }
  func.func @transform_4(%arg0: i32) -> (i32, i32, i32) {
    %c0_i32 = arith.constant 0 : i32
    %c0_i32_0 = arith.constant 0 : i32
    %c0_i32_1 = arith.constant 0 : i32
    %c0_i32_2 = arith.constant 0 : i32
    return %c0_i32, %c0_i32_0, %c0_i32_1 : i32, i32, i32
  }
  func.func @transform_5(%arg0: i32) -> (i32, i32) {
    %c0_i32 = arith.constant 0 : i32
    %c0_i32_0 = arith.constant 0 : i32
    %c0_i32_1 = arith.constant 0 : i32
    return %c0_i32, %c0_i32_0 : i32, i32
  }
  func.func @transform_6(%arg0: i32) -> (i32, i32) {
    %c0_i32 = arith.constant 0 : i32
    %c0_i32_0 = arith.constant 0 : i32
    %c0_i32_1 = arith.constant 0 : i32
    return %c0_i32, %c0_i32_0 : i32, i32
  }
  func.func @transform_7(%arg0: i32) -> (i32, i32, i32) {
    %c0_i32 = arith.constant 0 : i32
    %c0_i32_0 = arith.constant 0 : i32
    %c0_i32_1 = arith.constant 0 : i32
    return %arg0, %c0_i32, %c0_i32_0 : i32, i32, i32
  }
}

</mosaic_0001>

<llo_original>
// kernel: tpu_custom_call.1
$region0: #{tpu_custom_call.1}
  #allocation0 [shape = 'u32[]', space=smem, size = 0x4, offset = 0x4, fixed_abs, tag = 'smem constant byte address 0x4 - core index']
  #allocation1 [shape = 'u32[144,128]{1,0:T(1,128)}', space=vmem, size = 0x12000, scoped, tag = 'internal scratch']
  %s0 = inlined_call_operand.vmem [shape: f32[2,16,16,4], index: 0, kind: input, shape index: {}]
  %s1 = inlined_call_operand.vmem [shape: bf16[4,24], index: 1, kind: input, shape index: {}]
  %s2 = inlined_call_operand.vmem [shape: f32[1,24], index: 2, kind: input, shape index: {}]
  %s3 = inlined_call_operand.vmem [shape: bf16[2,36,4], index: 3, kind: input, shape index: {}]
  %s4 = inlined_call_operand.vmem [shape: f32[2,1,4], index: 4, kind: input, shape index: {}]
  %s5 = inlined_call_operand.vmem [shape: bf16[8,16], index: 5, kind: input, shape index: {}]
  %s6 = inlined_call_operand.vmem [shape: f32[1,16], index: 6, kind: input, shape index: {}]
  %s7 = inlined_call_operand.vmem [shape: bf16[2,256,16], index: 7, kind: output, shape index: {}]
  %s8 = sld [smem:[#allocation0]]
  $region61: #{tpu_custom_call.1} parent=0
    _
  %s10 = ssub.s32 1, %s8
  %s11 = scalar_select 0, %s10, %s8
  loop: start=0, step=1, limit=4
  $region2: #{tpu_custom_call.1} parent=0 // loop_pre_header
    _
  $region3: #{tpu_custom_call.1} parent=0 // loop_header
    %s13 = sphi 0, %s17
    %p14 = scmp.ge.s32.totalorder %s13, 4
    %s23 = sphi 0, %s25
    %s26 = sphi 0, %s23
    %s27 = sphi 0, %s26
    %s43 = sphi 0, %s27
    %s47 = sphi 0, %s47
    %s49 = sphi 0, %s47
    %s50 = sphi 0, %s49
    %s64 = sphi 0, %s50
    %s68 = sphi 0, %s68
    %s70 = sphi 0, %s68
    %s71 = sphi 0, %s70
    %s85 = sphi 0, %s71
    %s89 = sphi 0, %s89
    %s91 = sphi 0, %s89
    %s92 = sphi 0, %s91
    %s106 = sphi 0, %s92
    %s110 = sphi 0, %s110
    %s112 = sphi 0, %s110
    %s113 = sphi 0, %s112
    %s127 = sphi 0, %s113
    %s131 = sphi 0, %s131
    %s133 = sphi 0, %s131
    %s134 = sphi 0, %s133
    %s148 = sphi 0, %s134
    %s152 = sphi 0, %s152
    %s154 = sphi 0, %s152
    %s155 = sphi 0, %s154
    %s169 = sphi 0, %s155
    %s175 = sphi 0, %s177
    %s178 = sphi 0, %s175
    %s179 = sphi 0, %s178
    %s195 = sphi 0, %s179
  $region4: #{tpu_custom_call.1} parent=0 // loop_header_branch
    %16 = sbr.rel (%p14) target = $region8
  $region5: #{tpu_custom_call.1} parent=0 // loop_body
    %s18 = ssub.s32 %s13, 1
    %s19 = ssub.s32 %s13, 2
    %s20 = sadd.s32 %s13, 1
    %s21 = ssub.s32 %s13, %s20
    %p22 = scmp.eq.s32.totalorder %s21, 0
    %s24 = sadd.s32 %s23, 1
    %s25 = scalar_select %p22, %s23, %s24
    %p28 = pneg %p22
    %p29 = scmp.eq.s32.totalorder %s13, 1
    %p30 = por %p28, %p29
    %p31 = scmp.ne.s32.totalorder %s23, %s26
    %p32 = scmp.eq.s32.totalorder %s13, 0
    %p33 = por %p31, %p32
    %p34 = scmp.ne.s32.totalorder %s23, %s26
    %p35 = scmp.eq.s32.totalorder %s18, 1
    %p36 = por %p34, %p35
    %p37 = scmp.ne.s32.totalorder %s26, %s27
    %p38 = scmp.eq.s32.totalorder %s18, 0
    %p39 = por %p37, %p38
    %p40 = scmp.ne.s32.totalorder %s26, %s27
    %p41 = scmp.eq.s32.totalorder %s19, 1
    %p42 = por %p40, %p41
    %p44 = scmp.ne.s32.totalorder %s27, %s43
    %p45 = scmp.eq.s32.totalorder %s19, 0
    %p46 = por %p44, %p45
    %s48 = sadd.s32 %s47, 1
    %p51 = scmp.eq.s32.totalorder %s13, 1
    %p52 = scmp.ne.s32.totalorder %s47, %s49
    %p53 = scmp.eq.s32.totalorder %s13, 0
    %p54 = por %p52, %p53
    %p55 = scmp.ne.s32.totalorder %s47, %s49
    %p56 = scmp.eq.s32.totalorder %s18, 1
    %p57 = por %p55, %p56
    %p58 = scmp.ne.s32.totalorder %s49, %s50
    %p59 = scmp.eq.s32.totalorder %s18, 0
    %p60 = por %p58, %p59
    %p61 = scmp.ne.s32.totalorder %s49, %s50
    %p62 = scmp.eq.s32.totalorder %s19, 1
    %p63 = por %p61, %p62
    %p65 = scmp.ne.s32.totalorder %s50, %s64
    %p66 = scmp.eq.s32.totalorder %s19, 0
    %p67 = por %p65, %p66
    %s69 = sadd.s32 %s68, 1
    %p72 = scmp.eq.s32.totalorder %s13, 1
    %p73 = scmp.ne.s32.totalorder %s68, %s70
    %p74 = scmp.eq.s32.totalorder %s13, 0
    %p75 = por %p73, %p74
    %p76 = scmp.ne.s32.totalorder %s68, %s70
    %p77 = scmp.eq.s32.totalorder %s18, 1
    %p78 = por %p76, %p77
    %p79 = scmp.ne.s32.totalorder %s70, %s71
    %p80 = scmp.eq.s32.totalorder %s18, 0
    %p81 = por %p79, %p80
    %p82 = scmp.ne.s32.totalorder %s70, %s71
    %p83 = scmp.eq.s32.totalorder %s19, 1
    %p84 = por %p82, %p83
    %p86 = scmp.ne.s32.totalorder %s71, %s85
    %p87 = scmp.eq.s32.totalorder %s19, 0
    %p88 = por %p86, %p87
    %s90 = sadd.s32 %s89, 1
    %p93 = scmp.eq.s32.totalorder %s13, 1
    %p94 = scmp.ne.s32.totalorder %s89, %s91
    %p95 = scmp.eq.s32.totalorder %s13, 0
    %p96 = por %p94, %p95
    %p97 = scmp.ne.s32.totalorder %s89, %s91
    %p98 = scmp.eq.s32.totalorder %s18, 1
    %p99 = por %p97, %p98
    %p100 = scmp.ne.s32.totalorder %s91, %s92
    %p101 = scmp.eq.s32.totalorder %s18, 0
    %p102 = por %p100, %p101
    %p103 = scmp.ne.s32.totalorder %s91, %s92
    %p104 = scmp.eq.s32.totalorder %s19, 1
    %p105 = por %p103, %p104
    %p107 = scmp.ne.s32.totalorder %s92, %s106
    %p108 = scmp.eq.s32.totalorder %s19, 0
    %p109 = por %p107, %p108
    %s111 = sadd.s32 %s110, 1
    %p114 = scmp.eq.s32.totalorder %s13, 1
    %p115 = scmp.ne.s32.totalorder %s110, %s112
    %p116 = scmp.eq.s32.totalorder %s13, 0
    %p117 = por %p115, %p116
    %p118 = scmp.ne.s32.totalorder %s110, %s112
    %p119 = scmp.eq.s32.totalorder %s18, 1
    %p120 = por %p118, %p119
    %p121 = scmp.ne.s32.totalorder %s112, %s113
    %p122 = scmp.eq.s32.totalorder %s18, 0
    %p123 = por %p121, %p122
    %p124 = scmp.ne.s32.totalorder %s112, %s113
    %p125 = scmp.eq.s32.totalorder %s19, 1
    %p126 = por %p124, %p125
    %p128 = scmp.ne.s32.totalorder %s113, %s127
    %p129 = scmp.eq.s32.totalorder %s19, 0
    %p130 = por %p128, %p129
    %s132 = sadd.s32 %s131, 1
    %p135 = scmp.eq.s32.totalorder %s13, 1
    %p136 = scmp.ne.s32.totalorder %s131, %s133
    %p137 = scmp.eq.s32.totalorder %s13, 0
    %p138 = por %p136, %p137
    %p139 = scmp.ne.s32.totalorder %s131, %s133
    %p140 = scmp.eq.s32.totalorder %s18, 1
    %p141 = por %p139, %p140
    %p142 = scmp.ne.s32.totalorder %s133, %s134
    %p143 = scmp.eq.s32.totalorder %s18, 0
    %p144 = por %p142, %p143
    %p145 = scmp.ne.s32.totalorder %s133, %s134
    %p146 = scmp.eq.s32.totalorder %s19, 1
    %p147 = por %p145, %p146
    %p149 = scmp.ne.s32.totalorder %s134, %s148
    %p150 = scmp.eq.s32.totalorder %s19, 0
    %p151 = por %p149, %p150
    %s153 = sadd.s32 %s152, 1
    %p156 = scmp.eq.s32.totalorder %s13, 1
    %p157 = scmp.ne.s32.totalorder %s152, %s154
    %p158 = scmp.eq.s32.totalorder %s13, 0
    %p159 = por %p157, %p158
    %p160 = scmp.ne.s32.totalorder %s152, %s154
    %p161 = scmp.eq.s32.totalorder %s18, 1
    %p162 = por %p160, %p161
    %p163 = scmp.ne.s32.totalorder %s154, %s155
    %p164 = scmp.eq.s32.totalorder %s18, 0
    %p165 = por %p163, %p164
    %p166 = scmp.ne.s32.totalorder %s154, %s155
    %p167 = scmp.eq.s32.totalorder %s19, 1
    %p168 = por %p166, %p167
    %p170 = scmp.ne.s32.totalorder %s155, %s169
    %p171 = scmp.eq.s32.totalorder %s19, 0
    %p172 = por %p170, %p171
    %s173 = ssub.s32 %s13, %s20
    %p174 = scmp.eq.s32.totalorder %s173, 0
    %s176 = sadd.s32 %s175, 1
    %s177 = scalar_select %p174, %s175, %s176
    %p180 = pneg %p174
    %p181 = scmp.eq.s32.totalorder %s13, 1
    %p182 = por %p180, %p181
    %p183 = scmp.ne.s32.totalorder %s175, %s178
    %p184 = scmp.eq.s32.totalorder %s13, 0
    %p185 = por %p183, %p184
    %p186 = scmp.ne.s32.totalorder %s175, %s178
    %p187 = scmp.eq.s32.totalorder %s18, 1
    %p188 = por %p186, %p187
    %p189 = scmp.ne.s32.totalorder %s178, %s179
    %p190 = scmp.eq.s32.totalorder %s18, 0
    %p191 = por %p189, %p190
    %p192 = scmp.ne.s32.totalorder %s178, %s179
    %p193 = scmp.eq.s32.totalorder %s19, 1
    %p194 = por %p192, %p193
    %p196 = scmp.ne.s32.totalorder %s179, %s195
    %p197 = scmp.eq.s32.totalorder %s19, 0
    %p198 = por %p196, %p197
    %p199 = scmp.le.s32.totalorder 1, %s13
    %p200 = scmp.lt.s32.totalorder %s13, 3
    %p201 = pnand %p199, %p200
    %p202 = pneg %p201
    // Predicated region
    $region9: #{tpu_custom_call.1} parent=5 // pred_check
      _
    $region10: #{tpu_custom_call.1} parent=5 // pred_check_branch
      %204 = sbr.rel (%p201) target = $region12
    $region11: #{tpu_custom_call.1} parent=5 // pred_region
      %s205 = ssub.s32 %s13, 1
      // Predicated region
      $region13: #{tpu_custom_call.1} parent=11 // pred_check
        %p206 = pneg %p60
      $region14: #{tpu_custom_call.1} parent=11 // pred_check_branch
        %208 = sbr.rel (%p206) target = $region16
      $region15: #{tpu_custom_call.1} parent=11 // pred_region
        _
      $region16: #{tpu_custom_call.1} parent=11 // pred_fallthru
        _
      // Predicated region
      $region17: #{tpu_custom_call.1} parent=11 // pred_check
        %p209 = pneg %p81
      $region18: #{tpu_custom_call.1} parent=11 // pred_check_branch
        %211 = sbr.rel (%p209) target = $region20
      $region19: #{tpu_custom_call.1} parent=11 // pred_region
        _
      $region20: #{tpu_custom_call.1} parent=11 // pred_fallthru
        _
      // Predicated region
      $region21: #{tpu_custom_call.1} parent=11 // pred_check
        %p212 = pneg %p102
      $region22: #{tpu_custom_call.1} parent=11 // pred_check_branch
        %214 = sbr.rel (%p212) target = $region24
      $region23: #{tpu_custom_call.1} parent=11 // pred_region
        _
      $region24: #{tpu_custom_call.1} parent=11 // pred_fallthru
        _
      // Predicated region
      $region25: #{tpu_custom_call.1} parent=11 // pred_check
        %p215 = pneg %p123
      $region26: #{tpu_custom_call.1} parent=11 // pred_check_branch
        %217 = sbr.rel (%p215) target = $region28
      $region27: #{tpu_custom_call.1} parent=11 // pred_region
        _
      $region28: #{tpu_custom_call.1} parent=11 // pred_fallthru
        _
      // Predicated region
      $region29: #{tpu_custom_call.1} parent=11 // pred_check
        %p218 = pneg %p144
      $region30: #{tpu_custom_call.1} parent=11 // pred_check_branch
        %220 = sbr.rel (%p218) target = $region32
      $region31: #{tpu_custom_call.1} parent=11 // pred_region
        _
      $region32: #{tpu_custom_call.1} parent=11 // pred_fallthru
        _
      // Predicated region
      $region33: #{tpu_custom_call.1} parent=11 // pred_check
        %p221 = pneg %p165
      $region34: #{tpu_custom_call.1} parent=11 // pred_check_branch
        %223 = sbr.rel (%p221) target = $region36
      $region35: #{tpu_custom_call.1} parent=11 // pred_region
        _
      $region36: #{tpu_custom_call.1} parent=11 // pred_fallthru
        _
    $region12: #{tpu_custom_call.1} parent=5 // pred_fallthru
      _
    %p224 = scmp.lt.s32.totalorder %s13, 2
    // Predicated region
    $region37: #{tpu_custom_call.1} parent=5 // pred_check
      %p225 = pneg %p224
    $region38: #{tpu_custom_call.1} parent=5 // pred_check_branch
      %227 = sbr.rel (%p225) target = $region40
    $region39: #{tpu_custom_call.1} parent=5 // pred_region
      // Predicated region
      $region41: #{tpu_custom_call.1} parent=39 // pred_check
        %p228 = pneg %p33
      $region42: #{tpu_custom_call.1} parent=39 // pred_check_branch
        %230 = sbr.rel (%p228) target = $region44
      $region43: #{tpu_custom_call.1} parent=39 // pred_region
        %p231 = scmp.lt.s32.totalorder %s13, 1
        %s232 = scalar_select %p231, %s13, 1
        %s233 = smul.addr %s232, 32
        %s234 = smul.addr %s233, 8
        %s235 = scalar_lea.vmem %s0, %s234
      $region44: #{tpu_custom_call.1} parent=39 // pred_fallthru
        _
    $region40: #{tpu_custom_call.1} parent=5 // pred_fallthru
      _
    %p236 = scmp.le.s32.totalorder 1, %s13
    %p237 = scmp.lt.s32.totalorder %s13, 3
    %p238 = pnand %p236, %p237
    %p239 = pneg %p238
    // Predicated region
    $region45: #{tpu_custom_call.1} parent=5 // pred_check
      _
    $region46: #{tpu_custom_call.1} parent=5 // pred_check_branch
      %241 = sbr.rel (%p238) target = $region48
    $region47: #{tpu_custom_call.1} parent=5 // pred_region
      %s242 = ssub.s32 %s13, 1
      %p243 = scmp.lt.s32.totalorder %s18, 1
      %s244 = scalar_select %p243, %s18, 1
      %s245 = smul.addr %s244, 32
      %s246 = smul.addr %s245, 8
      %s247 = scalar_lea.vmem %s0, %s246
      %p248 = pneg %p39
      %p249 = pneg %p36
      %p250 = pneg %p60
      %p251 = pneg %p57
      %p252 = pneg %p81
      %p253 = pneg %p78
      %p254 = pneg %p102
      %p255 = pneg %p99
      %p256 = pneg %p123
      %p257 = pneg %p120
      %p258 = pneg %p144
      %p259 = pneg %p141
      %p260 = pneg %p165
      %p261 = pneg %p162
      %p262 = pneg %p191
      %p263 = pneg %p188
      %p264 = scmp.lt.s32.totalorder %s18, 1
      %s265 = scalar_select %p264, %s18, 1
      %s266 = smul.addr %s265, 32
      %s267 = smul.addr %s266, 4
      %s268 = scalar_lea.vmem %s7, %s267
      %p269 = scmp.lt.s32.totalorder %s18, 1
      %s270 = scalar_select %p269, %s18, 1
      %s271 = smul.addr %s270, 32
      %s272 = smul.addr %s271, 8
      %s273 = scalar_lea.vmem %s0, %s272
      %p274 = scmp.lt.s32.totalorder %s18, 1
      %s275 = scalar_select %p274, %s18, 1
      %s276 = smul.addr %s275, 32
      %s277 = smul.addr %s276, 4
      %s278 = scalar_lea.vmem %s7, %s277
      %v280 = vld [vmem:[%s273] sm:$0xff]
      %v281 = vld [vmem:[%s273 + $0x8] sm:$0xff]
      %v282 = vld [vmem:[%s273 + $0x10] sm:$0xff]
      %v283 = vld [vmem:[%s273 + $0x18] sm:$0xff]
      %v284 = vld [vmem:[%s273 + $0x20] sm:$0xff]
      %v285 = vld [vmem:[%s273 + $0x28] sm:$0xff]
      %v286 = vld [vmem:[%s273 + $0x30] sm:$0xff]
      %v287 = vld [vmem:[%s273 + $0x38] sm:$0xff]
      %v288 = vld [vmem:[%s273 + $0x40] sm:$0xff]
      %v289 = vld [vmem:[%s273 + $0x48] sm:$0xff]
      %v290 = vld [vmem:[%s273 + $0x50] sm:$0xff]
      %v291 = vld [vmem:[%s273 + $0x58] sm:$0xff]
      %v292 = vld [vmem:[%s273 + $0x60] sm:$0xff]
      %v293 = vld [vmem:[%s273 + $0x68] sm:$0xff]
      %v294 = vld [vmem:[%s273 + $0x70] sm:$0xff]
      %v295 = vld [vmem:[%s273 + $0x78] sm:$0xff]
      %v296 = vld [vmem:[%s273 + $0x80] sm:$0xff]
      %v297 = vld [vmem:[%s273 + $0x88] sm:$0xff]
      %v298 = vld [vmem:[%s273 + $0x90] sm:$0xff]
      %v299 = vld [vmem:[%s273 + $0x98] sm:$0xff]
      %v300 = vld [vmem:[%s273 + $0xa0] sm:$0xff]
      %v301 = vld [vmem:[%s273 + $0xa8] sm:$0xff]
      %v302 = vld [vmem:[%s273 + $0xb0] sm:$0xff]
      %v303 = vld [vmem:[%s273 + $0xb8] sm:$0xff]
      %v304 = vld [vmem:[%s273 + $0xc0] sm:$0xff]
      %v305 = vld [vmem:[%s273 + $0xc8] sm:$0xff]
      %v306 = vld [vmem:[%s273 + $0xd0] sm:$0xff]
      %v307 = vld [vmem:[%s273 + $0xd8] sm:$0xff]
      %v308 = vld [vmem:[%s273 + $0xe0] sm:$0xff]
      %v309 = vld [vmem:[%s273 + $0xe8] sm:$0xff]
      %v310 = vld [vmem:[%s273 + $0xf0] sm:$0xff]
      %v311 = vld [vmem:[%s273 + $0xf8] sm:$0xff]
      %v312 = vpack.c.bf16 %v281, %v280
      %v313 = vpack.c.bf16 %v283, %v282
      %v314 = vpack.c.bf16 %v285, %v284
      %v315 = vpack.c.bf16 %v287, %v286
      %v316 = vpack.c.bf16 %v289, %v288
      %v317 = vpack.c.bf16 %v291, %v290
      %v318 = vpack.c.bf16 %v293, %v292
      %v319 = vpack.c.bf16 %v295, %v294
      %v320 = vpack.c.bf16 %v297, %v296
      %v321 = vpack.c.bf16 %v299, %v298
      %v322 = vpack.c.bf16 %v301, %v300
      %v323 = vpack.c.bf16 %v303, %v302
      %v324 = vpack.c.bf16 %v305, %v304
      %v325 = vpack.c.bf16 %v307, %v306
      %v326 = vpack.c.bf16 %v309, %v308
      %v327 = vpack.c.bf16 %v311, %v310
      %v328 = vld [vmem:[%s1] sm:$0x3]
      %v329 = vld [vmem:[%s2] sm:$0x1]
      %v331 = vlaneseq
      %v332 = vshrl.u32 %v331, 7
      %v333 = vsub.s32 0, %v332
      %v334 = vrot.slane %v329, %v333
      %vm336 = vcmask 31744
      %v338 = vsel %vm336, %v312, 0
      %v341 = vsel %vm336, %v313, 0
      %v344 = vsel %vm336, %v314, 0
      %v347 = vsel %vm336, %v315, 0
      %v350 = vsel %vm336, %v316, 0
      %v353 = vsel %vm336, %v317, 0
      %v356 = vsel %vm336, %v318, 0
      %v359 = vsel %vm336, %v319, 0
      %v362 = vsel %vm336, %v320, 0
      %v365 = vsel %vm336, %v321, 0
      %v368 = vsel %vm336, %v322, 0
      %v371 = vsel %vm336, %v323, 0
      %v374 = vsel %vm336, %v324, 0
      %v377 = vsel %vm336, %v325, 0
      %v380 = vsel %vm336, %v326, 0
      %v383 = vsel %vm336, %v327, 0
      %vm385 = vcmask 1041408
      %v387 = vsel %vm385, %v328, 0
      %389 = vmatprep.subr.bf16.mxu0 0
      %390 = vmatpush1.bf16.msra.mxu0 %v387
      %391 = vmatprep.subr.bf16.mxu0 0
      %392 = vmatpush1.bf16.msra.mxu0 0
      %393 = vmatprep.subr.bf16.mxu0 0
      %394 = vmatpush1.bf16.msra.mxu0 0
      %395 = vmatprep.subr.bf16.mxu0 0
      %396 = vmatpush1.bf16.msra.mxu0 0
      %397 = vmatprep.subr.bf16.mxu0 0
      %398 = vmatpush1.bf16.msra.mxu0 0
      %399 = vmatprep.subr.bf16.mxu0 0
      %400 = vmatpush1.bf16.msra.mxu0 0
      %401 = vmatprep.subr.bf16.mxu0 0
      %402 = vmatpush1.bf16.msra.mxu0 0
      %403 = vmatprep.subr.bf16.mxu0 0
      %404 = vmatpush1.bf16.msra.mxu0 0
      %405 = vmatprep.subr.bf16.mxu0 0
      %406 = vmatpush1.bf16.msra.mxu0 0
      %407 = vmatprep.subr.bf16.mxu0 0
      %408 = vmatpush1.bf16.msra.mxu0 0
      %409 = vmatprep.subr.bf16.mxu0 0
      %410 = vmatpush1.bf16.msra.mxu0 0
      %411 = vmatprep.subr.bf16.mxu0 0
      %412 = vmatpush1.bf16.msra.mxu0 0
      %413 = vmatprep.subr.bf16.mxu0 0
      %414 = vmatpush1.bf16.msra.mxu0 0
      %415 = vmatprep.subr.bf16.mxu0 0
      %416 = vmatpush1.bf16.msra.mxu0 0
      %417 = vmatprep.subr.bf16.mxu0 0
      %418 = vmatpush1.bf16.msra.mxu0 0
      %419 = vmatprep.subr.bf16.mxu0 0
      %420 = vmatpush1.bf16.msra.mxu0 0
      %421 = vmatprep.mubr.bf16.mxu0 0
      %422 = vmatmul.mubr.bf16.gmra.mrb[0].mxu0 %v338
      %v423 = vpop.f32.mrb[0].mxu0
      %v424 = vadd.f32 %v334, %v423
      %v425 = vpop.f32.mrb[0].mxu0
      %v426 = vpop.f32.mrb[0].mxu0
      %v427 = vadd.f32 %v334, %v426
      %v428 = vpop.f32.mrb[0].mxu0
      %429 = vmatprep.mubr.bf16.mxu0 0
      %430 = vmatmul.mubr.bf16.gmra.mrb[0].mxu0 %v341
      %v431 = vpop.f32.mrb[0].mxu0
      %v432 = vadd.f32 %v334, %v431
      %v433 = vpop.f32.mrb[0].mxu0
      %v434 = vpop.f32.mrb[0].mxu0
      %v435 = vadd.f32 %v334, %v434
      %v436 = vpop.f32.mrb[0].mxu0
      %437 = vmatprep.mubr.bf16.mxu0 0
      %438 = vmatmul.mubr.bf16.gmra.mrb[0].mxu0 %v344
      %v439 = vpop.f32.mrb[0].mxu0
      %v440 = vadd.f32 %v334, %v439
      %v441 = vpop.f32.mrb[0].mxu0
      %v442 = vpop.f32.mrb[0].mxu0
      %v443 = vadd.f32 %v334, %v442
      %v444 = vpop.f32.mrb[0].mxu0
      %445 = vmatprep.mubr.bf16.mxu0 0
      %446 = vmatmul.mubr.bf16.gmra.mrb[0].mxu0 %v347
      %v447 = vpop.f32.mrb[0].mxu0
      %v448 = vadd.f32 %v334, %v447
      %v449 = vpop.f32.mrb[0].mxu0
      %v450 = vpop.f32.mrb[0].mxu0
      %v451 = vadd.f32 %v334, %v450
      %v452 = vpop.f32.mrb[0].mxu0
      %453 = vmatprep.mubr.bf16.mxu0 0
      %454 = vmatmul.mubr.bf16.gmra.mrb[0].mxu0 %v350
      %v455 = vpop.f32.mrb[0].mxu0
      %v456 = vadd.f32 %v334, %v455
      %v457 = vpop.f32.mrb[0].mxu0
      %v458 = vpop.f32.mrb[0].mxu0
      %v459 = vadd.f32 %v334, %v458
      %v460 = vpop.f32.mrb[0].mxu0
      %461 = vmatprep.mubr.bf16.mxu0 0
      %462 = vmatmul.mubr.bf16.gmra.mrb[0].mxu0 %v353
      %v463 = vpop.f32.mrb[0].mxu0
      %v464 = vadd.f32 %v334, %v463
      %v465 = vpop.f32.mrb[0].mxu0
      %v466 = vpop.f32.mrb[0].mxu0
      %v467 = vadd.f32 %v334, %v466
      %v468 = vpop.f32.mrb[0].mxu0
      %469 = vmatprep.mubr.bf16.mxu0 0
      %470 = vmatmul.mubr.bf16.gmra.mrb[0].mxu0 %v356
      %v471 = vpop.f32.mrb[0].mxu0
      %v472 = vadd.f32 %v334, %v471
      %v473 = vpop.f32.mrb[0].mxu0
      %v474 = vpop.f32.mrb[0].mxu0
      %v475 = vadd.f32 %v334, %v474
      %v476 = vpop.f32.mrb[0].mxu0
      %477 = vmatprep.mubr.bf16.mxu0 0
      %478 = vmatmul.mubr.bf16.gmra.mrb[0].mxu0 %v359
      %v479 = vpop.f32.mrb[0].mxu0
      %v480 = vadd.f32 %v334, %v479
      %v481 = vpop.f32.mrb[0].mxu0
      %v482 = vpop.f32.mrb[0].mxu0
      %v483 = vadd.f32 %v334, %v482
      %v484 = vpop.f32.mrb[0].mxu0
      %485 = vmatprep.mubr.bf16.mxu0 0
      %486 = vmatmul.mubr.bf16.gmra.mrb[0].mxu0 %v362
      %v487 = vpop.f32.mrb[0].mxu0
      %v488 = vadd.f32 %v334, %v487
      %v489 = vpop.f32.mrb[0].mxu0
      %v490 = vpop.f32.mrb[0].mxu0
      %v491 = vadd.f32 %v334, %v490
      %v492 = vpop.f32.mrb[0].mxu0
      %493 = vmatprep.mubr.bf16.mxu0 0
      %494 = vmatmul.mubr.bf16.gmra.mrb[0].mxu0 %v365
      %v495 = vpop.f32.mrb[0].mxu0
      %v496 = vadd.f32 %v334, %v495
      %v497 = vpop.f32.mrb[0].mxu0
      %v498 = vpop.f32.mrb[0].mxu0
      %v499 = vadd.f32 %v334, %v498
      %v500 = vpop.f32.mrb[0].mxu0
      %501 = vmatprep.mubr.bf16.mxu0 0
      %502 = vmatmul.mubr.bf16.gmra.mrb[0].mxu0 %v368
      %v503 = vpop.f32.mrb[0].mxu0
      %v504 = vadd.f32 %v334, %v503
      %v505 = vpop.f32.mrb[0].mxu0
      %v506 = vpop.f32.mrb[0].mxu0
      %v507 = vadd.f32 %v334, %v506
      %v508 = vpop.f32.mrb[0].mxu0
      %509 = vmatprep.mubr.bf16.mxu0 0
      %510 = vmatmul.mubr.bf16.gmra.mrb[0].mxu0 %v371
      %v511 = vpop.f32.mrb[0].mxu0
      %v512 = vadd.f32 %v334, %v511
      %v513 = vpop.f32.mrb[0].mxu0
      %v514 = vpop.f32.mrb[0].mxu0
      %v515 = vadd.f32 %v334, %v514
      %v516 = vpop.f32.mrb[0].mxu0
      %517 = vmatprep.mubr.bf16.mxu0 0
      %518 = vmatmul.mubr.bf16.gmra.mrb[0].mxu0 %v374
      %v519 = vpop.f32.mrb[0].mxu0
      %v520 = vadd.f32 %v334, %v519
      %v521 = vpop.f32.mrb[0].mxu0
      %v522 = vpop.f32.mrb[0].mxu0
      %v523 = vadd.f32 %v334, %v522
      %v524 = vpop.f32.mrb[0].mxu0
      %525 = vmatprep.mubr.bf16.mxu0 0
      %526 = vmatmul.mubr.bf16.gmra.mrb[0].mxu0 %v377
      %v527 = vpop.f32.mrb[0].mxu0
      %v528 = vadd.f32 %v334, %v527
      %v529 = vpop.f32.mrb[0].mxu0
      %v530 = vpop.f32.mrb[0].mxu0
      %v531 = vadd.f32 %v334, %v530
      %v532 = vpop.f32.mrb[0].mxu0
      %533 = vmatprep.mubr.bf16.mxu0 0
      %534 = vmatmul.mubr.bf16.gmra.mrb[0].mxu0 %v380
      %v535 = vpop.f32.mrb[0].mxu0
      %v536 = vadd.f32 %v334, %v535
      %v537 = vpop.f32.mrb[0].mxu0
      %v538 = vpop.f32.mrb[0].mxu0
      %v539 = vadd.f32 %v334, %v538
      %v540 = vpop.f32.mrb[0].mxu0
      %541 = vmatprep.mubr.bf16.mxu0 0
      %542 = vmatmul.mubr.bf16.gmra.mrb[0].mxu0 %v383
      %v543 = vpop.f32.mrb[0].mxu0
      %v544 = vadd.f32 %v334, %v543
      %v545 = vpop.f32.mrb[0].mxu0
      %v546 = vpop.f32.mrb[0].mxu0
      %v547 = vadd.f32 %v334, %v546
      %v548 = vpop.f32.mrb[0].mxu0
      %549 = vdwg.mxu0
      %v550 = vmax.f32 %v424, 0.0
      %v551 = vmax.f32 %v427, 0.0
      %v552 = vmax.f32 %v432, 0.0
      %v553 = vmax.f32 %v435, 0.0
      %v554 = vmax.f32 %v440, 0.0
      %v555 = vmax.f32 %v443, 0.0
      %v556 = vmax.f32 %v448, 0.0
      %v557 = vmax.f32 %v451, 0.0
      %v558 = vmax.f32 %v456, 0.0
      %v559 = vmax.f32 %v459, 0.0
      %v560 = vmax.f32 %v464, 0.0
      %v561 = vmax.f32 %v467, 0.0
      %v562 = vmax.f32 %v472, 0.0
      %v563 = vmax.f32 %v475, 0.0
      %v564 = vmax.f32 %v480, 0.0
      %v565 = vmax.f32 %v483, 0.0
      %v566 = vmax.f32 %v488, 0.0
      %v567 = vmax.f32 %v491, 0.0
      %v568 = vmax.f32 %v496, 0.0
      %v569 = vmax.f32 %v499, 0.0
      %v570 = vmax.f32 %v504, 0.0
      %v571 = vmax.f32 %v507, 0.0
      %v572 = vmax.f32 %v512, 0.0
      %v573 = vmax.f32 %v515, 0.0
      %v574 = vmax.f32 %v520, 0.0
      %v575 = vmax.f32 %v523, 0.0
      %v576 = vmax.f32 %v528, 0.0
      %v577 = vmax.f32 %v531, 0.0
      %v578 = vmax.f32 %v536, 0.0
      %v579 = vmax.f32 %v539, 0.0
      %v580 = vmax.f32 %v544, 0.0
      %v581 = vmax.f32 %v547, 0.0
      %v582 = vmin.f32 %v550, 20.0
      %v583 = vmin.f32 %v551, 20.0
      %v584 = vmin.f32 %v552, 20.0
      %v585 = vmin.f32 %v553, 20.0
      %v586 = vmin.f32 %v554, 20.0
      %v587 = vmin.f32 %v555, 20.0
      %v588 = vmin.f32 %v556, 20.0
      %v589 = vmin.f32 %v557, 20.0
      %v590 = vmin.f32 %v558, 20.0
      %v591 = vmin.f32 %v559, 20.0
      %v592 = vmin.f32 %v560, 20.0
      %v593 = vmin.f32 %v561, 20.0
      %v594 = vmin.f32 %v562, 20.0
      %v595 = vmin.f32 %v563, 20.0
      %v596 = vmin.f32 %v564, 20.0
      %v597 = vmin.f32 %v565, 20.0
      %v598 = vmin.f32 %v566, 20.0
      %v599 = vmin.f32 %v567, 20.0
      %v600 = vmin.f32 %v568, 20.0
      %v601 = vmin.f32 %v569, 20.0
      %v602 = vmin.f32 %v570, 20.0
      %v603 = vmin.f32 %v571, 20.0
      %v604 = vmin.f32 %v572, 20.0
      %v605 = vmin.f32 %v573, 20.0
      %v606 = vmin.f32 %v574, 20.0
      %v607 = vmin.f32 %v575, 20.0
      %v608 = vmin.f32 %v576, 20.0
      %v609 = vmin.f32 %v577, 20.0
      %v610 = vmin.f32 %v578, 20.0
      %v611 = vmin.f32 %v579, 20.0
      %v612 = vmin.f32 %v580, 20.0
      %v613 = vmin.f32 %v581, 20.0
      %vm647 = vcmask 1040384
      %v648 = vrot.slane 0.0, 7
      %v649 = vsel %vm647, %v648, %v648
      %v650 = vrot.slane %v582, 7
      %v651 = vrot.slane %v583, 7
      %v652 = vsel %vm647, %v650, %v651
      %v653 = vrot.slane %v584, 7
      %v654 = vrot.slane %v585, 7
      %v655 = vsel %vm647, %v653, %v654
      %v656 = vrot.slane %v586, 7
      %v657 = vrot.slane %v587, 7
      %v658 = vsel %vm647, %v656, %v657
      %v659 = vrot.slane %v588, 7
      %v660 = vrot.slane %v589, 7
      %v661 = vsel %vm647, %v659, %v660
      %v662 = vrot.slane %v590, 7
      %v663 = vrot.slane %v591, 7
      %v664 = vsel %vm647, %v662, %v663
      %v665 = vrot.slane %v592, 7
      %v666 = vrot.slane %v593, 7
      %v667 = vsel %vm647, %v665, %v666
      %v668 = vrot.slane %v594, 7
      %v669 = vrot.slane %v595, 7
      %v670 = vsel %vm647, %v668, %v669
      %v671 = vrot.slane %v596, 7
      %v672 = vrot.slane %v597, 7
      %v673 = vsel %vm647, %v671, %v672
      %v674 = vrot.slane %v598, 7
      %v675 = vrot.slane %v599, 7
      %v676 = vsel %vm647, %v674, %v675
      %v677 = vrot.slane %v600, 7
      %v678 = vrot.slane %v601, 7
      %v679 = vsel %vm647, %v677, %v678
      %v680 = vrot.slane %v602, 7
      %v681 = vrot.slane %v603, 7
      %v682 = vsel %vm647, %v680, %v681
      %v683 = vrot.slane %v604, 7
      %v684 = vrot.slane %v605, 7
      %v685 = vsel %vm647, %v683, %v684
      %v686 = vrot.slane %v606, 7
      %v687 = vrot.slane %v607, 7
      %v688 = vsel %vm647, %v686, %v687
      %v689 = vrot.slane %v608, 7
      %v690 = vrot.slane %v609, 7
      %v691 = vsel %vm647, %v689, %v690
      %v692 = vrot.slane %v610, 7
      %v693 = vrot.slane %v611, 7
      %v694 = vsel %vm647, %v692, %v693
      %v695 = vrot.slane %v612, 7
      %v696 = vrot.slane %v613, 7
      %v697 = vsel %vm647, %v695, %v696
      %v747 = vsel %vm647, 0.0, %v648
      %v748 = vsel %vm647, 0.0, %v650
      %v749 = vsel %vm647, 0.0, %v653
      %v750 = vsel %vm647, 0.0, %v656
      %v751 = vsel %vm647, 0.0, %v659
      %v752 = vsel %vm647, 0.0, %v662
      %v753 = vsel %vm647, 0.0, %v665
      %v754 = vsel %vm647, 0.0, %v668
      %v755 = vsel %vm647, 0.0, %v671
      %v756 = vsel %vm647, 0.0, %v674
      %v757 = vsel %vm647, 0.0, %v677
      %v758 = vsel %vm647, 0.0, %v680
      %v759 = vsel %vm647, 0.0, %v683
      %v760 = vsel %vm647, 0.0, %v686
      %v761 = vsel %vm647, 0.0, %v689
      %v762 = vsel %vm647, 0.0, %v692
      %v763 = vsel %vm647, 0.0, %v695
      %v764 = vsel %vm647, %v648, 0.0
      %v765 = vsel %vm647, %v651, 0.0
      %v766 = vsel %vm647, %v654, 0.0
      %v767 = vsel %vm647, %v657, 0.0
      %v768 = vsel %vm647, %v660, 0.0
      %v769 = vsel %vm647, %v663, 0.0
      %v770 = vsel %vm647, %v666, 0.0
      %v771 = vsel %vm647, %v669, 0.0
      %v772 = vsel %vm647, %v672, 0.0
      %v773 = vsel %vm647, %v675, 0.0
      %v774 = vsel %vm647, %v678, 0.0
      %v775 = vsel %vm647, %v681, 0.0
      %v776 = vsel %vm647, %v684, 0.0
      %v777 = vsel %vm647, %v687, 0.0
      %v778 = vsel %vm647, %v690, 0.0
      %v779 = vsel %vm647, %v693, 0.0
      %v780 = vsel %vm647, %v696, 0.0
      %vm813 = vcmask 1046528
      %v814 = vrot.slane %v747, 1
      %v815 = vrot.slane %v649, 1
      %v816 = vsel %vm813, %v814, %v815
      %v817 = vrot.slane %v764, 1
      %v818 = vsel %vm813, %v815, %v817
      %v819 = vrot.slane %v748, 1
      %v820 = vrot.slane %v652, 1
      %v821 = vsel %vm813, %v819, %v820
      %v822 = vrot.slane %v765, 1
      %v823 = vsel %vm813, %v820, %v822
      %v824 = vrot.slane %v749, 1
      %v825 = vrot.slane %v655, 1
      %v826 = vsel %vm813, %v824, %v825
      %v827 = vrot.slane %v766, 1
      %v828 = vsel %vm813, %v825, %v827
      %v829 = vrot.slane %v750, 1
      %v830 = vrot.slane %v658, 1
      %v831 = vsel %vm813, %v829, %v830
      %v832 = vrot.slane %v767, 1
      %v833 = vsel %vm813, %v830, %v832
      %v834 = vrot.slane %v751, 1
      %v835 = vrot.slane %v661, 1
      %v836 = vsel %vm813, %v834, %v835
      %v837 = vrot.slane %v768, 1
      %v838 = vsel %vm813, %v835, %v837
      %v839 = vrot.slane %v752, 1
      %v840 = vrot.slane %v664, 1
      %v841 = vsel %vm813, %v839, %v840
      %v842 = vrot.slane %v769, 1
      %v843 = vsel %vm813, %v840, %v842
      %v844 = vrot.slane %v753, 1
      %v845 = vrot.slane %v667, 1
      %v846 = vsel %vm813, %v844, %v845
      %v847 = vrot.slane %v770, 1
      %v848 = vsel %vm813, %v845, %v847
      %v849 = vrot.slane %v754, 1
      %v850 = vrot.slane %v670, 1
      %v851 = vsel %vm813, %v849, %v850
      %v852 = vrot.slane %v771, 1
      %v853 = vsel %vm813, %v850, %v852
      %v854 = vrot.slane %v755, 1
      %v855 = vrot.slane %v673, 1
      %v856 = vsel %vm813, %v854, %v855
      %v857 = vrot.slane %v772, 1
      %v858 = vsel %vm813, %v855, %v857
      %v859 = vrot.slane %v756, 1
      %v860 = vrot.slane %v676, 1
      %v861 = vsel %vm813, %v859, %v860
      %v862 = vrot.slane %v773, 1
      %v863 = vsel %vm813, %v860, %v862
      %v864 = vrot.slane %v757, 1
      %v865 = vrot.slane %v679, 1
      %v866 = vsel %vm813, %v864, %v865
      %v867 = vrot.slane %v774, 1
      %v868 = vsel %vm813, %v865, %v867
      %v869 = vrot.slane %v758, 1
      %v870 = vrot.slane %v682, 1
      %v871 = vsel %vm813, %v869, %v870
      %v872 = vrot.slane %v775, 1
      %v873 = vsel %vm813, %v870, %v872
      %v874 = vrot.slane %v759, 1
      %v875 = vrot.slane %v685, 1
      %v876 = vsel %vm813, %v874, %v875
      %v877 = vrot.slane %v776, 1
      %v878 = vsel %vm813, %v875, %v877
      %v879 = vrot.slane %v760, 1
      %v880 = vrot.slane %v688, 1
      %v881 = vsel %vm813, %v879, %v880
      %v882 = vrot.slane %v777, 1
      %v883 = vsel %vm813, %v880, %v882
      %v884 = vrot.slane %v761, 1
      %v885 = vrot.slane %v691, 1
      %v886 = vsel %vm813, %v884, %v885
      %v887 = vrot.slane %v778, 1
      %v888 = vsel %vm813, %v885, %v887
      %v889 = vrot.slane %v762, 1
      %v890 = vrot.slane %v694, 1
      %v891 = vsel %vm813, %v889, %v890
      %v892 = vrot.slane %v779, 1
      %v893 = vsel %vm813, %v890, %v892
      %vm894 = vcmask 1045504
      %v895 = vrot.slane %v747, 2
      %v896 = vrot.slane %v649, 2
      %v897 = vsel %vm894, %v895, %v896
      %v898 = vrot.slane %v764, 2
      %v899 = vsel %vm894, %v896, %v898
      %v900 = vrot.slane %v748, 2
      %v901 = vrot.slane %v652, 2
      %v902 = vsel %vm894, %v900, %v901
      %v903 = vrot.slane %v765, 2
      %v904 = vsel %vm894, %v901, %v903
      %v905 = vrot.slane %v749, 2
      %v906 = vrot.slane %v655, 2
      %v907 = vsel %vm894, %v905, %v906
      %v908 = vrot.slane %v766, 2
      %v909 = vsel %vm894, %v906, %v908
      %v910 = vrot.slane %v750, 2
      %v911 = vrot.slane %v658, 2
      %v912 = vsel %vm894, %v910, %v911
      %v913 = vrot.slane %v767, 2
      %v914 = vsel %vm894, %v911, %v913
      %v915 = vrot.slane %v751, 2
      %v916 = vrot.slane %v661, 2
      %v917 = vsel %vm894, %v915, %v916
      %v918 = vrot.slane %v768, 2
      %v919 = vsel %vm894, %v916, %v918
      %v920 = vrot.slane %v752, 2
      %v921 = vrot.slane %v664, 2
      %v922 = vsel %vm894, %v920, %v921
      %v923 = vrot.slane %v769, 2
      %v924 = vsel %vm894, %v921, %v923
      %v925 = vrot.slane %v753, 2
      %v926 = vrot.slane %v667, 2
      %v927 = vsel %vm894, %v925, %v926
      %v928 = vrot.slane %v770, 2
      %v929 = vsel %vm894, %v926, %v928
      %v930 = vrot.slane %v754, 2
      %v931 = vrot.slane %v670, 2
      %v932 = vsel %vm894, %v930, %v931
      %v933 = vrot.slane %v771, 2
      %v934 = vsel %vm894, %v931, %v933
      %v935 = vrot.slane %v755, 2
      %v936 = vrot.slane %v673, 2
      %v937 = vsel %vm894, %v935, %v936
      %v938 = vrot.slane %v772, 2
      %v939 = vsel %vm894, %v936, %v938
      %v940 = vrot.slane %v756, 2
      %v941 = vrot.slane %v676, 2
      %v942 = vsel %vm894, %v940, %v941
      %v943 = vrot.slane %v773, 2
      %v944 = vsel %vm894, %v941, %v943
      %v945 = vrot.slane %v757, 2
      %v946 = vrot.slane %v679, 2
      %v947 = vsel %vm894, %v945, %v946
      %v948 = vrot.slane %v774, 2
      %v949 = vsel %vm894, %v946, %v948
      %v950 = vrot.slane %v758, 2
      %v951 = vrot.slane %v682, 2
      %v952 = vsel %vm894, %v950, %v951
      %v953 = vrot.slane %v775, 2
      %v954 = vsel %vm894, %v951, %v953
      %v955 = vrot.slane %v759, 2
      %v956 = vrot.slane %v685, 2
      %v957 = vsel %vm894, %v955, %v956
      %v958 = vrot.slane %v776, 2
      %v959 = vsel %vm894, %v956, %v958
      %v960 = vrot.slane %v760, 2
      %v961 = vrot.slane %v688, 2
      %v962 = vsel %vm894, %v960, %v961
      %v963 = vrot.slane %v777, 2
      %v964 = vsel %vm894, %v961, %v963
      %v965 = vrot.slane %v761, 2
      %v966 = vrot.slane %v691, 2
      %v967 = vsel %vm894, %v965, %v966
      %v968 = vrot.slane %v778, 2
      %v969 = vsel %vm894, %v966, %v968
      %v970 = vrot.slane %v762, 2
      %v971 = vrot.slane %v694, 2
      %v972 = vsel %vm894, %v970, %v971
      %v973 = vrot.slane %v779, 2
      %v974 = vsel %vm894, %v971, %v973
      %v977 = vrot.slane %v763, 1
      %v978 = vrot.slane %v697, 1
      %v979 = vsel %vm813, %v977, %v978
      %v980 = vrot.slane %v780, 1
      %v981 = vsel %vm813, %v978, %v980
      %v982 = vrot.slane %v763, 2
      %v983 = vrot.slane %v697, 2
      %v984 = vsel %vm894, %v982, %v983
      %v985 = vrot.slane %v780, 2
      %v986 = vsel %vm894, %v983, %v985
      %987 = vrot.lane.b32.xlu0 %v816, 4
      %v988 = vpop.permute.xlu0 %987
      %989 = vrot.lane.b32.xlu0 %v818, 4
      %v990 = vpop.permute.xlu0 %989
      %991 = vrot.lane.b32.xlu0 %v821, 4
      %v992 = vpop.permute.xlu0 %991
      %993 = vrot.lane.b32.xlu0 %v823, 4
      %v994 = vpop.permute.xlu0 %993
      %995 = vrot.lane.b32.xlu0 %v826, 4
      %v996 = vpop.permute.xlu0 %995
      %997 = vrot.lane.b32.xlu0 %v828, 4
      %v998 = vpop.permute.xlu0 %997
      %999 = vrot.lane.b32.xlu0 %v831, 4
      %v1000 = vpop.permute.xlu0 %999
      %1001 = vrot.lane.b32.xlu0 %v833, 4
      %v1002 = vpop.permute.xlu0 %1001
      %1003 = vrot.lane.b32.xlu0 %v836, 4
      %v1004 = vpop.permute.xlu0 %1003
      %1005 = vrot.lane.b32.xlu0 %v838, 4
      %v1006 = vpop.permute.xlu0 %1005
      %1007 = vrot.lane.b32.xlu0 %v841, 4
      %v1008 = vpop.permute.xlu0 %1007
      %1009 = vrot.lane.b32.xlu0 %v843, 4
      %v1010 = vpop.permute.xlu0 %1009
      %1011 = vrot.lane.b32.xlu0 %v846, 4
      %v1012 = vpop.permute.xlu0 %1011
      %1013 = vrot.lane.b32.xlu0 %v848, 4
      %v1014 = vpop.permute.xlu0 %1013
      %1015 = vrot.lane.b32.xlu0 %v851, 4
      %v1016 = vpop.permute.xlu0 %1015
      %1017 = vrot.lane.b32.xlu0 %v853, 4
      %v1018 = vpop.permute.xlu0 %1017
      %1019 = vrot.lane.b32.xlu0 %v856, 4
      %v1020 = vpop.permute.xlu0 %1019
      %1021 = vrot.lane.b32.xlu0 %v858, 4
      %v1022 = vpop.permute.xlu0 %1021
      %1023 = vrot.lane.b32.xlu0 %v861, 4
      %v1024 = vpop.permute.xlu0 %1023
      %1025 = vrot.lane.b32.xlu0 %v863, 4
      %v1026 = vpop.permute.xlu0 %1025
      %1027 = vrot.lane.b32.xlu0 %v866, 4
      %v1028 = vpop.permute.xlu0 %1027
      %1029 = vrot.lane.b32.xlu0 %v868, 4
      %v1030 = vpop.permute.xlu0 %1029
      %1031 = vrot.lane.b32.xlu0 %v871, 4
      %v1032 = vpop.permute.xlu0 %1031
      %1033 = vrot.lane.b32.xlu0 %v873, 4
      %v1034 = vpop.permute.xlu0 %1033
      %1035 = vrot.lane.b32.xlu0 %v876, 4
      %v1036 = vpop.permute.xlu0 %1035
      %1037 = vrot.lane.b32.xlu0 %v878, 4
      %v1038 = vpop.permute.xlu0 %1037
      %1039 = vrot.lane.b32.xlu0 %v881, 4
      %v1040 = vpop.permute.xlu0 %1039
      %1041 = vrot.lane.b32.xlu0 %v883, 4
      %v1042 = vpop.permute.xlu0 %1041
      %1043 = vrot.lane.b32.xlu0 %v886, 4
      %v1044 = vpop.permute.xlu0 %1043
      %1045 = vrot.lane.b32.xlu0 %v888, 4
      %v1046 = vpop.permute.xlu0 %1045
      %1047 = vrot.lane.b32.xlu0 %v891, 4
      %v1048 = vpop.permute.xlu0 %1047
      %1049 = vrot.lane.b32.xlu0 %v893, 4
      %v1050 = vpop.permute.xlu0 %1049
      %1083 = vrot.lane.b32.xlu0 %v897, 8
      %v1084 = vpop.permute.xlu0 %1083
      %1085 = vrot.lane.b32.xlu0 %v899, 8
      %v1086 = vpop.permute.xlu0 %1085
      %1087 = vrot.lane.b32.xlu0 %v902, 8
      %v1088 = vpop.permute.xlu0 %1087
      %1089 = vrot.lane.b32.xlu0 %v904, 8
      %v1090 = vpop.permute.xlu0 %1089
      %1091 = vrot.lane.b32.xlu0 %v907, 8
      %v1092 = vpop.permute.xlu0 %1091
      %1093 = vrot.lane.b32.xlu0 %v909, 8
      %v1094 = vpop.permute.xlu0 %1093
      %1095 = vrot.lane.b32.xlu0 %v912, 8
      %v1096 = vpop.permute.xlu0 %1095
      %1097 = vrot.lane.b32.xlu0 %v914, 8
      %v1098 = vpop.permute.xlu0 %1097
      %1099 = vrot.lane.b32.xlu0 %v917, 8
      %v1100 = vpop.permute.xlu0 %1099
      %1101 = vrot.lane.b32.xlu0 %v919, 8
      %v1102 = vpop.permute.xlu0 %1101
      %1103 = vrot.lane.b32.xlu0 %v922, 8
      %v1104 = vpop.permute.xlu0 %1103
      %1105 = vrot.lane.b32.xlu0 %v924, 8
      %v1106 = vpop.permute.xlu0 %1105
      %1107 = vrot.lane.b32.xlu0 %v927, 8
      %v1108 = vpop.permute.xlu0 %1107
      %1109 = vrot.lane.b32.xlu0 %v929, 8
      %v1110 = vpop.permute.xlu0 %1109
      %1111 = vrot.lane.b32.xlu0 %v932, 8
      %v1112 = vpop.permute.xlu0 %1111
      %1113 = vrot.lane.b32.xlu0 %v934, 8
      %v1114 = vpop.permute.xlu0 %1113
      %1115 = vrot.lane.b32.xlu0 %v937, 8
      %v1116 = vpop.permute.xlu0 %1115
      %1117 = vrot.lane.b32.xlu0 %v939, 8
      %v1118 = vpop.permute.xlu0 %1117
      %1119 = vrot.lane.b32.xlu0 %v942, 8
      %v1120 = vpop.permute.xlu0 %1119
      %1121 = vrot.lane.b32.xlu0 %v944, 8
      %v1122 = vpop.permute.xlu0 %1121
      %1123 = vrot.lane.b32.xlu0 %v947, 8
      %v1124 = vpop.permute.xlu0 %1123
      %1125 = vrot.lane.b32.xlu0 %v949, 8
      %v1126 = vpop.permute.xlu0 %1125
      %1127 = vrot.lane.b32.xlu0 %v952, 8
      %v1128 = vpop.permute.xlu0 %1127
      %1129 = vrot.lane.b32.xlu0 %v954, 8
      %v1130 = vpop.permute.xlu0 %1129
      %1131 = vrot.lane.b32.xlu0 %v957, 8
      %v1132 = vpop.permute.xlu0 %1131
      %1133 = vrot.lane.b32.xlu0 %v959, 8
      %v1134 = vpop.permute.xlu0 %1133
      %1135 = vrot.lane.b32.xlu0 %v962, 8
      %v1136 = vpop.permute.xlu0 %1135
      %1137 = vrot.lane.b32.xlu0 %v964, 8
      %v1138 = vpop.permute.xlu0 %1137
      %1139 = vrot.lane.b32.xlu0 %v967, 8
      %v1140 = vpop.permute.xlu0 %1139
      %1141 = vrot.lane.b32.xlu0 %v969, 8
      %v1142 = vpop.permute.xlu0 %1141
      %1143 = vrot.lane.b32.xlu0 %v972, 8
      %v1144 = vpop.permute.xlu0 %1143
      %1145 = vrot.lane.b32.xlu0 %v974, 8
      %v1146 = vpop.permute.xlu0 %1145
      %1179 = vrot.lane.b32.xlu0 %v748, 12
      %v1180 = vpop.permute.xlu0 %1179
      %1181 = vrot.lane.b32.xlu0 %v652, 12
      %v1182 = vpop.permute.xlu0 %1181
      %1183 = vrot.lane.b32.xlu0 %v749, 12
      %v1184 = vpop.permute.xlu0 %1183
      %1185 = vrot.lane.b32.xlu0 %v655, 12
      %v1186 = vpop.permute.xlu0 %1185
      %1187 = vrot.lane.b32.xlu0 %v750, 12
      %v1188 = vpop.permute.xlu0 %1187
      %1189 = vrot.lane.b32.xlu0 %v658, 12
      %v1190 = vpop.permute.xlu0 %1189
      %1191 = vrot.lane.b32.xlu0 %v751, 12
      %v1192 = vpop.permute.xlu0 %1191
      %1193 = vrot.lane.b32.xlu0 %v661, 12
      %v1194 = vpop.permute.xlu0 %1193
      %1195 = vrot.lane.b32.xlu0 %v752, 12
      %v1196 = vpop.permute.xlu0 %1195
      %1197 = vrot.lane.b32.xlu0 %v664, 12
      %v1198 = vpop.permute.xlu0 %1197
      %1199 = vrot.lane.b32.xlu0 %v753, 12
      %v1200 = vpop.permute.xlu0 %1199
      %1201 = vrot.lane.b32.xlu0 %v667, 12
      %v1202 = vpop.permute.xlu0 %1201
      %1203 = vrot.lane.b32.xlu0 %v754, 12
      %v1204 = vpop.permute.xlu0 %1203
      %1205 = vrot.lane.b32.xlu0 %v670, 12
      %v1206 = vpop.permute.xlu0 %1205
      %1207 = vrot.lane.b32.xlu0 %v755, 12
      %v1208 = vpop.permute.xlu0 %1207
      %1209 = vrot.lane.b32.xlu0 %v673, 12
      %v1210 = vpop.permute.xlu0 %1209
      %1211 = vrot.lane.b32.xlu0 %v756, 12
      %v1212 = vpop.permute.xlu0 %1211
      %1213 = vrot.lane.b32.xlu0 %v676, 12
      %v1214 = vpop.permute.xlu0 %1213
      %1215 = vrot.lane.b32.xlu0 %v757, 12
      %v1216 = vpop.permute.xlu0 %1215
      %1217 = vrot.lane.b32.xlu0 %v679, 12
      %v1218 = vpop.permute.xlu0 %1217
      %1219 = vrot.lane.b32.xlu0 %v758, 12
      %v1220 = vpop.permute.xlu0 %1219
      %1221 = vrot.lane.b32.xlu0 %v682, 12
      %v1222 = vpop.permute.xlu0 %1221
      %1223 = vrot.lane.b32.xlu0 %v759, 12
      %v1224 = vpop.permute.xlu0 %1223
      %1225 = vrot.lane.b32.xlu0 %v685, 12
      %v1226 = vpop.permute.xlu0 %1225
      %1227 = vrot.lane.b32.xlu0 %v760, 12
      %v1228 = vpop.permute.xlu0 %1227
      %1229 = vrot.lane.b32.xlu0 %v688, 12
      %v1230 = vpop.permute.xlu0 %1229
      %1231 = vrot.lane.b32.xlu0 %v761, 12
      %v1232 = vpop.permute.xlu0 %1231
      %1233 = vrot.lane.b32.xlu0 %v691, 12
      %v1234 = vpop.permute.xlu0 %1233
      %1235 = vrot.lane.b32.xlu0 %v762, 12
      %v1236 = vpop.permute.xlu0 %1235
      %1237 = vrot.lane.b32.xlu0 %v694, 12
      %v1238 = vpop.permute.xlu0 %1237
      %1239 = vrot.lane.b32.xlu0 %v763, 12
      %v1240 = vpop.permute.xlu0 %1239
      %1241 = vrot.lane.b32.xlu0 %v697, 12
      %v1242 = vpop.permute.xlu0 %1241
      %1275 = vrot.lane.b32.xlu0 %v821, 16
      %v1276 = vpop.permute.xlu0 %1275
      %1277 = vrot.lane.b32.xlu0 %v823, 16
      %v1278 = vpop.permute.xlu0 %1277
      %1279 = vrot.lane.b32.xlu0 %v826, 16
      %v1280 = vpop.permute.xlu0 %1279
      %1281 = vrot.lane.b32.xlu0 %v828, 16
      %v1282 = vpop.permute.xlu0 %1281
      %1283 = vrot.lane.b32.xlu0 %v831, 16
      %v1284 = vpop.permute.xlu0 %1283
      %1285 = vrot.lane.b32.xlu0 %v833, 16
      %v1286 = vpop.permute.xlu0 %1285
      %1287 = vrot.lane.b32.xlu0 %v836, 16
      %v1288 = vpop.permute.xlu0 %1287
      %1289 = vrot.lane.b32.xlu0 %v838, 16
      %v1290 = vpop.permute.xlu0 %1289
      %1291 = vrot.lane.b32.xlu0 %v841, 16
      %v1292 = vpop.permute.xlu0 %1291
      %1293 = vrot.lane.b32.xlu0 %v843, 16
      %v1294 = vpop.permute.xlu0 %1293
      %1295 = vrot.lane.b32.xlu0 %v846, 16
      %v1296 = vpop.permute.xlu0 %1295
      %1297 = vrot.lane.b32.xlu0 %v848, 16
      %v1298 = vpop.permute.xlu0 %1297
      %1299 = vrot.lane.b32.xlu0 %v851, 16
      %v1300 = vpop.permute.xlu0 %1299
      %1301 = vrot.lane.b32.xlu0 %v853, 16
      %v1302 = vpop.permute.xlu0 %1301
      %1303 = vrot.lane.b32.xlu0 %v856, 16
      %v1304 = vpop.permute.xlu0 %1303
      %1305 = vrot.lane.b32.xlu0 %v858, 16
      %v1306 = vpop.permute.xlu0 %1305
      %1307 = vrot.lane.b32.xlu0 %v861, 16
      %v1308 = vpop.permute.xlu0 %1307
      %1309 = vrot.lane.b32.xlu0 %v863, 16
      %v1310 = vpop.permute.xlu0 %1309
      %1311 = vrot.lane.b32.xlu0 %v866, 16
      %v1312 = vpop.permute.xlu0 %1311
      %1313 = vrot.lane.b32.xlu0 %v868, 16
      %v1314 = vpop.permute.xlu0 %1313
      %1315 = vrot.lane.b32.xlu0 %v871, 16
      %v1316 = vpop.permute.xlu0 %1315
      %1317 = vrot.lane.b32.xlu0 %v873, 16
      %v1318 = vpop.permute.xlu0 %1317
      %1319 = vrot.lane.b32.xlu0 %v876, 16
      %v1320 = vpop.permute.xlu0 %1319
      %1321 = vrot.lane.b32.xlu0 %v878, 16
      %v1322 = vpop.permute.xlu0 %1321
      %1323 = vrot.lane.b32.xlu0 %v881, 16
      %v1324 = vpop.permute.xlu0 %1323
      %1325 = vrot.lane.b32.xlu0 %v883, 16
      %v1326 = vpop.permute.xlu0 %1325
      %1327 = vrot.lane.b32.xlu0 %v886, 16
      %v1328 = vpop.permute.xlu0 %1327
      %1329 = vrot.lane.b32.xlu0 %v888, 16
      %v1330 = vpop.permute.xlu0 %1329
      %1331 = vrot.lane.b32.xlu0 %v891, 16
      %v1332 = vpop.permute.xlu0 %1331
      %1333 = vrot.lane.b32.xlu0 %v893, 16
      %v1334 = vpop.permute.xlu0 %1333
      %1335 = vrot.lane.b32.xlu0 %v979, 16
      %v1336 = vpop.permute.xlu0 %1335
      %1337 = vrot.lane.b32.xlu0 %v981, 16
      %v1338 = vpop.permute.xlu0 %1337
      %1371 = vrot.lane.b32.xlu0 %v902, 20
      %v1372 = vpop.permute.xlu0 %1371
      %1373 = vrot.lane.b32.xlu0 %v904, 20
      %v1374 = vpop.permute.xlu0 %1373
      %1375 = vrot.lane.b32.xlu0 %v907, 20
      %v1376 = vpop.permute.xlu0 %1375
      %1377 = vrot.lane.b32.xlu0 %v909, 20
      %v1378 = vpop.permute.xlu0 %1377
      %1379 = vrot.lane.b32.xlu0 %v912, 20
      %v1380 = vpop.permute.xlu0 %1379
      %1381 = vrot.lane.b32.xlu0 %v914, 20
      %v1382 = vpop.permute.xlu0 %1381
      %1383 = vrot.lane.b32.xlu0 %v917, 20
      %v1384 = vpop.permute.xlu0 %1383
      %1385 = vrot.lane.b32.xlu0 %v919, 20
      %v1386 = vpop.permute.xlu0 %1385
      %1387 = vrot.lane.b32.xlu0 %v922, 20
      %v1388 = vpop.permute.xlu0 %1387
      %1389 = vrot.lane.b32.xlu0 %v924, 20
      %v1390 = vpop.permute.xlu0 %1389
      %1391 = vrot.lane.b32.xlu0 %v927, 20
      %v1392 = vpop.permute.xlu0 %1391
      %1393 = vrot.lane.b32.xlu0 %v929, 20
      %v1394 = vpop.permute.xlu0 %1393
      %1395 = vrot.lane.b32.xlu0 %v932, 20
      %v1396 = vpop.permute.xlu0 %1395
      %1397 = vrot.lane.b32.xlu0 %v934, 20
      %v1398 = vpop.permute.xlu0 %1397
      %1399 = vrot.lane.b32.xlu0 %v937, 20
      %v1400 = vpop.permute.xlu0 %1399
      %1401 = vrot.lane.b32.xlu0 %v939, 20
      %v1402 = vpop.permute.xlu0 %1401
      %1403 = vrot.lane.b32.xlu0 %v942, 20
      %v1404 = vpop.permute.xlu0 %1403
      %1405 = vrot.lane.b32.xlu0 %v944, 20
      %v1406 = vpop.permute.xlu0 %1405
      %1407 = vrot.lane.b32.xlu0 %v947, 20
      %v1408 = vpop.permute.xlu0 %1407
      %1409 = vrot.lane.b32.xlu0 %v949, 20
      %v1410 = vpop.permute.xlu0 %1409
      %1411 = vrot.lane.b32.xlu0 %v952, 20
      %v1412 = vpop.permute.xlu0 %1411
      %1413 = vrot.lane.b32.xlu0 %v954, 20
      %v1414 = vpop.permute.xlu0 %1413
      %1415 = vrot.lane.b32.xlu0 %v957, 20
      %v1416 = vpop.permute.xlu0 %1415
      %1417 = vrot.lane.b32.xlu0 %v959, 20
      %v1418 = vpop.permute.xlu0 %1417
      %1419 = vrot.lane.b32.xlu0 %v962, 20
      %v1420 = vpop.permute.xlu0 %1419
      %1421 = vrot.lane.b32.xlu0 %v964, 20
      %v1422 = vpop.permute.xlu0 %1421
      %1423 = vrot.lane.b32.xlu0 %v967, 20
      %v1424 = vpop.permute.xlu0 %1423
      %1425 = vrot.lane.b32.xlu0 %v969, 20
      %v1426 = vpop.permute.xlu0 %1425
      %1427 = vrot.lane.b32.xlu0 %v972, 20
      %v1428 = vpop.permute.xlu0 %1427
      %1429 = vrot.lane.b32.xlu0 %v974, 20
      %v1430 = vpop.permute.xlu0 %1429
      %1431 = vrot.lane.b32.xlu0 %v984, 20
      %v1432 = vpop.permute.xlu0 %1431
      %1433 = vrot.lane.b32.xlu0 %v986, 20
      %v1434 = vpop.permute.xlu0 %1433
      %1467 = vrot.lane.b32.xlu0 %v749, 24
      %v1468 = vpop.permute.xlu0 %1467
      %1469 = vrot.lane.b32.xlu0 %v655, 24
      %v1470 = vpop.permute.xlu0 %1469
      %1471 = vrot.lane.b32.xlu0 %v750, 24
      %v1472 = vpop.permute.xlu0 %1471
      %1473 = vrot.lane.b32.xlu0 %v658, 24
      %v1474 = vpop.permute.xlu0 %1473
      %1475 = vrot.lane.b32.xlu0 %v751, 24
      %v1476 = vpop.permute.xlu0 %1475
      %1477 = vrot.lane.b32.xlu0 %v661, 24
      %v1478 = vpop.permute.xlu0 %1477
      %1479 = vrot.lane.b32.xlu0 %v752, 24
      %v1480 = vpop.permute.xlu0 %1479
      %1481 = vrot.lane.b32.xlu0 %v664, 24
      %v1482 = vpop.permute.xlu0 %1481
      %1483 = vrot.lane.b32.xlu0 %v753, 24
      %v1484 = vpop.permute.xlu0 %1483
      %1485 = vrot.lane.b32.xlu0 %v667, 24
      %v1486 = vpop.permute.xlu0 %1485
      %1487 = vrot.lane.b32.xlu0 %v754, 24
      %v1488 = vpop.permute.xlu0 %1487
      %1489 = vrot.lane.b32.xlu0 %v670, 24
      %v1490 = vpop.permute.xlu0 %1489
      %1491 = vrot.lane.b32.xlu0 %v755, 24
      %v1492 = vpop.permute.xlu0 %1491
      %1493 = vrot.lane.b32.xlu0 %v673, 24
      %v1494 = vpop.permute.xlu0 %1493
      %1495 = vrot.lane.b32.xlu0 %v756, 24
      %v1496 = vpop.permute.xlu0 %1495
      %1497 = vrot.lane.b32.xlu0 %v676, 24
      %v1498 = vpop.permute.xlu0 %1497
      %1499 = vrot.lane.b32.xlu0 %v757, 24
      %v1500 = vpop.permute.xlu0 %1499
      %1501 = vrot.lane.b32.xlu0 %v679, 24
      %v1502 = vpop.permute.xlu0 %1501
      %1503 = vrot.lane.b32.xlu0 %v758, 24
      %v1504 = vpop.permute.xlu0 %1503
      %1505 = vrot.lane.b32.xlu0 %v682, 24
      %v1506 = vpop.permute.xlu0 %1505
      %1507 = vrot.lane.b32.xlu0 %v759, 24
      %v1508 = vpop.permute.xlu0 %1507
      %1509 = vrot.lane.b32.xlu0 %v685, 24
      %v1510 = vpop.permute.xlu0 %1509
      %1511 = vrot.lane.b32.xlu0 %v760, 24
      %v1512 = vpop.permute.xlu0 %1511
      %1513 = vrot.lane.b32.xlu0 %v688, 24
      %v1514 = vpop.permute.xlu0 %1513
      %1515 = vrot.lane.b32.xlu0 %v761, 24
      %v1516 = vpop.permute.xlu0 %1515
      %1517 = vrot.lane.b32.xlu0 %v691, 24
      %v1518 = vpop.permute.xlu0 %1517
      %1519 = vrot.lane.b32.xlu0 %v762, 24
      %v1520 = vpop.permute.xlu0 %1519
      %1521 = vrot.lane.b32.xlu0 %v694, 24
      %v1522 = vpop.permute.xlu0 %1521
      %1523 = vrot.lane.b32.xlu0 %v763, 24
      %v1524 = vpop.permute.xlu0 %1523
      %1525 = vrot.lane.b32.xlu0 %v697, 24
      %v1526 = vpop.permute.xlu0 %1525
      %1527 = vrot.lane.b32.xlu0 %v747, 24
      %v1528 = vpop.permute.xlu0 %1527
      %1529 = vrot.lane.b32.xlu0 %v649, 24
      %v1530 = vpop.permute.xlu0 %1529
      %1563 = vrot.lane.b32.xlu0 %v826, 28
      %v1564 = vpop.permute.xlu0 %1563
      %1565 = vrot.lane.b32.xlu0 %v828, 28
      %v1566 = vpop.permute.xlu0 %1565
      %1567 = vrot.lane.b32.xlu0 %v831, 28
      %v1568 = vpop.permute.xlu0 %1567
      %1569 = vrot.lane.b32.xlu0 %v833, 28
      %v1570 = vpop.permute.xlu0 %1569
      %1571 = vrot.lane.b32.xlu0 %v836, 28
      %v1572 = vpop.permute.xlu0 %1571
      %1573 = vrot.lane.b32.xlu0 %v838, 28
      %v1574 = vpop.permute.xlu0 %1573
      %1575 = vrot.lane.b32.xlu0 %v841, 28
      %v1576 = vpop.permute.xlu0 %1575
      %1577 = vrot.lane.b32.xlu0 %v843, 28
      %v1578 = vpop.permute.xlu0 %1577
      %1579 = vrot.lane.b32.xlu0 %v846, 28
      %v1580 = vpop.permute.xlu0 %1579
      %1581 = vrot.lane.b32.xlu0 %v848, 28
      %v1582 = vpop.permute.xlu0 %1581
      %1583 = vrot.lane.b32.xlu0 %v851, 28
      %v1584 = vpop.permute.xlu0 %1583
      %1585 = vrot.lane.b32.xlu0 %v853, 28
      %v1586 = vpop.permute.xlu0 %1585
      %1587 = vrot.lane.b32.xlu0 %v856, 28
      %v1588 = vpop.permute.xlu0 %1587
      %1589 = vrot.lane.b32.xlu0 %v858, 28
      %v1590 = vpop.permute.xlu0 %1589
      %1591 = vrot.lane.b32.xlu0 %v861, 28
      %v1592 = vpop.permute.xlu0 %1591
      %1593 = vrot.lane.b32.xlu0 %v863, 28
      %v1594 = vpop.permute.xlu0 %1593
      %1595 = vrot.lane.b32.xlu0 %v866, 28
      %v1596 = vpop.permute.xlu0 %1595
      %1597 = vrot.lane.b32.xlu0 %v868, 28
      %v1598 = vpop.permute.xlu0 %1597
      %1599 = vrot.lane.b32.xlu0 %v871, 28
      %v1600 = vpop.permute.xlu0 %1599
      %1601 = vrot.lane.b32.xlu0 %v873, 28
      %v1602 = vpop.permute.xlu0 %1601
      %1603 = vrot.lane.b32.xlu0 %v876, 28
      %v1604 = vpop.permute.xlu0 %1603
      %1605 = vrot.lane.b32.xlu0 %v878, 28
      %v1606 = vpop.permute.xlu0 %1605
      %1607 = vrot.lane.b32.xlu0 %v881, 28
      %v1608 = vpop.permute.xlu0 %1607
      %1609 = vrot.lane.b32.xlu0 %v883, 28
      %v1610 = vpop.permute.xlu0 %1609
      %1611 = vrot.lane.b32.xlu0 %v886, 28
      %v1612 = vpop.permute.xlu0 %1611
      %1613 = vrot.lane.b32.xlu0 %v888, 28
      %v1614 = vpop.permute.xlu0 %1613
      %1615 = vrot.lane.b32.xlu0 %v891, 28
      %v1616 = vpop.permute.xlu0 %1615
      %1617 = vrot.lane.b32.xlu0 %v893, 28
      %v1618 = vpop.permute.xlu0 %1617
      %1619 = vrot.lane.b32.xlu0 %v979, 28
      %v1620 = vpop.permute.xlu0 %1619
      %1621 = vrot.lane.b32.xlu0 %v981, 28
      %v1622 = vpop.permute.xlu0 %1621
      %1623 = vrot.lane.b32.xlu0 %v816, 28
      %v1624 = vpop.permute.xlu0 %1623
      %1625 = vrot.lane.b32.xlu0 %v818, 28
      %v1626 = vpop.permute.xlu0 %1625
      %1659 = vrot.lane.b32.xlu0 %v907, 32
      %v1660 = vpop.permute.xlu0 %1659
      %1661 = vrot.lane.b32.xlu0 %v909, 32
      %v1662 = vpop.permute.xlu0 %1661
      %1663 = vrot.lane.b32.xlu0 %v912, 32
      %v1664 = vpop.permute.xlu0 %1663
      %1665 = vrot.lane.b32.xlu0 %v914, 32
      %v1666 = vpop.permute.xlu0 %1665
      %1667 = vrot.lane.b32.xlu0 %v917, 32
      %v1668 = vpop.permute.xlu0 %1667
      %1669 = vrot.lane.b32.xlu0 %v919, 32
      %v1670 = vpop.permute.xlu0 %1669
      %1671 = vrot.lane.b32.xlu0 %v922, 32
      %v1672 = vpop.permute.xlu0 %1671
      %1673 = vrot.lane.b32.xlu0 %v924, 32
      %v1674 = vpop.permute.xlu0 %1673
      %1675 = vrot.lane.b32.xlu0 %v927, 32
      %v1676 = vpop.permute.xlu0 %1675
      %1677 = vrot.lane.b32.xlu0 %v929, 32
      %v1678 = vpop.permute.xlu0 %1677
      %1679 = vrot.lane.b32.xlu0 %v932, 32
      %v1680 = vpop.permute.xlu0 %1679
      %1681 = vrot.lane.b32.xlu0 %v934, 32
      %v1682 = vpop.permute.xlu0 %1681
      %1683 = vrot.lane.b32.xlu0 %v937, 32
      %v1684 = vpop.permute.xlu0 %1683
      %1685 = vrot.lane.b32.xlu0 %v939, 32
      %v1686 = vpop.permute.xlu0 %1685
      %1687 = vrot.lane.b32.xlu0 %v942, 32
      %v1688 = vpop.permute.xlu0 %1687
      %1689 = vrot.lane.b32.xlu0 %v944, 32
      %v1690 = vpop.permute.xlu0 %1689
      %1691 = vrot.lane.b32.xlu0 %v947, 32
      %v1692 = vpop.permute.xlu0 %1691
      %1693 = vrot.lane.b32.xlu0 %v949, 32
      %v1694 = vpop.permute.xlu0 %1693
      %1695 = vrot.lane.b32.xlu0 %v952, 32
      %v1696 = vpop.permute.xlu0 %1695
      %1697 = vrot.lane.b32.xlu0 %v954, 32
      %v1698 = vpop.permute.xlu0 %1697
      %1699 = vrot.lane.b32.xlu0 %v957, 32
      %v1700 = vpop.permute.xlu0 %1699
      %1701 = vrot.lane.b32.xlu0 %v959, 32
      %v1702 = vpop.permute.xlu0 %1701
      %1703 = vrot.lane.b32.xlu0 %v962, 32
      %v1704 = vpop.permute.xlu0 %1703
      %1705 = vrot.lane.b32.xlu0 %v964, 32
      %v1706 = vpop.permute.xlu0 %1705
      %1707 = vrot.lane.b32.xlu0 %v967, 32
      %v1708 = vpop.permute.xlu0 %1707
      %1709 = vrot.lane.b32.xlu0 %v969, 32
      %v1710 = vpop.permute.xlu0 %1709
      %1711 = vrot.lane.b32.xlu0 %v972, 32
      %v1712 = vpop.permute.xlu0 %1711
      %1713 = vrot.lane.b32.xlu0 %v974, 32
      %v1714 = vpop.permute.xlu0 %1713
      %1715 = vrot.lane.b32.xlu0 %v984, 32
      %v1716 = vpop.permute.xlu0 %1715
      %1717 = vrot.lane.b32.xlu0 %v986, 32
      %v1718 = vpop.permute.xlu0 %1717
      %1719 = vrot.lane.b32.xlu0 %v897, 32
      %v1720 = vpop.permute.xlu0 %1719
      %1721 = vrot.lane.b32.xlu0 %v899, 32
      %v1722 = vpop.permute.xlu0 %1721
      %v1755 = vsel %vm336, %v747, %v988
      %v1756 = vsel %vm336, %v649, %v990
      %v1757 = vsel %vm336, %v748, %v992
      %v1758 = vsel %vm336, %v652, %v994
      %v1759 = vsel %vm336, %v749, %v996
      %v1760 = vsel %vm336, %v655, %v998
      %v1761 = vsel %vm336, %v750, %v1000
      %v1762 = vsel %vm336, %v658, %v1002
      %v1763 = vsel %vm336, %v751, %v1004
      %v1764 = vsel %vm336, %v661, %v1006
      %v1765 = vsel %vm336, %v752, %v1008
      %v1766 = vsel %vm336, %v664, %v1010
      %v1767 = vsel %vm336, %v753, %v1012
      %v1768 = vsel %vm336, %v667, %v1014
      %v1769 = vsel %vm336, %v754, %v1016
      %v1770 = vsel %vm336, %v670, %v1018
      %v1771 = vsel %vm336, %v755, %v1020
      %v1772 = vsel %vm336, %v673, %v1022
      %v1773 = vsel %vm336, %v756, %v1024
      %v1774 = vsel %vm336, %v676, %v1026
      %v1775 = vsel %vm336, %v757, %v1028
      %v1776 = vsel %vm336, %v679, %v1030
      %v1777 = vsel %vm336, %v758, %v1032
      %v1778 = vsel %vm336, %v682, %v1034
      %v1779 = vsel %vm336, %v759, %v1036
      %v1780 = vsel %vm336, %v685, %v1038
      %v1781 = vsel %vm336, %v760, %v1040
      %v1782 = vsel %vm336, %v688, %v1042
      %v1783 = vsel %vm336, %v761, %v1044
      %v1784 = vsel %vm336, %v691, %v1046
      %v1785 = vsel %vm336, %v762, %v1048
      %v1786 = vsel %vm336, %v694, %v1050
      %vm1787 = vcmask 64512
      %v1788 = vsel %vm1787, %v1755, %v1084
      %v1789 = vsel %vm1787, %v1756, %v1086
      %v1790 = vsel %vm1787, %v1757, %v1088
      %v1791 = vsel %vm1787, %v1758, %v1090
      %v1792 = vsel %vm1787, %v1759, %v1092
      %v1793 = vsel %vm1787, %v1760, %v1094
      %v1794 = vsel %vm1787, %v1761, %v1096
      %v1795 = vsel %vm1787, %v1762, %v1098
      %v1796 = vsel %vm1787, %v1763, %v1100
      %v1797 = vsel %vm1787, %v1764, %v1102
      %v1798 = vsel %vm1787, %v1765, %v1104
      %v1799 = vsel %vm1787, %v1766, %v1106
      %v1800 = vsel %vm1787, %v1767, %v1108
      %v1801 = vsel %vm1787, %v1768, %v1110
      %v1802 = vsel %vm1787, %v1769, %v1112
      %v1803 = vsel %vm1787, %v1770, %v1114
      %v1804 = vsel %vm1787, %v1771, %v1116
      %v1805 = vsel %vm1787, %v1772, %v1118
      %v1806 = vsel %vm1787, %v1773, %v1120
      %v1807 = vsel %vm1787, %v1774, %v1122
      %v1808 = vsel %vm1787, %v1775, %v1124
      %v1809 = vsel %vm1787, %v1776, %v1126
      %v1810 = vsel %vm1787, %v1777, %v1128
      %v1811 = vsel %vm1787, %v1778, %v1130
      %v1812 = vsel %vm1787, %v1779, %v1132
      %v1813 = vsel %vm1787, %v1780, %v1134
      %v1814 = vsel %vm1787, %v1781, %v1136
      %v1815 = vsel %vm1787, %v1782, %v1138
      %v1816 = vsel %vm1787, %v1783, %v1140
      %v1817 = vsel %vm1787, %v1784, %v1142
      %v1818 = vsel %vm1787, %v1785, %v1144
      %v1819 = vsel %vm1787, %v1786, %v1146
      %vm1820 = vcmask 97280
      %v1821 = vsel %vm1820, %v1788, %v1180
      %v1822 = vsel %vm1820, %v1789, %v1182
      %v1823 = vsel %vm1820, %v1790, %v1184
      %v1824 = vsel %vm1820, %v1791, %v1186
      %v1825 = vsel %vm1820, %v1792, %v1188
      %v1826 = vsel %vm1820, %v1793, %v1190
      %v1827 = vsel %vm1820, %v1794, %v1192
      %v1828 = vsel %vm1820, %v1795, %v1194
      %v1829 = vsel %vm1820, %v1796, %v1196
      %v1830 = vsel %vm1820, %v1797, %v1198
      %v1831 = vsel %vm1820, %v1798, %v1200
      %v1832 = vsel %vm1820, %v1799, %v1202
      %v1833 = vsel %vm1820, %v1800, %v1204
      %v1834 = vsel %vm1820, %v1801, %v1206
      %v1835 = vsel %vm1820, %v1802, %v1208
      %v1836 = vsel %vm1820, %v1803, %v1210
      %v1837 = vsel %vm1820, %v1804, %v1212
      %v1838 = vsel %vm1820, %v1805, %v1214
      %v1839 = vsel %vm1820, %v1806, %v1216
      %v1840 = vsel %vm1820, %v1807, %v1218
      %v1841 = vsel %vm1820, %v1808, %v1220
      %v1842 = vsel %vm1820, %v1809, %v1222
      %v1843 = vsel %vm1820, %v1810, %v1224
      %v1844 = vsel %vm1820, %v1811, %v1226
      %v1845 = vsel %vm1820, %v1812, %v1228
      %v1846 = vsel %vm1820, %v1813, %v1230
      %v1847 = vsel %vm1820, %v1814, %v1232
      %v1848 = vsel %vm1820, %v1815, %v1234
      %v1849 = vsel %vm1820, %v1816, %v1236
      %v1850 = vsel %vm1820, %v1817, %v1238
      %v1851 = vsel %vm1820, %v1818, %v1240
      %v1852 = vsel %vm1820, %v1819, %v1242
      %vm1853 = vcmask 130048
      %v1854 = vsel %vm1853, %v1821, %v1276
      %v1855 = vsel %vm1853, %v1822, %v1278
      %v1856 = vsel %vm1853, %v1823, %v1280
      %v1857 = vsel %vm1853, %v1824, %v1282
      %v1858 = vsel %vm1853, %v1825, %v1284
      %v1859 = vsel %vm1853, %v1826, %v1286
      %v1860 = vsel %vm1853, %v1827, %v1288
      %v1861 = vsel %vm1853, %v1828, %v1290
      %v1862 = vsel %vm1853, %v1829, %v1292
      %v1863 = vsel %vm1853, %v1830, %v1294
      %v1864 = vsel %vm1853, %v1831, %v1296
      %v1865 = vsel %vm1853, %v1832, %v1298
      %v1866 = vsel %vm1853, %v1833, %v1300
      %v1867 = vsel %vm1853, %v1834, %v1302
      %v1868 = vsel %vm1853, %v1835, %v1304
      %v1869 = vsel %vm1853, %v1836, %v1306
      %v1870 = vsel %vm1853, %v1837, %v1308
      %v1871 = vsel %vm1853, %v1838, %v1310
      %v1872 = vsel %vm1853, %v1839, %v1312
      %v1873 = vsel %vm1853, %v1840, %v1314
      %v1874 = vsel %vm1853, %v1841, %v1316
      %v1875 = vsel %vm1853, %v1842, %v1318
      %v1876 = vsel %vm1853, %v1843, %v1320
      %v1877 = vsel %vm1853, %v1844, %v1322
      %v1878 = vsel %vm1853, %v1845, %v1324
      %v1879 = vsel %vm1853, %v1846, %v1326
      %v1880 = vsel %vm1853, %v1847, %v1328
      %v1881 = vsel %vm1853, %v1848, %v1330
      %v1882 = vsel %vm1853, %v1849, %v1332
      %v1883 = vsel %vm1853, %v1850, %v1334
      %v1884 = vsel %vm1853, %v1851, %v1336
      %v1885 = vsel %vm1853, %v1852, %v1338
      %vm1886 = vcmask 162816
      %v1887 = vsel %vm1886, %v1854, %v1372
      %v1888 = vsel %vm1886, %v1855, %v1374
      %v1889 = vsel %vm1886, %v1856, %v1376
      %v1890 = vsel %vm1886, %v1857, %v1378
      %v1891 = vsel %vm1886, %v1858, %v1380
      %v1892 = vsel %vm1886, %v1859, %v1382
      %v1893 = vsel %vm1886, %v1860, %v1384
      %v1894 = vsel %vm1886, %v1861, %v1386
      %v1895 = vsel %vm1886, %v1862, %v1388
      %v1896 = vsel %vm1886, %v1863, %v1390
      %v1897 = vsel %vm1886, %v1864, %v1392
      %v1898 = vsel %vm1886, %v1865, %v1394
      %v1899 = vsel %vm1886, %v1866, %v1396
      %v1900 = vsel %vm1886, %v1867, %v1398
      %v1901 = vsel %vm1886, %v1868, %v1400
      %v1902 = vsel %vm1886, %v1869, %v1402
      %v1903 = vsel %vm1886, %v1870, %v1404
      %v1904 = vsel %vm1886, %v1871, %v1406
      %v1905 = vsel %vm1886, %v1872, %v1408
      %v1906 = vsel %vm1886, %v1873, %v1410
      %v1907 = vsel %vm1886, %v1874, %v1412
      %v1908 = vsel %vm1886, %v1875, %v1414
      %v1909 = vsel %vm1886, %v1876, %v1416
      %v1910 = vsel %vm1886, %v1877, %v1418
      %v1911 = vsel %vm1886, %v1878, %v1420
      %v1912 = vsel %vm1886, %v1879, %v1422
      %v1913 = vsel %vm1886, %v1880, %v1424
      %v1914 = vsel %vm1886, %v1881, %v1426
      %v1915 = vsel %vm1886, %v1882, %v1428
      %v1916 = vsel %vm1886, %v1883, %v1430
      %v1917 = vsel %vm1886, %v1884, %v1432
      %v1918 = vsel %vm1886, %v1885, %v1434
      %vm1919 = vcmask 195584
      %v1920 = vsel %vm1919, %v1887, %v1468
      %v1921 = vsel %vm1919, %v1888, %v1470
      %v1922 = vsel %vm1919, %v1889, %v1472
      %v1923 = vsel %vm1919, %v1890, %v1474
      %v1924 = vsel %vm1919, %v1891, %v1476
      %v1925 = vsel %vm1919, %v1892, %v1478
      %v1926 = vsel %vm1919, %v1893, %v1480
      %v1927 = vsel %vm1919, %v1894, %v1482
      %v1928 = vsel %vm1919, %v1895, %v1484
      %v1929 = vsel %vm1919, %v1896, %v1486
      %v1930 = vsel %vm1919, %v1897, %v1488
      %v1931 = vsel %vm1919, %v1898, %v1490
      %v1932 = vsel %vm1919, %v1899, %v1492
      %v1933 = vsel %vm1919, %v1900, %v1494
      %v1934 = vsel %vm1919, %v1901, %v1496
      %v1935 = vsel %vm1919, %v1902, %v1498
      %v1936 = vsel %vm1919, %v1903, %v1500
      %v1937 = vsel %vm1919, %v1904, %v1502
      %v1938 = vsel %vm1919, %v1905, %v1504
      %v1939 = vsel %vm1919, %v1906, %v1506
      %v1940 = vsel %vm1919, %v1907, %v1508
      %v1941 = vsel %vm1919, %v1908, %v1510
      %v1942 = vsel %vm1919, %v1909, %v1512
      %v1943 = vsel %vm1919, %v1910, %v1514
      %v1944 = vsel %vm1919, %v1911, %v1516
      %v1945 = vsel %vm1919, %v1912, %v1518
      %v1946 = vsel %vm1919, %v1913, %v1520
      %v1947 = vsel %vm1919, %v1914, %v1522
      %v1948 = vsel %vm1919, %v1915, %v1524
      %v1949 = vsel %vm1919, %v1916, %v1526
      %v1950 = vsel %vm1919, %v1917, %v1528
      %v1951 = vsel %vm1919, %v1918, %v1530
      %vm1952 = vcmask 228352
      %v1953 = vsel %vm1952, %v1920, %v1564
      %v1954 = vsel %vm1952, %v1921, %v1566
      %v1955 = vsel %vm1952, %v1922, %v1568
      %v1956 = vsel %vm1952, %v1923, %v1570
      %v1957 = vsel %vm1952, %v1924, %v1572
      %v1958 = vsel %vm1952, %v1925, %v1574
      %v1959 = vsel %vm1952, %v1926, %v1576
      %v1960 = vsel %vm1952, %v1927, %v1578
      %v1961 = vsel %vm1952, %v1928, %v1580
      %v1962 = vsel %vm1952, %v1929, %v1582
      %v1963 = vsel %vm1952, %v1930, %v1584
      %v1964 = vsel %vm1952, %v1931, %v1586
      %v1965 = vsel %vm1952, %v1932, %v1588
      %v1966 = vsel %vm1952, %v1933, %v1590
      %v1967 = vsel %vm1952, %v1934, %v1592
      %v1968 = vsel %vm1952, %v1935, %v1594
      %v1969 = vsel %vm1952, %v1936, %v1596
      %v1970 = vsel %vm1952, %v1937, %v1598
      %v1971 = vsel %vm1952, %v1938, %v1600
      %v1972 = vsel %vm1952, %v1939, %v1602
      %v1973 = vsel %vm1952, %v1940, %v1604
      %v1974 = vsel %vm1952, %v1941, %v1606
      %v1975 = vsel %vm1952, %v1942, %v1608
      %v1976 = vsel %vm1952, %v1943, %v1610
      %v1977 = vsel %vm1952, %v1944, %v1612
      %v1978 = vsel %vm1952, %v1945, %v1614
      %v1979 = vsel %vm1952, %v1946, %v1616
      %v1980 = vsel %vm1952, %v1947, %v1618
      %v1981 = vsel %vm1952, %v1948, %v1620
      %v1982 = vsel %vm1952, %v1949, %v1622
      %v1983 = vsel %vm1952, %v1950, %v1624
      %v1984 = vsel %vm1952, %v1951, %v1626
      %vm1985 = vcmask 261120
      %v1986 = vsel %vm1985, %v1953, %v1660
      %v1987 = vsel %vm1985, %v1954, %v1662
      %v1988 = vsel %vm1985, %v1955, %v1664
      %v1989 = vsel %vm1985, %v1956, %v1666
      %v1990 = vsel %vm1985, %v1957, %v1668
      %v1991 = vsel %vm1985, %v1958, %v1670
      %v1992 = vsel %vm1985, %v1959, %v1672
      %v1993 = vsel %vm1985, %v1960, %v1674
      %v1994 = vsel %vm1985, %v1961, %v1676
      %v1995 = vsel %vm1985, %v1962, %v1678
      %v1996 = vsel %vm1985, %v1963, %v1680
      %v1997 = vsel %vm1985, %v1964, %v1682
      %v1998 = vsel %vm1985, %v1965, %v1684
      %v1999 = vsel %vm1985, %v1966, %v1686
      %v2000 = vsel %vm1985, %v1967, %v1688
      %v2001 = vsel %vm1985, %v1968, %v1690
      %v2002 = vsel %vm1985, %v1969, %v1692
      %v2003 = vsel %vm1985, %v1970, %v1694
      %v2004 = vsel %vm1985, %v1971, %v1696
      %v2005 = vsel %vm1985, %v1972, %v1698
      %v2006 = vsel %vm1985, %v1973, %v1700
      %v2007 = vsel %vm1985, %v1974, %v1702
      %v2008 = vsel %vm1985, %v1975, %v1704
      %v2009 = vsel %vm1985, %v1976, %v1706
      %v2010 = vsel %vm1985, %v1977, %v1708
      %v2011 = vsel %vm1985, %v1978, %v1710
      %v2012 = vsel %vm1985, %v1979, %v1712
      %v2013 = vsel %vm1985, %v1980, %v1714
      %v2014 = vsel %vm1985, %v1981, %v1716
      %v2015 = vsel %vm1985, %v1982, %v1718
      %v2016 = vsel %vm1985, %v1983, %v1720
      %v2017 = vsel %vm1985, %v1984, %v1722
      %v2018 = vpack.c.bf16 %v1987, %v1986
      %v2019 = vpack.c.bf16 %v1989, %v1988
      %v2020 = vpack.c.bf16 %v1991, %v1990
      %v2021 = vpack.c.bf16 %v1993, %v1992
      %v2022 = vpack.c.bf16 %v1995, %v1994
      %v2023 = vpack.c.bf16 %v1997, %v1996
      %v2024 = vpack.c.bf16 %v1999, %v1998
      %v2025 = vpack.c.bf16 %v2001, %v2000
      %v2026 = vpack.c.bf16 %v2003, %v2002
      %v2027 = vpack.c.bf16 %v2005, %v2004
      %v2028 = vpack.c.bf16 %v2007, %v2006
      %v2029 = vpack.c.bf16 %v2009, %v2008
      %v2030 = vpack.c.bf16 %v2011, %v2010
      %v2031 = vpack.c.bf16 %v2013, %v2012
      %v2032 = vpack.c.bf16 %v2015, %v2014
      %v2033 = vpack.c.bf16 %v2017, %v2016
      %v2034 = vld [vmem:[%s3] sm:$0xf]
      %v2035 = vld [vmem:[%s3 + $0x4] sm:$0xf]
      %v2036 = vld [vmem:[%s3 + $0x8] sm:$0xf]
      %v2037 = vld [vmem:[%s3 + $0xc] sm:$0xf]
      %v2038 = vld [vmem:[%s3 + $0x10] sm:$0x3]
      %v2039 = vld [vmem:[%s4] sm:$0x1]
      %v2041 = vlaneseq
      %v2042 = vshrl.u32 %v2041, 7
      %v2043 = vsub.s32 0, %v2042
      %v2044 = vrot.slane %v2039, %v2043
      %v2051 = vunpack.c.l.b16 %v2034
      %v2052 = vunpack.c.l.b16 %v2035
      %v2053 = vunpack.c.l.b16 %v2036
      %v2054 = vunpack.c.l.b16 %v2037
      %v2055 = vunpack.c.l.b16 %v2038
      %v2056 = vpack.c.b16 %v2052, %v2051
      %v2057 = vpack.c.b16 %v2054, %v2053
      %v2058 = vpack.c.b16 %v2055, %v2055
      %vm2061 = vcmask 293888
      %v2063 = vsel %vm2061, %v2018, 0
      %v2066 = vsel %vm2061, %v2019, 0
      %v2069 = vsel %vm2061, %v2020, 0
      %v2072 = vsel %vm2061, %v2021, 0
      %v2075 = vsel %vm2061, %v2022, 0
      %v2078 = vsel %vm2061, %v2023, 0
      %v2081 = vsel %vm2061, %v2024, 0
      %v2084 = vsel %vm2061, %v2025, 0
      %v2087 = vsel %vm2061, %v2026, 0
      %v2090 = vsel %vm2061, %v2027, 0
      %v2093 = vsel %vm2061, %v2028, 0
      %v2096 = vsel %vm2061, %v2029, 0
      %v2099 = vsel %vm2061, %v2030, 0
      %v2102 = vsel %vm2061, %v2031, 0
      %v2105 = vsel %vm2061, %v2032, 0
      %v2108 = vsel %vm2061, %v2033, 0
      %v2111 = vsel %vm385, %v2058, 0
      %2113 = vmatprep.subr.bf16.mxu0 0
      %2114 = vmatpush1.bf16.msra.mxu0 %v2056
      %2115 = vmatprep.subr.bf16.mxu0 0
      %2116 = vmatpush1.bf16.msra.mxu0 %v2057
      %2117 = vmatprep.subr.bf16.mxu0 0
      %2118 = vmatpush1.bf16.msra.mxu0 %v2111
      %2119 = vmatprep.subr.bf16.mxu0 0
      %2120 = vmatpush1.bf16.msra.mxu0 0
      %2121 = vmatprep.subr.bf16.mxu0 0
      %2122 = vmatpush1.bf16.msra.mxu0 0
      %2123 = vmatprep.subr.bf16.mxu0 0
      %2124 = vmatpush1.bf16.msra.mxu0 0
      %2125 = vmatprep.subr.bf16.mxu0 0
      %2126 = vmatpush1.bf16.msra.mxu0 0
      %2127 = vmatprep.subr.bf16.mxu0 0
      %2128 = vmatpush1.bf16.msra.mxu0 0
      %2129 = vmatprep.subr.bf16.mxu0 0
      %2130 = vmatpush1.bf16.msra.mxu0 0
      %2131 = vmatprep.subr.bf16.mxu0 0
      %2132 = vmatpush1.bf16.msra.mxu0 0
      %2133 = vmatprep.subr.bf16.mxu0 0
      %2134 = vmatpush1.bf16.msra.mxu0 0
      %2135 = vmatprep.subr.bf16.mxu0 0
      %2136 = vmatpush1.bf16.msra.mxu0 0
      %2137 = vmatprep.subr.bf16.mxu0 0
      %2138 = vmatpush1.bf16.msra.mxu0 0
      %2139 = vmatprep.subr.bf16.mxu0 0
      %2140 = vmatpush1.bf16.msra.mxu0 0
      %2141 = vmatprep.subr.bf16.mxu0 0
      %2142 = vmatpush1.bf16.msra.mxu0 0
      %2143 = vmatprep.subr.bf16.mxu0 0
      %2144 = vmatpush1.bf16.msra.mxu0 0
      %2145 = vmatprep.mubr.bf16.mxu0 0
      %2146 = vmatmul.mubr.bf16.gmra.mrb[0].mxu0 %v2063
      %v2147 = vpop.f32.mrb[0].mxu0
      %v2148 = vadd.f32 %v2044, %v2147
      %v2149 = vpop.f32.mrb[0].mxu0
      %v2150 = vpop.f32.mrb[0].mxu0
      %v2151 = vadd.f32 %v2044, %v2150
      %v2152 = vpop.f32.mrb[0].mxu0
      %2153 = vmatprep.mubr.bf16.mxu0 0
      %2154 = vmatmul.mubr.bf16.gmra.mrb[0].mxu0 %v2066
      %v2155 = vpop.f32.mrb[0].mxu0
      %v2156 = vadd.f32 %v2044, %v2155
      %v2157 = vpop.f32.mrb[0].mxu0
      %v2158 = vpop.f32.mrb[0].mxu0
      %v2159 = vadd.f32 %v2044, %v2158
      %v2160 = vpop.f32.mrb[0].mxu0
      %2161 = vmatprep.mubr.bf16.mxu0 0
      %2162 = vmatmul.mubr.bf16.gmra.mrb[0].mxu0 %v2069
      %v2163 = vpop.f32.mrb[0].mxu0
      %v2164 = vadd.f32 %v2044, %v2163
      %v2165 = vpop.f32.mrb[0].mxu0
      %v2166 = vpop.f32.mrb[0].mxu0
      %v2167 = vadd.f32 %v2044, %v2166
      %v2168 = vpop.f32.mrb[0].mxu0
      %2169 = vmatprep.mubr.bf16.mxu0 0
      %2170 = vmatmul.mubr.bf16.gmra.mrb[0].mxu0 %v2072
      %v2171 = vpop.f32.mrb[0].mxu0
      %v2172 = vadd.f32 %v2044, %v2171
      %v2173 = vpop.f32.mrb[0].mxu0
      %v2174 = vpop.f32.mrb[0].mxu0
      %v2175 = vadd.f32 %v2044, %v2174
      %v2176 = vpop.f32.mrb[0].mxu0
      %2177 = vmatprep.mubr.bf16.mxu0 0
      %2178 = vmatmul.mubr.bf16.gmra.mrb[0].mxu0 %v2075
      %v2179 = vpop.f32.mrb[0].mxu0
      %v2180 = vadd.f32 %v2044, %v2179
      %v2181 = vpop.f32.mrb[0].mxu0
      %v2182 = vpop.f32.mrb[0].mxu0
      %v2183 = vadd.f32 %v2044, %v2182
      %v2184 = vpop.f32.mrb[0].mxu0
      %2185 = vmatprep.mubr.bf16.mxu0 0
      %2186 = vmatmul.mubr.bf16.gmra.mrb[0].mxu0 %v2078
      %v2187 = vpop.f32.mrb[0].mxu0
      %v2188 = vadd.f32 %v2044, %v2187
      %v2189 = vpop.f32.mrb[0].mxu0
      %v2190 = vpop.f32.mrb[0].mxu0
      %v2191 = vadd.f32 %v2044, %v2190
      %v2192 = vpop.f32.mrb[0].mxu0
      %2193 = vmatprep.mubr.bf16.mxu0 0
      %2194 = vmatmul.mubr.bf16.gmra.mrb[0].mxu0 %v2081
      %v2195 = vpop.f32.mrb[0].mxu0
      %v2196 = vadd.f32 %v2044, %v2195
      %v2197 = vpop.f32.mrb[0].mxu0
      %v2198 = vpop.f32.mrb[0].mxu0
      %v2199 = vadd.f32 %v2044, %v2198
      %v2200 = vpop.f32.mrb[0].mxu0
      %2201 = vmatprep.mubr.bf16.mxu0 0
      %2202 = vmatmul.mubr.bf16.gmra.mrb[0].mxu0 %v2084
      %v2203 = vpop.f32.mrb[0].mxu0
      %v2204 = vadd.f32 %v2044, %v2203
      %v2205 = vpop.f32.mrb[0].mxu0
      %v2206 = vpop.f32.mrb[0].mxu0
      %v2207 = vadd.f32 %v2044, %v2206
      %v2208 = vpop.f32.mrb[0].mxu0
      %2209 = vmatprep.mubr.bf16.mxu0 0
      %2210 = vmatmul.mubr.bf16.gmra.mrb[0].mxu0 %v2087
      %v2211 = vpop.f32.mrb[0].mxu0
      %v2212 = vadd.f32 %v2044, %v2211
      %v2213 = vpop.f32.mrb[0].mxu0
      %v2214 = vpop.f32.mrb[0].mxu0
      %v2215 = vadd.f32 %v2044, %v2214
      %v2216 = vpop.f32.mrb[0].mxu0
      %2217 = vmatprep.mubr.bf16.mxu0 0
      %2218 = vmatmul.mubr.bf16.gmra.mrb[0].mxu0 %v2090
      %v2219 = vpop.f32.mrb[0].mxu0
      %v2220 = vadd.f32 %v2044, %v2219
      %v2221 = vpop.f32.mrb[0].mxu0
      %v2222 = vpop.f32.mrb[0].mxu0
      %v2223 = vadd.f32 %v2044, %v2222
      %v2224 = vpop.f32.mrb[0].mxu0
      %2225 = vmatprep.mubr.bf16.mxu0 0
      %2226 = vmatmul.mubr.bf16.gmra.mrb[0].mxu0 %v2093
      %v2227 = vpop.f32.mrb[0].mxu0
      %v2228 = vadd.f32 %v2044, %v2227
      %v2229 = vpop.f32.mrb[0].mxu0
      %v2230 = vpop.f32.mrb[0].mxu0
      %v2231 = vadd.f32 %v2044, %v2230
      %v2232 = vpop.f32.mrb[0].mxu0
      %2233 = vmatprep.mubr.bf16.mxu0 0
      %2234 = vmatmul.mubr.bf16.gmra.mrb[0].mxu0 %v2096
      %v2235 = vpop.f32.mrb[0].mxu0
      %v2236 = vadd.f32 %v2044, %v2235
      %v2237 = vpop.f32.mrb[0].mxu0
      %v2238 = vpop.f32.mrb[0].mxu0
      %v2239 = vadd.f32 %v2044, %v2238
      %v2240 = vpop.f32.mrb[0].mxu0
      %2241 = vmatprep.mubr.bf16.mxu0 0
      %2242 = vmatmul.mubr.bf16.gmra.mrb[0].mxu0 %v2099
      %v2243 = vpop.f32.mrb[0].mxu0
      %v2244 = vadd.f32 %v2044, %v2243
      %v2245 = vpop.f32.mrb[0].mxu0
      %v2246 = vpop.f32.mrb[0].mxu0
      %v2247 = vadd.f32 %v2044, %v2246
      %v2248 = vpop.f32.mrb[0].mxu0
      %2249 = vmatprep.mubr.bf16.mxu0 0
      %2250 = vmatmul.mubr.bf16.gmra.mrb[0].mxu0 %v2102
      %v2251 = vpop.f32.mrb[0].mxu0
      %v2252 = vadd.f32 %v2044, %v2251
      %v2253 = vpop.f32.mrb[0].mxu0
      %v2254 = vpop.f32.mrb[0].mxu0
      %v2255 = vadd.f32 %v2044, %v2254
      %v2256 = vpop.f32.mrb[0].mxu0
      %2257 = vmatprep.mubr.bf16.mxu0 0
      %2258 = vmatmul.mubr.bf16.gmra.mrb[0].mxu0 %v2105
      %v2259 = vpop.f32.mrb[0].mxu0
      %v2260 = vadd.f32 %v2044, %v2259
      %v2261 = vpop.f32.mrb[0].mxu0
      %v2262 = vpop.f32.mrb[0].mxu0
      %v2263 = vadd.f32 %v2044, %v2262
      %v2264 = vpop.f32.mrb[0].mxu0
      %2265 = vmatprep.mubr.bf16.mxu0 0
      %2266 = vmatmul.mubr.bf16.gmra.mrb[0].mxu0 %v2108
      %v2267 = vpop.f32.mrb[0].mxu0
      %v2268 = vadd.f32 %v2044, %v2267
      %v2269 = vpop.f32.mrb[0].mxu0
      %v2270 = vpop.f32.mrb[0].mxu0
      %v2271 = vadd.f32 %v2044, %v2270
      %v2272 = vpop.f32.mrb[0].mxu0
      %2273 = vdwg.mxu0
      %v2274 = vmax.f32 %v2148, 0.0
      %v2275 = vmax.f32 %v2151, 0.0
      %v2276 = vmax.f32 %v2156, 0.0
      %v2277 = vmax.f32 %v2159, 0.0
      %v2278 = vmax.f32 %v2164, 0.0
      %v2279 = vmax.f32 %v2167, 0.0
      %v2280 = vmax.f32 %v2172, 0.0
      %v2281 = vmax.f32 %v2175, 0.0
      %v2282 = vmax.f32 %v2180, 0.0
      %v2283 = vmax.f32 %v2183, 0.0
      %v2284 = vmax.f32 %v2188, 0.0
      %v2285 = vmax.f32 %v2191, 0.0
      %v2286 = vmax.f32 %v2196, 0.0
      %v2287 = vmax.f32 %v2199, 0.0
      %v2288 = vmax.f32 %v2204, 0.0
      %v2289 = vmax.f32 %v2207, 0.0
      %v2290 = vmax.f32 %v2212, 0.0
      %v2291 = vmax.f32 %v2215, 0.0
      %v2292 = vmax.f32 %v2220, 0.0
      %v2293 = vmax.f32 %v2223, 0.0
      %v2294 = vmax.f32 %v2228, 0.0
      %v2295 = vmax.f32 %v2231, 0.0
      %v2296 = vmax.f32 %v2236, 0.0
      %v2297 = vmax.f32 %v2239, 0.0
      %v2298 = vmax.f32 %v2244, 0.0
      %v2299 = vmax.f32 %v2247, 0.0
      %v2300 = vmax.f32 %v2252, 0.0
      %v2301 = vmax.f32 %v2255, 0.0
      %v2302 = vmax.f32 %v2260, 0.0
      %v2303 = vmax.f32 %v2263, 0.0
      %v2304 = vmax.f32 %v2268, 0.0
      %v2305 = vmax.f32 %v2271, 0.0
      %v2306 = vmin.f32 %v2274, 20.0
      %v2307 = vmin.f32 %v2275, 20.0
      %v2308 = vmin.f32 %v2276, 20.0
      %v2309 = vmin.f32 %v2277, 20.0
      %v2310 = vmin.f32 %v2278, 20.0
      %v2311 = vmin.f32 %v2279, 20.0
      %v2312 = vmin.f32 %v2280, 20.0
      %v2313 = vmin.f32 %v2281, 20.0
      %v2314 = vmin.f32 %v2282, 20.0
      %v2315 = vmin.f32 %v2283, 20.0
      %v2316 = vmin.f32 %v2284, 20.0
      %v2317 = vmin.f32 %v2285, 20.0
      %v2318 = vmin.f32 %v2286, 20.0
      %v2319 = vmin.f32 %v2287, 20.0
      %v2320 = vmin.f32 %v2288, 20.0
      %v2321 = vmin.f32 %v2289, 20.0
      %v2322 = vmin.f32 %v2290, 20.0
      %v2323 = vmin.f32 %v2291, 20.0
      %v2324 = vmin.f32 %v2292, 20.0
      %v2325 = vmin.f32 %v2293, 20.0
      %v2326 = vmin.f32 %v2294, 20.0
      %v2327 = vmin.f32 %v2295, 20.0
      %v2328 = vmin.f32 %v2296, 20.0
      %v2329 = vmin.f32 %v2297, 20.0
      %v2330 = vmin.f32 %v2298, 20.0
      %v2331 = vmin.f32 %v2299, 20.0
      %v2332 = vmin.f32 %v2300, 20.0
      %v2333 = vmin.f32 %v2301, 20.0
      %v2334 = vmin.f32 %v2302, 20.0
      %v2335 = vmin.f32 %v2303, 20.0
      %v2336 = vmin.f32 %v2304, 20.0
      %v2337 = vmin.f32 %v2305, 20.0
      %2338 = vrot.lane.b32.xlu0 %v582, 124
      %v2339 = vpop.permute.xlu0 %2338
      %2340 = vrot.lane.b32.xlu0 %v583, 124
      %v2341 = vpop.permute.xlu0 %2340
      %2342 = vrot.lane.b32.xlu0 %v584, 124
      %v2343 = vpop.permute.xlu0 %2342
      %2344 = vrot.lane.b32.xlu0 %v585, 124
      %v2345 = vpop.permute.xlu0 %2344
      %2346 = vrot.lane.b32.xlu0 %v586, 124
      %v2347 = vpop.permute.xlu0 %2346
      %2348 = vrot.lane.b32.xlu0 %v587, 124
      %v2349 = vpop.permute.xlu0 %2348
      %2350 = vrot.lane.b32.xlu0 %v588, 124
      %v2351 = vpop.permute.xlu0 %2350
      %2352 = vrot.lane.b32.xlu0 %v589, 124
      %v2353 = vpop.permute.xlu0 %2352
      %2354 = vrot.lane.b32.xlu0 %v590, 124
      %v2355 = vpop.permute.xlu0 %2354
      %2356 = vrot.lane.b32.xlu0 %v591, 124
      %v2357 = vpop.permute.xlu0 %2356
      %2358 = vrot.lane.b32.xlu0 %v592, 124
      %v2359 = vpop.permute.xlu0 %2358
      %2360 = vrot.lane.b32.xlu0 %v593, 124
      %v2361 = vpop.permute.xlu0 %2360
      %2362 = vrot.lane.b32.xlu0 %v594, 124
      %v2363 = vpop.permute.xlu0 %2362
      %2364 = vrot.lane.b32.xlu0 %v595, 124
      %v2365 = vpop.permute.xlu0 %2364
      %2366 = vrot.lane.b32.xlu0 %v596, 124
      %v2367 = vpop.permute.xlu0 %2366
      %2368 = vrot.lane.b32.xlu0 %v597, 124
      %v2369 = vpop.permute.xlu0 %2368
      %2370 = vrot.lane.b32.xlu0 %v598, 124
      %v2371 = vpop.permute.xlu0 %2370
      %2372 = vrot.lane.b32.xlu0 %v599, 124
      %v2373 = vpop.permute.xlu0 %2372
      %2374 = vrot.lane.b32.xlu0 %v600, 124
      %v2375 = vpop.permute.xlu0 %2374
      %2376 = vrot.lane.b32.xlu0 %v601, 124
      %v2377 = vpop.permute.xlu0 %2376
      %2378 = vrot.lane.b32.xlu0 %v602, 124
      %v2379 = vpop.permute.xlu0 %2378
      %2380 = vrot.lane.b32.xlu0 %v603, 124
      %v2381 = vpop.permute.xlu0 %2380
      %2382 = vrot.lane.b32.xlu0 %v604, 124
      %v2383 = vpop.permute.xlu0 %2382
      %2384 = vrot.lane.b32.xlu0 %v605, 124
      %v2385 = vpop.permute.xlu0 %2384
      %2386 = vrot.lane.b32.xlu0 %v606, 124
      %v2387 = vpop.permute.xlu0 %2386
      %2388 = vrot.lane.b32.xlu0 %v607, 124
      %v2389 = vpop.permute.xlu0 %2388
      %2390 = vrot.lane.b32.xlu0 %v608, 124
      %v2391 = vpop.permute.xlu0 %2390
      %2392 = vrot.lane.b32.xlu0 %v609, 124
      %v2393 = vpop.permute.xlu0 %2392
      %2394 = vrot.lane.b32.xlu0 %v610, 124
      %v2395 = vpop.permute.xlu0 %2394
      %2396 = vrot.lane.b32.xlu0 %v611, 124
      %v2397 = vpop.permute.xlu0 %2396
      %2398 = vrot.lane.b32.xlu0 %v612, 124
      %v2399 = vpop.permute.xlu0 %2398
      %2400 = vrot.lane.b32.xlu0 %v613, 124
      %v2401 = vpop.permute.xlu0 %2400
      %v2434 = vadd.f32 %v2306, %v2339
      %v2435 = vadd.f32 %v2307, %v2341
      %v2436 = vadd.f32 %v2308, %v2343
      %v2437 = vadd.f32 %v2309, %v2345
      %v2438 = vadd.f32 %v2310, %v2347
      %v2439 = vadd.f32 %v2311, %v2349
      %v2440 = vadd.f32 %v2312, %v2351
      %v2441 = vadd.f32 %v2313, %v2353
      %v2442 = vadd.f32 %v2314, %v2355
      %v2443 = vadd.f32 %v2315, %v2357
      %v2444 = vadd.f32 %v2316, %v2359
      %v2445 = vadd.f32 %v2317, %v2361
      %v2446 = vadd.f32 %v2318, %v2363
      %v2447 = vadd.f32 %v2319, %v2365
      %v2448 = vadd.f32 %v2320, %v2367
      %v2449 = vadd.f32 %v2321, %v2369
      %v2450 = vadd.f32 %v2322, %v2371
      %v2451 = vadd.f32 %v2323, %v2373
      %v2452 = vadd.f32 %v2324, %v2375
      %v2453 = vadd.f32 %v2325, %v2377
      %v2454 = vadd.f32 %v2326, %v2379
      %v2455 = vadd.f32 %v2327, %v2381
      %v2456 = vadd.f32 %v2328, %v2383
      %v2457 = vadd.f32 %v2329, %v2385
      %v2458 = vadd.f32 %v2330, %v2387
      %v2459 = vadd.f32 %v2331, %v2389
      %v2460 = vadd.f32 %v2332, %v2391
      %v2461 = vadd.f32 %v2333, %v2393
      %v2462 = vadd.f32 %v2334, %v2395
      %v2463 = vadd.f32 %v2335, %v2397
      %v2464 = vadd.f32 %v2336, %v2399
      %v2465 = vadd.f32 %v2337, %v2401
      %v2498 = vrot.slane %v2434, 7
      %v2499 = vrot.slane %v2435, 7
      %v2500 = vsel %vm647, %v2498, %v2499
      %v2501 = vrot.slane %v2436, 7
      %v2502 = vrot.slane %v2437, 7
      %v2503 = vsel %vm647, %v2501, %v2502
      %v2504 = vrot.slane %v2438, 7
      %v2505 = vrot.slane %v2439, 7
      %v2506 = vsel %vm647, %v2504, %v2505
      %v2507 = vrot.slane %v2440, 7
      %v2508 = vrot.slane %v2441, 7
      %v2509 = vsel %vm647, %v2507, %v2508
      %v2510 = vrot.slane %v2442, 7
      %v2511 = vrot.slane %v2443, 7
      %v2512 = vsel %vm647, %v2510, %v2511
      %v2513 = vrot.slane %v2444, 7
      %v2514 = vrot.slane %v2445, 7
      %v2515 = vsel %vm647, %v2513, %v2514
      %v2516 = vrot.slane %v2446, 7
      %v2517 = vrot.slane %v2447, 7
      %v2518 = vsel %vm647, %v2516, %v2517
      %v2519 = vrot.slane %v2448, 7
      %v2520 = vrot.slane %v2449, 7
      %v2521 = vsel %vm647, %v2519, %v2520
      %v2522 = vrot.slane %v2450, 7
      %v2523 = vrot.slane %v2451, 7
      %v2524 = vsel %vm647, %v2522, %v2523
      %v2525 = vrot.slane %v2452, 7
      %v2526 = vrot.slane %v2453, 7
      %v2527 = vsel %vm647, %v2525, %v2526
      %v2528 = vrot.slane %v2454, 7
      %v2529 = vrot.slane %v2455, 7
      %v2530 = vsel %vm647, %v2528, %v2529
      %v2531 = vrot.slane %v2456, 7
      %v2532 = vrot.slane %v2457, 7
      %v2533 = vsel %vm647, %v2531, %v2532
      %v2534 = vrot.slane %v2458, 7
      %v2535 = vrot.slane %v2459, 7
      %v2536 = vsel %vm647, %v2534, %v2535
      %v2537 = vrot.slane %v2460, 7
      %v2538 = vrot.slane %v2461, 7
      %v2539 = vsel %vm647, %v2537, %v2538
      %v2540 = vrot.slane %v2462, 7
      %v2541 = vrot.slane %v2463, 7
      %v2542 = vsel %vm647, %v2540, %v2541
      %v2543 = vrot.slane %v2464, 7
      %v2544 = vrot.slane %v2465, 7
      %v2545 = vsel %vm647, %v2543, %v2544
      %v2593 = vsel %vm647, 0.0, %v2498
      %v2594 = vsel %vm647, 0.0, %v2501
      %v2595 = vsel %vm647, 0.0, %v2504
      %v2596 = vsel %vm647, 0.0, %v2507
      %v2597 = vsel %vm647, 0.0, %v2510
      %v2598 = vsel %vm647, 0.0, %v2513
      %v2599 = vsel %vm647, 0.0, %v2516
      %v2600 = vsel %vm647, 0.0, %v2519
      %v2601 = vsel %vm647, 0.0, %v2522
      %v2602 = vsel %vm647, 0.0, %v2525
      %v2603 = vsel %vm647, 0.0, %v2528
      %v2604 = vsel %vm647, 0.0, %v2531
      %v2605 = vsel %vm647, 0.0, %v2534
      %v2606 = vsel %vm647, 0.0, %v2537
      %v2607 = vsel %vm647, 0.0, %v2540
      %v2608 = vsel %vm647, 0.0, %v2543
      %v2609 = vsel %vm647, %v2499, 0.0
      %v2610 = vsel %vm647, %v2502, 0.0
      %v2611 = vsel %vm647, %v2505, 0.0
      %v2612 = vsel %vm647, %v2508, 0.0
      %v2613 = vsel %vm647, %v2511, 0.0
      %v2614 = vsel %vm647, %v2514, 0.0
      %v2615 = vsel %vm647, %v2517, 0.0
      %v2616 = vsel %vm647, %v2520, 0.0
      %v2617 = vsel %vm647, %v2523, 0.0
      %v2618 = vsel %vm647, %v2526, 0.0
      %v2619 = vsel %vm647, %v2529, 0.0
      %v2620 = vsel %vm647, %v2532, 0.0
      %v2621 = vsel %vm647, %v2535, 0.0
      %v2622 = vsel %vm647, %v2538, 0.0
      %v2623 = vsel %vm647, %v2541, 0.0
      %v2624 = vsel %vm647, %v2544, 0.0
      %v2655 = vrot.slane %v2593, 1
      %v2656 = vrot.slane %v2500, 1
      %v2657 = vsel %vm813, %v2655, %v2656
      %v2658 = vrot.slane %v2609, 1
      %v2659 = vsel %vm813, %v2656, %v2658
      %v2660 = vrot.slane %v2594, 1
      %v2661 = vrot.slane %v2503, 1
      %v2662 = vsel %vm813, %v2660, %v2661
      %v2663 = vrot.slane %v2610, 1
      %v2664 = vsel %vm813, %v2661, %v2663
      %v2665 = vrot.slane %v2595, 1
      %v2666 = vrot.slane %v2506, 1
      %v2667 = vsel %vm813, %v2665, %v2666
      %v2668 = vrot.slane %v2611, 1
      %v2669 = vsel %vm813, %v2666, %v2668
      %v2670 = vrot.slane %v2596, 1
      %v2671 = vrot.slane %v2509, 1
      %v2672 = vsel %vm813, %v2670, %v2671
      %v2673 = vrot.slane %v2612, 1
      %v2674 = vsel %vm813, %v2671, %v2673
      %v2675 = vrot.slane %v2597, 1
      %v2676 = vrot.slane %v2512, 1
      %v2677 = vsel %vm813, %v2675, %v2676
      %v2678 = vrot.slane %v2613, 1
      %v2679 = vsel %vm813, %v2676, %v2678
      %v2680 = vrot.slane %v2598, 1
      %v2681 = vrot.slane %v2515, 1
      %v2682 = vsel %vm813, %v2680, %v2681
      %v2683 = vrot.slane %v2614, 1
      %v2684 = vsel %vm813, %v2681, %v2683
      %v2685 = vrot.slane %v2599, 1
      %v2686 = vrot.slane %v2518, 1
      %v2687 = vsel %vm813, %v2685, %v2686
      %v2688 = vrot.slane %v2615, 1
      %v2689 = vsel %vm813, %v2686, %v2688
      %v2690 = vrot.slane %v2600, 1
      %v2691 = vrot.slane %v2521, 1
      %v2692 = vsel %vm813, %v2690, %v2691
      %v2693 = vrot.slane %v2616, 1
      %v2694 = vsel %vm813, %v2691, %v2693
      %v2695 = vrot.slane %v2601, 1
      %v2696 = vrot.slane %v2524, 1
      %v2697 = vsel %vm813, %v2695, %v2696
      %v2698 = vrot.slane %v2617, 1
      %v2699 = vsel %vm813, %v2696, %v2698
      %v2700 = vrot.slane %v2602, 1
      %v2701 = vrot.slane %v2527, 1
      %v2702 = vsel %vm813, %v2700, %v2701
      %v2703 = vrot.slane %v2618, 1
      %v2704 = vsel %vm813, %v2701, %v2703
      %v2705 = vrot.slane %v2603, 1
      %v2706 = vrot.slane %v2530, 1
      %v2707 = vsel %vm813, %v2705, %v2706
      %v2708 = vrot.slane %v2619, 1
      %v2709 = vsel %vm813, %v2706, %v2708
      %v2710 = vrot.slane %v2604, 1
      %v2711 = vrot.slane %v2533, 1
      %v2712 = vsel %vm813, %v2710, %v2711
      %v2713 = vrot.slane %v2620, 1
      %v2714 = vsel %vm813, %v2711, %v2713
      %v2715 = vrot.slane %v2605, 1
      %v2716 = vrot.slane %v2536, 1
      %v2717 = vsel %vm813, %v2715, %v2716
      %v2718 = vrot.slane %v2621, 1
      %v2719 = vsel %vm813, %v2716, %v2718
      %v2720 = vrot.slane %v2606, 1
      %v2721 = vrot.slane %v2539, 1
      %v2722 = vsel %vm813, %v2720, %v2721
      %v2723 = vrot.slane %v2622, 1
      %v2724 = vsel %vm813, %v2721, %v2723
      %v2725 = vrot.slane %v2607, 1
      %v2726 = vrot.slane %v2542, 1
      %v2727 = vsel %vm813, %v2725, %v2726
      %v2728 = vrot.slane %v2623, 1
      %v2729 = vsel %vm813, %v2726, %v2728
      %v2730 = vrot.slane %v2593, 2
      %v2731 = vrot.slane %v2500, 2
      %v2732 = vsel %vm894, %v2730, %v2731
      %v2733 = vrot.slane %v2609, 2
      %v2734 = vsel %vm894, %v2731, %v2733
      %v2735 = vrot.slane %v2594, 2
      %v2736 = vrot.slane %v2503, 2
      %v2737 = vsel %vm894, %v2735, %v2736
      %v2738 = vrot.slane %v2610, 2
      %v2739 = vsel %vm894, %v2736, %v2738
      %v2740 = vrot.slane %v2595, 2
      %v2741 = vrot.slane %v2506, 2
      %v2742 = vsel %vm894, %v2740, %v2741
      %v2743 = vrot.slane %v2611, 2
      %v2744 = vsel %vm894, %v2741, %v2743
      %v2745 = vrot.slane %v2596, 2
      %v2746 = vrot.slane %v2509, 2
      %v2747 = vsel %vm894, %v2745, %v2746
      %v2748 = vrot.slane %v2612, 2
      %v2749 = vsel %vm894, %v2746, %v2748
      %v2750 = vrot.slane %v2597, 2
      %v2751 = vrot.slane %v2512, 2
      %v2752 = vsel %vm894, %v2750, %v2751
      %v2753 = vrot.slane %v2613, 2
      %v2754 = vsel %vm894, %v2751, %v2753
      %v2755 = vrot.slane %v2598, 2
      %v2756 = vrot.slane %v2515, 2
      %v2757 = vsel %vm894, %v2755, %v2756
      %v2758 = vrot.slane %v2614, 2
      %v2759 = vsel %vm894, %v2756, %v2758
      %v2760 = vrot.slane %v2599, 2
      %v2761 = vrot.slane %v2518, 2
      %v2762 = vsel %vm894, %v2760, %v2761
      %v2763 = vrot.slane %v2615, 2
      %v2764 = vsel %vm894, %v2761, %v2763
      %v2765 = vrot.slane %v2600, 2
      %v2766 = vrot.slane %v2521, 2
      %v2767 = vsel %vm894, %v2765, %v2766
      %v2768 = vrot.slane %v2616, 2
      %v2769 = vsel %vm894, %v2766, %v2768
      %v2770 = vrot.slane %v2601, 2
      %v2771 = vrot.slane %v2524, 2
      %v2772 = vsel %vm894, %v2770, %v2771
      %v2773 = vrot.slane %v2617, 2
      %v2774 = vsel %vm894, %v2771, %v2773
      %v2775 = vrot.slane %v2602, 2
      %v2776 = vrot.slane %v2527, 2
      %v2777 = vsel %vm894, %v2775, %v2776
      %v2778 = vrot.slane %v2618, 2
      %v2779 = vsel %vm894, %v2776, %v2778
      %v2780 = vrot.slane %v2603, 2
      %v2781 = vrot.slane %v2530, 2
      %v2782 = vsel %vm894, %v2780, %v2781
      %v2783 = vrot.slane %v2619, 2
      %v2784 = vsel %vm894, %v2781, %v2783
      %v2785 = vrot.slane %v2604, 2
      %v2786 = vrot.slane %v2533, 2
      %v2787 = vsel %vm894, %v2785, %v2786
      %v2788 = vrot.slane %v2620, 2
      %v2789 = vsel %vm894, %v2786, %v2788
      %v2790 = vrot.slane %v2605, 2
      %v2791 = vrot.slane %v2536, 2
      %v2792 = vsel %vm894, %v2790, %v2791
      %v2793 = vrot.slane %v2621, 2
      %v2794 = vsel %vm894, %v2791, %v2793
      %v2795 = vrot.slane %v2606, 2
      %v2796 = vrot.slane %v2539, 2
      %v2797 = vsel %vm894, %v2795, %v2796
      %v2798 = vrot.slane %v2622, 2
      %v2799 = vsel %vm894, %v2796, %v2798
      %v2800 = vrot.slane %v2607, 2
      %v2801 = vrot.slane %v2542, 2
      %v2802 = vsel %vm894, %v2800, %v2801
      %v2803 = vrot.slane %v2623, 2
      %v2804 = vsel %vm894, %v2801, %v2803
      %v2807 = vrot.slane %v2608, 1
      %v2808 = vrot.slane %v2545, 1
      %v2809 = vsel %vm813, %v2807, %v2808
      %v2810 = vrot.slane %v2624, 1
      %v2811 = vsel %vm813, %v2808, %v2810
      %v2812 = vrot.slane %v2608, 2
      %v2813 = vrot.slane %v2545, 2
      %v2814 = vsel %vm894, %v2812, %v2813
      %v2815 = vrot.slane %v2624, 2
      %v2816 = vsel %vm894, %v2813, %v2815
      %2817 = vrot.lane.b32.xlu0 %v2657, 4
      %v2818 = vpop.permute.xlu0 %2817
      %2819 = vrot.lane.b32.xlu0 %v2659, 4
      %v2820 = vpop.permute.xlu0 %2819
      %2821 = vrot.lane.b32.xlu0 %v2662, 4
      %v2822 = vpop.permute.xlu0 %2821
      %2823 = vrot.lane.b32.xlu0 %v2664, 4
      %v2824 = vpop.permute.xlu0 %2823
      %2825 = vrot.lane.b32.xlu0 %v2667, 4
      %v2826 = vpop.permute.xlu0 %2825
      %2827 = vrot.lane.b32.xlu0 %v2669, 4
      %v2828 = vpop.permute.xlu0 %2827
      %2829 = vrot.lane.b32.xlu0 %v2672, 4
      %v2830 = vpop.permute.xlu0 %2829
      %2831 = vrot.lane.b32.xlu0 %v2674, 4
      %v2832 = vpop.permute.xlu0 %2831
      %2833 = vrot.lane.b32.xlu0 %v2677, 4
      %v2834 = vpop.permute.xlu0 %2833
      %2835 = vrot.lane.b32.xlu0 %v2679, 4
      %v2836 = vpop.permute.xlu0 %2835
      %2837 = vrot.lane.b32.xlu0 %v2682, 4
      %v2838 = vpop.permute.xlu0 %2837
      %2839 = vrot.lane.b32.xlu0 %v2684, 4
      %v2840 = vpop.permute.xlu0 %2839
      %2841 = vrot.lane.b32.xlu0 %v2687, 4
      %v2842 = vpop.permute.xlu0 %2841
      %2843 = vrot.lane.b32.xlu0 %v2689, 4
      %v2844 = vpop.permute.xlu0 %2843
      %2845 = vrot.lane.b32.xlu0 %v2692, 4
      %v2846 = vpop.permute.xlu0 %2845
      %2847 = vrot.lane.b32.xlu0 %v2694, 4
      %v2848 = vpop.permute.xlu0 %2847
      %2849 = vrot.lane.b32.xlu0 %v2697, 4
      %v2850 = vpop.permute.xlu0 %2849
      %2851 = vrot.lane.b32.xlu0 %v2699, 4
      %v2852 = vpop.permute.xlu0 %2851
      %2853 = vrot.lane.b32.xlu0 %v2702, 4
      %v2854 = vpop.permute.xlu0 %2853
      %2855 = vrot.lane.b32.xlu0 %v2704, 4
      %v2856 = vpop.permute.xlu0 %2855
      %2857 = vrot.lane.b32.xlu0 %v2707, 4
      %v2858 = vpop.permute.xlu0 %2857
      %2859 = vrot.lane.b32.xlu0 %v2709, 4
      %v2860 = vpop.permute.xlu0 %2859
      %2861 = vrot.lane.b32.xlu0 %v2712, 4
      %v2862 = vpop.permute.xlu0 %2861
      %2863 = vrot.lane.b32.xlu0 %v2714, 4
      %v2864 = vpop.permute.xlu0 %2863
      %2865 = vrot.lane.b32.xlu0 %v2717, 4
      %v2866 = vpop.permute.xlu0 %2865
      %2867 = vrot.lane.b32.xlu0 %v2719, 4
      %v2868 = vpop.permute.xlu0 %2867
      %2869 = vrot.lane.b32.xlu0 %v2722, 4
      %v2870 = vpop.permute.xlu0 %2869
      %2871 = vrot.lane.b32.xlu0 %v2724, 4
      %v2872 = vpop.permute.xlu0 %2871
      %2873 = vrot.lane.b32.xlu0 %v2727, 4
      %v2874 = vpop.permute.xlu0 %2873
      %2875 = vrot.lane.b32.xlu0 %v2729, 4
      %v2876 = vpop.permute.xlu0 %2875
      %2907 = vrot.lane.b32.xlu0 %v2732, 8
      %v2908 = vpop.permute.xlu0 %2907
      %2909 = vrot.lane.b32.xlu0 %v2734, 8
      %v2910 = vpop.permute.xlu0 %2909
      %2911 = vrot.lane.b32.xlu0 %v2737, 8
      %v2912 = vpop.permute.xlu0 %2911
      %2913 = vrot.lane.b32.xlu0 %v2739, 8
      %v2914 = vpop.permute.xlu0 %2913
      %2915 = vrot.lane.b32.xlu0 %v2742, 8
      %v2916 = vpop.permute.xlu0 %2915
      %2917 = vrot.lane.b32.xlu0 %v2744, 8
      %v2918 = vpop.permute.xlu0 %2917
      %2919 = vrot.lane.b32.xlu0 %v2747, 8
      %v2920 = vpop.permute.xlu0 %2919
      %2921 = vrot.lane.b32.xlu0 %v2749, 8
      %v2922 = vpop.permute.xlu0 %2921
      %2923 = vrot.lane.b32.xlu0 %v2752, 8
      %v2924 = vpop.permute.xlu0 %2923
      %2925 = vrot.lane.b32.xlu0 %v2754, 8
      %v2926 = vpop.permute.xlu0 %2925
      %2927 = vrot.lane.b32.xlu0 %v2757, 8
      %v2928 = vpop.permute.xlu0 %2927
      %2929 = vrot.lane.b32.xlu0 %v2759, 8
      %v2930 = vpop.permute.xlu0 %2929
      %2931 = vrot.lane.b32.xlu0 %v2762, 8
      %v2932 = vpop.permute.xlu0 %2931
      %2933 = vrot.lane.b32.xlu0 %v2764, 8
      %v2934 = vpop.permute.xlu0 %2933
      %2935 = vrot.lane.b32.xlu0 %v2767, 8
      %v2936 = vpop.permute.xlu0 %2935
      %2937 = vrot.lane.b32.xlu0 %v2769, 8
      %v2938 = vpop.permute.xlu0 %2937
      %2939 = vrot.lane.b32.xlu0 %v2772, 8
      %v2940 = vpop.permute.xlu0 %2939
      %2941 = vrot.lane.b32.xlu0 %v2774, 8
      %v2942 = vpop.permute.xlu0 %2941
      %2943 = vrot.lane.b32.xlu0 %v2777, 8
      %v2944 = vpop.permute.xlu0 %2943
      %2945 = vrot.lane.b32.xlu0 %v2779, 8
      %v2946 = vpop.permute.xlu0 %2945
      %2947 = vrot.lane.b32.xlu0 %v2782, 8
      %v2948 = vpop.permute.xlu0 %2947
      %2949 = vrot.lane.b32.xlu0 %v2784, 8
      %v2950 = vpop.permute.xlu0 %2949
      %2951 = vrot.lane.b32.xlu0 %v2787, 8
      %v2952 = vpop.permute.xlu0 %2951
      %2953 = vrot.lane.b32.xlu0 %v2789, 8
      %v2954 = vpop.permute.xlu0 %2953
      %2955 = vrot.lane.b32.xlu0 %v2792, 8
      %v2956 = vpop.permute.xlu0 %2955
      %2957 = vrot.lane.b32.xlu0 %v2794, 8
      %v2958 = vpop.permute.xlu0 %2957
      %2959 = vrot.lane.b32.xlu0 %v2797, 8
      %v2960 = vpop.permute.xlu0 %2959
      %2961 = vrot.lane.b32.xlu0 %v2799, 8
      %v2962 = vpop.permute.xlu0 %2961
      %2963 = vrot.lane.b32.xlu0 %v2802, 8
      %v2964 = vpop.permute.xlu0 %2963
      %2965 = vrot.lane.b32.xlu0 %v2804, 8
      %v2966 = vpop.permute.xlu0 %2965
      %2997 = vrot.lane.b32.xlu0 %v2593, 12
      %v2998 = vpop.permute.xlu0 %2997
      %2999 = vrot.lane.b32.xlu0 %v2500, 12
      %v3000 = vpop.permute.xlu0 %2999
      %3001 = vrot.lane.b32.xlu0 %v2594, 12
      %v3002 = vpop.permute.xlu0 %3001
      %3003 = vrot.lane.b32.xlu0 %v2503, 12
      %v3004 = vpop.permute.xlu0 %3003
      %3005 = vrot.lane.b32.xlu0 %v2595, 12
      %v3006 = vpop.permute.xlu0 %3005
      %3007 = vrot.lane.b32.xlu0 %v2506, 12
      %v3008 = vpop.permute.xlu0 %3007
      %3009 = vrot.lane.b32.xlu0 %v2596, 12
      %v3010 = vpop.permute.xlu0 %3009
      %3011 = vrot.lane.b32.xlu0 %v2509, 12
      %v3012 = vpop.permute.xlu0 %3011
      %3013 = vrot.lane.b32.xlu0 %v2597, 12
      %v3014 = vpop.permute.xlu0 %3013
      %3015 = vrot.lane.b32.xlu0 %v2512, 12
      %v3016 = vpop.permute.xlu0 %3015
      %3017 = vrot.lane.b32.xlu0 %v2598, 12
      %v3018 = vpop.permute.xlu0 %3017
      %3019 = vrot.lane.b32.xlu0 %v2515, 12
      %v3020 = vpop.permute.xlu0 %3019
      %3021 = vrot.lane.b32.xlu0 %v2599, 12
      %v3022 = vpop.permute.xlu0 %3021
      %3023 = vrot.lane.b32.xlu0 %v2518, 12
      %v3024 = vpop.permute.xlu0 %3023
      %3025 = vrot.lane.b32.xlu0 %v2600, 12
      %v3026 = vpop.permute.xlu0 %3025
      %3027 = vrot.lane.b32.xlu0 %v2521, 12
      %v3028 = vpop.permute.xlu0 %3027
      %3029 = vrot.lane.b32.xlu0 %v2601, 12
      %v3030 = vpop.permute.xlu0 %3029
      %3031 = vrot.lane.b32.xlu0 %v2524, 12
      %v3032 = vpop.permute.xlu0 %3031
      %3033 = vrot.lane.b32.xlu0 %v2602, 12
      %v3034 = vpop.permute.xlu0 %3033
      %3035 = vrot.lane.b32.xlu0 %v2527, 12
      %v3036 = vpop.permute.xlu0 %3035
      %3037 = vrot.lane.b32.xlu0 %v2603, 12
      %v3038 = vpop.permute.xlu0 %3037
      %3039 = vrot.lane.b32.xlu0 %v2530, 12
      %v3040 = vpop.permute.xlu0 %3039
      %3041 = vrot.lane.b32.xlu0 %v2604, 12
      %v3042 = vpop.permute.xlu0 %3041
      %3043 = vrot.lane.b32.xlu0 %v2533, 12
      %v3044 = vpop.permute.xlu0 %3043
      %3045 = vrot.lane.b32.xlu0 %v2605, 12
      %v3046 = vpop.permute.xlu0 %3045
      %3047 = vrot.lane.b32.xlu0 %v2536, 12
      %v3048 = vpop.permute.xlu0 %3047
      %3049 = vrot.lane.b32.xlu0 %v2606, 12
      %v3050 = vpop.permute.xlu0 %3049
      %3051 = vrot.lane.b32.xlu0 %v2539, 12
      %v3052 = vpop.permute.xlu0 %3051
      %3053 = vrot.lane.b32.xlu0 %v2607, 12
      %v3054 = vpop.permute.xlu0 %3053
      %3055 = vrot.lane.b32.xlu0 %v2542, 12
      %v3056 = vpop.permute.xlu0 %3055
      %3057 = vrot.lane.b32.xlu0 %v2608, 12
      %v3058 = vpop.permute.xlu0 %3057
      %3059 = vrot.lane.b32.xlu0 %v2545, 12
      %v3060 = vpop.permute.xlu0 %3059
      %3093 = vrot.lane.b32.xlu0 %v2657, 16
      %v3094 = vpop.permute.xlu0 %3093
      %3095 = vrot.lane.b32.xlu0 %v2659, 16
      %v3096 = vpop.permute.xlu0 %3095
      %3097 = vrot.lane.b32.xlu0 %v2662, 16
      %v3098 = vpop.permute.xlu0 %3097
      %3099 = vrot.lane.b32.xlu0 %v2664, 16
      %v3100 = vpop.permute.xlu0 %3099
      %3101 = vrot.lane.b32.xlu0 %v2667, 16
      %v3102 = vpop.permute.xlu0 %3101
      %3103 = vrot.lane.b32.xlu0 %v2669, 16
      %v3104 = vpop.permute.xlu0 %3103
      %3105 = vrot.lane.b32.xlu0 %v2672, 16
      %v3106 = vpop.permute.xlu0 %3105
      %3107 = vrot.lane.b32.xlu0 %v2674, 16
      %v3108 = vpop.permute.xlu0 %3107
      %3109 = vrot.lane.b32.xlu0 %v2677, 16
      %v3110 = vpop.permute.xlu0 %3109
      %3111 = vrot.lane.b32.xlu0 %v2679, 16
      %v3112 = vpop.permute.xlu0 %3111
      %3113 = vrot.lane.b32.xlu0 %v2682, 16
      %v3114 = vpop.permute.xlu0 %3113
      %3115 = vrot.lane.b32.xlu0 %v2684, 16
      %v3116 = vpop.permute.xlu0 %3115
      %3117 = vrot.lane.b32.xlu0 %v2687, 16
      %v3118 = vpop.permute.xlu0 %3117
      %3119 = vrot.lane.b32.xlu0 %v2689, 16
      %v3120 = vpop.permute.xlu0 %3119
      %3121 = vrot.lane.b32.xlu0 %v2692, 16
      %v3122 = vpop.permute.xlu0 %3121
      %3123 = vrot.lane.b32.xlu0 %v2694, 16
      %v3124 = vpop.permute.xlu0 %3123
      %3125 = vrot.lane.b32.xlu0 %v2697, 16
      %v3126 = vpop.permute.xlu0 %3125
      %3127 = vrot.lane.b32.xlu0 %v2699, 16
      %v3128 = vpop.permute.xlu0 %3127
      %3129 = vrot.lane.b32.xlu0 %v2702, 16
      %v3130 = vpop.permute.xlu0 %3129
      %3131 = vrot.lane.b32.xlu0 %v2704, 16
      %v3132 = vpop.permute.xlu0 %3131
      %3133 = vrot.lane.b32.xlu0 %v2707, 16
      %v3134 = vpop.permute.xlu0 %3133
      %3135 = vrot.lane.b32.xlu0 %v2709, 16
      %v3136 = vpop.permute.xlu0 %3135
      %3137 = vrot.lane.b32.xlu0 %v2712, 16
      %v3138 = vpop.permute.xlu0 %3137
      %3139 = vrot.lane.b32.xlu0 %v2714, 16
      %v3140 = vpop.permute.xlu0 %3139
      %3141 = vrot.lane.b32.xlu0 %v2717, 16
      %v3142 = vpop.permute.xlu0 %3141
      %3143 = vrot.lane.b32.xlu0 %v2719, 16
      %v3144 = vpop.permute.xlu0 %3143
      %3145 = vrot.lane.b32.xlu0 %v2722, 16
      %v3146 = vpop.permute.xlu0 %3145
      %3147 = vrot.lane.b32.xlu0 %v2724, 16
      %v3148 = vpop.permute.xlu0 %3147
      %3149 = vrot.lane.b32.xlu0 %v2727, 16
      %v3150 = vpop.permute.xlu0 %3149
      %3151 = vrot.lane.b32.xlu0 %v2729, 16
      %v3152 = vpop.permute.xlu0 %3151
      %3153 = vrot.lane.b32.xlu0 %v2809, 16
      %v3154 = vpop.permute.xlu0 %3153
      %3155 = vrot.lane.b32.xlu0 %v2811, 16
      %v3156 = vpop.permute.xlu0 %3155
      %3189 = vrot.lane.b32.xlu0 %v2732, 20
      %v3190 = vpop.permute.xlu0 %3189
      %3191 = vrot.lane.b32.xlu0 %v2734, 20
      %v3192 = vpop.permute.xlu0 %3191
      %3193 = vrot.lane.b32.xlu0 %v2737, 20
      %v3194 = vpop.permute.xlu0 %3193
      %3195 = vrot.lane.b32.xlu0 %v2739, 20
      %v3196 = vpop.permute.xlu0 %3195
      %3197 = vrot.lane.b32.xlu0 %v2742, 20
      %v3198 = vpop.permute.xlu0 %3197
      %3199 = vrot.lane.b32.xlu0 %v2744, 20
      %v3200 = vpop.permute.xlu0 %3199
      %3201 = vrot.lane.b32.xlu0 %v2747, 20
      %v3202 = vpop.permute.xlu0 %3201
      %3203 = vrot.lane.b32.xlu0 %v2749, 20
      %v3204 = vpop.permute.xlu0 %3203
      %3205 = vrot.lane.b32.xlu0 %v2752, 20
      %v3206 = vpop.permute.xlu0 %3205
      %3207 = vrot.lane.b32.xlu0 %v2754, 20
      %v3208 = vpop.permute.xlu0 %3207
      %3209 = vrot.lane.b32.xlu0 %v2757, 20
      %v3210 = vpop.permute.xlu0 %3209
      %3211 = vrot.lane.b32.xlu0 %v2759, 20
      %v3212 = vpop.permute.xlu0 %3211
      %3213 = vrot.lane.b32.xlu0 %v2762, 20
      %v3214 = vpop.permute.xlu0 %3213
      %3215 = vrot.lane.b32.xlu0 %v2764, 20
      %v3216 = vpop.permute.xlu0 %3215
      %3217 = vrot.lane.b32.xlu0 %v2767, 20
      %v3218 = vpop.permute.xlu0 %3217
      %3219 = vrot.lane.b32.xlu0 %v2769, 20
      %v3220 = vpop.permute.xlu0 %3219
      %3221 = vrot.lane.b32.xlu0 %v2772, 20
      %v3222 = vpop.permute.xlu0 %3221
      %3223 = vrot.lane.b32.xlu0 %v2774, 20
      %v3224 = vpop.permute.xlu0 %3223
      %3225 = vrot.lane.b32.xlu0 %v2777, 20
      %v3226 = vpop.permute.xlu0 %3225
      %3227 = vrot.lane.b32.xlu0 %v2779, 20
      %v3228 = vpop.permute.xlu0 %3227
      %3229 = vrot.lane.b32.xlu0 %v2782, 20
      %v3230 = vpop.permute.xlu0 %3229
      %3231 = vrot.lane.b32.xlu0 %v2784, 20
      %v3232 = vpop.permute.xlu0 %3231
      %3233 = vrot.lane.b32.xlu0 %v2787, 20
      %v3234 = vpop.permute.xlu0 %3233
      %3235 = vrot.lane.b32.xlu0 %v2789, 20
      %v3236 = vpop.permute.xlu0 %3235
      %3237 = vrot.lane.b32.xlu0 %v2792, 20
      %v3238 = vpop.permute.xlu0 %3237
      %3239 = vrot.lane.b32.xlu0 %v2794, 20
      %v3240 = vpop.permute.xlu0 %3239
      %3241 = vrot.lane.b32.xlu0 %v2797, 20
      %v3242 = vpop.permute.xlu0 %3241
      %3243 = vrot.lane.b32.xlu0 %v2799, 20
      %v3244 = vpop.permute.xlu0 %3243
      %3245 = vrot.lane.b32.xlu0 %v2802, 20
      %v3246 = vpop.permute.xlu0 %3245
      %3247 = vrot.lane.b32.xlu0 %v2804, 20
      %v3248 = vpop.permute.xlu0 %3247
      %3249 = vrot.lane.b32.xlu0 %v2814, 20
      %v3250 = vpop.permute.xlu0 %3249
      %3251 = vrot.lane.b32.xlu0 %v2816, 20
      %v3252 = vpop.permute.xlu0 %3251
      %3285 = vrot.lane.b32.xlu0 %v2594, 24
      %v3286 = vpop.permute.xlu0 %3285
      %3287 = vrot.lane.b32.xlu0 %v2503, 24
      %v3288 = vpop.permute.xlu0 %3287
      %3289 = vrot.lane.b32.xlu0 %v2595, 24
      %v3290 = vpop.permute.xlu0 %3289
      %3291 = vrot.lane.b32.xlu0 %v2506, 24
      %v3292 = vpop.permute.xlu0 %3291
      %3293 = vrot.lane.b32.xlu0 %v2596, 24
      %v3294 = vpop.permute.xlu0 %3293
      %3295 = vrot.lane.b32.xlu0 %v2509, 24
      %v3296 = vpop.permute.xlu0 %3295
      %3297 = vrot.lane.b32.xlu0 %v2597, 24
      %v3298 = vpop.permute.xlu0 %3297
      %3299 = vrot.lane.b32.xlu0 %v2512, 24
      %v3300 = vpop.permute.xlu0 %3299
      %3301 = vrot.lane.b32.xlu0 %v2598, 24
      %v3302 = vpop.permute.xlu0 %3301
      %3303 = vrot.lane.b32.xlu0 %v2515, 24
      %v3304 = vpop.permute.xlu0 %3303
      %3305 = vrot.lane.b32.xlu0 %v2599, 24
      %v3306 = vpop.permute.xlu0 %3305
      %3307 = vrot.lane.b32.xlu0 %v2518, 24
      %v3308 = vpop.permute.xlu0 %3307
      %3309 = vrot.lane.b32.xlu0 %v2600, 24
      %v3310 = vpop.permute.xlu0 %3309
      %3311 = vrot.lane.b32.xlu0 %v2521, 24
      %v3312 = vpop.permute.xlu0 %3311
      %3313 = vrot.lane.b32.xlu0 %v2601, 24
      %v3314 = vpop.permute.xlu0 %3313
      %3315 = vrot.lane.b32.xlu0 %v2524, 24
      %v3316 = vpop.permute.xlu0 %3315
      %3317 = vrot.lane.b32.xlu0 %v2602, 24
      %v3318 = vpop.permute.xlu0 %3317
      %3319 = vrot.lane.b32.xlu0 %v2527, 24
      %v3320 = vpop.permute.xlu0 %3319
      %3321 = vrot.lane.b32.xlu0 %v2603, 24
      %v3322 = vpop.permute.xlu0 %3321
      %3323 = vrot.lane.b32.xlu0 %v2530, 24
      %v3324 = vpop.permute.xlu0 %3323
      %3325 = vrot.lane.b32.xlu0 %v2604, 24
      %v3326 = vpop.permute.xlu0 %3325
      %3327 = vrot.lane.b32.xlu0 %v2533, 24
      %v3328 = vpop.permute.xlu0 %3327
      %3329 = vrot.lane.b32.xlu0 %v2605, 24
      %v3330 = vpop.permute.xlu0 %3329
      %3331 = vrot.lane.b32.xlu0 %v2536, 24
      %v3332 = vpop.permute.xlu0 %3331
      %3333 = vrot.lane.b32.xlu0 %v2606, 24
      %v3334 = vpop.permute.xlu0 %3333
      %3335 = vrot.lane.b32.xlu0 %v2539, 24
      %v3336 = vpop.permute.xlu0 %3335
      %3337 = vrot.lane.b32.xlu0 %v2607, 24
      %v3338 = vpop.permute.xlu0 %3337
      %3339 = vrot.lane.b32.xlu0 %v2542, 24
      %v3340 = vpop.permute.xlu0 %3339
      %3341 = vrot.lane.b32.xlu0 %v2608, 24
      %v3342 = vpop.permute.xlu0 %3341
      %3343 = vrot.lane.b32.xlu0 %v2545, 24
      %v3344 = vpop.permute.xlu0 %3343
      %3375 = vrot.lane.b32.xlu0 %v2662, 28
      %v3376 = vpop.permute.xlu0 %3375
      %3377 = vrot.lane.b32.xlu0 %v2664, 28
      %v3378 = vpop.permute.xlu0 %3377
      %3379 = vrot.lane.b32.xlu0 %v2667, 28
      %v3380 = vpop.permute.xlu0 %3379
      %3381 = vrot.lane.b32.xlu0 %v2669, 28
      %v3382 = vpop.permute.xlu0 %3381
      %3383 = vrot.lane.b32.xlu0 %v2672, 28
      %v3384 = vpop.permute.xlu0 %3383
      %3385 = vrot.lane.b32.xlu0 %v2674, 28
      %v3386 = vpop.permute.xlu0 %3385
      %3387 = vrot.lane.b32.xlu0 %v2677, 28
      %v3388 = vpop.permute.xlu0 %3387
      %3389 = vrot.lane.b32.xlu0 %v2679, 28
      %v3390 = vpop.permute.xlu0 %3389
      %3391 = vrot.lane.b32.xlu0 %v2682, 28
      %v3392 = vpop.permute.xlu0 %3391
      %3393 = vrot.lane.b32.xlu0 %v2684, 28
      %v3394 = vpop.permute.xlu0 %3393
      %3395 = vrot.lane.b32.xlu0 %v2687, 28
      %v3396 = vpop.permute.xlu0 %3395
      %3397 = vrot.lane.b32.xlu0 %v2689, 28
      %v3398 = vpop.permute.xlu0 %3397
      %3399 = vrot.lane.b32.xlu0 %v2692, 28
      %v3400 = vpop.permute.xlu0 %3399
      %3401 = vrot.lane.b32.xlu0 %v2694, 28
      %v3402 = vpop.permute.xlu0 %3401
      %3403 = vrot.lane.b32.xlu0 %v2697, 28
      %v3404 = vpop.permute.xlu0 %3403
      %3405 = vrot.lane.b32.xlu0 %v2699, 28
      %v3406 = vpop.permute.xlu0 %3405
      %3407 = vrot.lane.b32.xlu0 %v2702, 28
      %v3408 = vpop.permute.xlu0 %3407
      %3409 = vrot.lane.b32.xlu0 %v2704, 28
      %v3410 = vpop.permute.xlu0 %3409
      %3411 = vrot.lane.b32.xlu0 %v2707, 28
      %v3412 = vpop.permute.xlu0 %3411
      %3413 = vrot.lane.b32.xlu0 %v2709, 28
      %v3414 = vpop.permute.xlu0 %3413
      %3415 = vrot.lane.b32.xlu0 %v2712, 28
      %v3416 = vpop.permute.xlu0 %3415
      %3417 = vrot.lane.b32.xlu0 %v2714, 28
      %v3418 = vpop.permute.xlu0 %3417
      %3419 = vrot.lane.b32.xlu0 %v2717, 28
      %v3420 = vpop.permute.xlu0 %3419
      %3421 = vrot.lane.b32.xlu0 %v2719, 28
      %v3422 = vpop.permute.xlu0 %3421
      %3423 = vrot.lane.b32.xlu0 %v2722, 28
      %v3424 = vpop.permute.xlu0 %3423
      %3425 = vrot.lane.b32.xlu0 %v2724, 28
      %v3426 = vpop.permute.xlu0 %3425
      %3427 = vrot.lane.b32.xlu0 %v2727, 28
      %v3428 = vpop.permute.xlu0 %3427
      %3429 = vrot.lane.b32.xlu0 %v2729, 28
      %v3430 = vpop.permute.xlu0 %3429
      %3431 = vrot.lane.b32.xlu0 %v2809, 28
      %v3432 = vpop.permute.xlu0 %3431
      %3433 = vrot.lane.b32.xlu0 %v2811, 28
      %v3434 = vpop.permute.xlu0 %3433
      %3465 = vrot.lane.b32.xlu0 %v2737, 32
      %v3466 = vpop.permute.xlu0 %3465
      %3467 = vrot.lane.b32.xlu0 %v2739, 32
      %v3468 = vpop.permute.xlu0 %3467
      %3469 = vrot.lane.b32.xlu0 %v2742, 32
      %v3470 = vpop.permute.xlu0 %3469
      %3471 = vrot.lane.b32.xlu0 %v2744, 32
      %v3472 = vpop.permute.xlu0 %3471
      %3473 = vrot.lane.b32.xlu0 %v2747, 32
      %v3474 = vpop.permute.xlu0 %3473
      %3475 = vrot.lane.b32.xlu0 %v2749, 32
      %v3476 = vpop.permute.xlu0 %3475
      %3477 = vrot.lane.b32.xlu0 %v2752, 32
      %v3478 = vpop.permute.xlu0 %3477
      %3479 = vrot.lane.b32.xlu0 %v2754, 32
      %v3480 = vpop.permute.xlu0 %3479
      %3481 = vrot.lane.b32.xlu0 %v2757, 32
      %v3482 = vpop.permute.xlu0 %3481
      %3483 = vrot.lane.b32.xlu0 %v2759, 32
      %v3484 = vpop.permute.xlu0 %3483
      %3485 = vrot.lane.b32.xlu0 %v2762, 32
      %v3486 = vpop.permute.xlu0 %3485
      %3487 = vrot.lane.b32.xlu0 %v2764, 32
      %v3488 = vpop.permute.xlu0 %3487
      %3489 = vrot.lane.b32.xlu0 %v2767, 32
      %v3490 = vpop.permute.xlu0 %3489
      %3491 = vrot.lane.b32.xlu0 %v2769, 32
      %v3492 = vpop.permute.xlu0 %3491
      %3493 = vrot.lane.b32.xlu0 %v2772, 32
      %v3494 = vpop.permute.xlu0 %3493
      %3495 = vrot.lane.b32.xlu0 %v2774, 32
      %v3496 = vpop.permute.xlu0 %3495
      %3497 = vrot.lane.b32.xlu0 %v2777, 32
      %v3498 = vpop.permute.xlu0 %3497
      %3499 = vrot.lane.b32.xlu0 %v2779, 32
      %v3500 = vpop.permute.xlu0 %3499
      %3501 = vrot.lane.b32.xlu0 %v2782, 32
      %v3502 = vpop.permute.xlu0 %3501
      %3503 = vrot.lane.b32.xlu0 %v2784, 32
      %v3504 = vpop.permute.xlu0 %3503
      %3505 = vrot.lane.b32.xlu0 %v2787, 32
      %v3506 = vpop.permute.xlu0 %3505
      %3507 = vrot.lane.b32.xlu0 %v2789, 32
      %v3508 = vpop.permute.xlu0 %3507
      %3509 = vrot.lane.b32.xlu0 %v2792, 32
      %v3510 = vpop.permute.xlu0 %3509
      %3511 = vrot.lane.b32.xlu0 %v2794, 32
      %v3512 = vpop.permute.xlu0 %3511
      %3513 = vrot.lane.b32.xlu0 %v2797, 32
      %v3514 = vpop.permute.xlu0 %3513
      %3515 = vrot.lane.b32.xlu0 %v2799, 32
      %v3516 = vpop.permute.xlu0 %3515
      %3517 = vrot.lane.b32.xlu0 %v2802, 32
      %v3518 = vpop.permute.xlu0 %3517
      %3519 = vrot.lane.b32.xlu0 %v2804, 32
      %v3520 = vpop.permute.xlu0 %3519
      %3521 = vrot.lane.b32.xlu0 %v2814, 32
      %v3522 = vpop.permute.xlu0 %3521
      %3523 = vrot.lane.b32.xlu0 %v2816, 32
      %v3524 = vpop.permute.xlu0 %3523
      %v3555 = vsel %vm336, %v2593, %v2818
      %v3556 = vsel %vm336, %v2500, %v2820
      %v3557 = vsel %vm336, %v2594, %v2822
      %v3558 = vsel %vm336, %v2503, %v2824
      %v3559 = vsel %vm336, %v2595, %v2826
      %v3560 = vsel %vm336, %v2506, %v2828
      %v3561 = vsel %vm336, %v2596, %v2830
      %v3562 = vsel %vm336, %v2509, %v2832
      %v3563 = vsel %vm336, %v2597, %v2834
      %v3564 = vsel %vm336, %v2512, %v2836
      %v3565 = vsel %vm336, %v2598, %v2838
      %v3566 = vsel %vm336, %v2515, %v2840
      %v3567 = vsel %vm336, %v2599, %v2842
      %v3568 = vsel %vm336, %v2518, %v2844
      %v3569 = vsel %vm336, %v2600, %v2846
      %v3570 = vsel %vm336, %v2521, %v2848
      %v3571 = vsel %vm336, %v2601, %v2850
      %v3572 = vsel %vm336, %v2524, %v2852
      %v3573 = vsel %vm336, %v2602, %v2854
      %v3574 = vsel %vm336, %v2527, %v2856
      %v3575 = vsel %vm336, %v2603, %v2858
      %v3576 = vsel %vm336, %v2530, %v2860
      %v3577 = vsel %vm336, %v2604, %v2862
      %v3578 = vsel %vm336, %v2533, %v2864
      %v3579 = vsel %vm336, %v2605, %v2866
      %v3580 = vsel %vm336, %v2536, %v2868
      %v3581 = vsel %vm336, %v2606, %v2870
      %v3582 = vsel %vm336, %v2539, %v2872
      %v3583 = vsel %vm336, %v2607, %v2874
      %v3584 = vsel %vm336, %v2542, %v2876
      %v3585 = vsel %vm1787, %v3555, %v2908
      %v3586 = vsel %vm1787, %v3556, %v2910
      %v3587 = vsel %vm1787, %v3557, %v2912
      %v3588 = vsel %vm1787, %v3558, %v2914
      %v3589 = vsel %vm1787, %v3559, %v2916
      %v3590 = vsel %vm1787, %v3560, %v2918
      %v3591 = vsel %vm1787, %v3561, %v2920
      %v3592 = vsel %vm1787, %v3562, %v2922
      %v3593 = vsel %vm1787, %v3563, %v2924
      %v3594 = vsel %vm1787, %v3564, %v2926
      %v3595 = vsel %vm1787, %v3565, %v2928
      %v3596 = vsel %vm1787, %v3566, %v2930
      %v3597 = vsel %vm1787, %v3567, %v2932
      %v3598 = vsel %vm1787, %v3568, %v2934
      %v3599 = vsel %vm1787, %v3569, %v2936
      %v3600 = vsel %vm1787, %v3570, %v2938
      %v3601 = vsel %vm1787, %v3571, %v2940
      %v3602 = vsel %vm1787, %v3572, %v2942
      %v3603 = vsel %vm1787, %v3573, %v2944
      %v3604 = vsel %vm1787, %v3574, %v2946
      %v3605 = vsel %vm1787, %v3575, %v2948
      %v3606 = vsel %vm1787, %v3576, %v2950
      %v3607 = vsel %vm1787, %v3577, %v2952
      %v3608 = vsel %vm1787, %v3578, %v2954
      %v3609 = vsel %vm1787, %v3579, %v2956
      %v3610 = vsel %vm1787, %v3580, %v2958
      %v3611 = vsel %vm1787, %v3581, %v2960
      %v3612 = vsel %vm1787, %v3582, %v2962
      %v3613 = vsel %vm1787, %v3583, %v2964
      %v3614 = vsel %vm1787, %v3584, %v2966
      %v3615 = vsel %vm1820, %v1788, %v2998
      %v3616 = vsel %vm1820, %v1789, %v3000
      %v3617 = vsel %vm1820, %v3585, %v3002
      %v3618 = vsel %vm1820, %v3586, %v3004
      %v3619 = vsel %vm1820, %v3587, %v3006
      %v3620 = vsel %vm1820, %v3588, %v3008
      %v3621 = vsel %vm1820, %v3589, %v3010
      %v3622 = vsel %vm1820, %v3590, %v3012
      %v3623 = vsel %vm1820, %v3591, %v3014
      %v3624 = vsel %vm1820, %v3592, %v3016
      %v3625 = vsel %vm1820, %v3593, %v3018
      %v3626 = vsel %vm1820, %v3594, %v3020
      %v3627 = vsel %vm1820, %v3595, %v3022
      %v3628 = vsel %vm1820, %v3596, %v3024
      %v3629 = vsel %vm1820, %v3597, %v3026
      %v3630 = vsel %vm1820, %v3598, %v3028
      %v3631 = vsel %vm1820, %v3599, %v3030
      %v3632 = vsel %vm1820, %v3600, %v3032
      %v3633 = vsel %vm1820, %v3601, %v3034
      %v3634 = vsel %vm1820, %v3602, %v3036
      %v3635 = vsel %vm1820, %v3603, %v3038
      %v3636 = vsel %vm1820, %v3604, %v3040
      %v3637 = vsel %vm1820, %v3605, %v3042
      %v3638 = vsel %vm1820, %v3606, %v3044
      %v3639 = vsel %vm1820, %v3607, %v3046
      %v3640 = vsel %vm1820, %v3608, %v3048
      %v3641 = vsel %vm1820, %v3609, %v3050
      %v3642 = vsel %vm1820, %v3610, %v3052
      %v3643 = vsel %vm1820, %v3611, %v3054
      %v3644 = vsel %vm1820, %v3612, %v3056
      %v3645 = vsel %vm1820, %v3613, %v3058
      %v3646 = vsel %vm1820, %v3614, %v3060
      %v3647 = vsel %vm1853, %v3615, %v3094
      %v3648 = vsel %vm1853, %v3616, %v3096
      %v3649 = vsel %vm1853, %v3617, %v3098
      %v3650 = vsel %vm1853, %v3618, %v3100
      %v3651 = vsel %vm1853, %v3619, %v3102
      %v3652 = vsel %vm1853, %v3620, %v3104
      %v3653 = vsel %vm1853, %v3621, %v3106
      %v3654 = vsel %vm1853, %v3622, %v3108
      %v3655 = vsel %vm1853, %v3623, %v3110
      %v3656 = vsel %vm1853, %v3624, %v3112
      %v3657 = vsel %vm1853, %v3625, %v3114
      %v3658 = vsel %vm1853, %v3626, %v3116
      %v3659 = vsel %vm1853, %v3627, %v3118
      %v3660 = vsel %vm1853, %v3628, %v3120
      %v3661 = vsel %vm1853, %v3629, %v3122
      %v3662 = vsel %vm1853, %v3630, %v3124
      %v3663 = vsel %vm1853, %v3631, %v3126
      %v3664 = vsel %vm1853, %v3632, %v3128
      %v3665 = vsel %vm1853, %v3633, %v3130
      %v3666 = vsel %vm1853, %v3634, %v3132
      %v3667 = vsel %vm1853, %v3635, %v3134
      %v3668 = vsel %vm1853, %v3636, %v3136
      %v3669 = vsel %vm1853, %v3637, %v3138
      %v3670 = vsel %vm1853, %v3638, %v3140
      %v3671 = vsel %vm1853, %v3639, %v3142
      %v3672 = vsel %vm1853, %v3640, %v3144
      %v3673 = vsel %vm1853, %v3641, %v3146
      %v3674 = vsel %vm1853, %v3642, %v3148
      %v3675 = vsel %vm1853, %v3643, %v3150
      %v3676 = vsel %vm1853, %v3644, %v3152
      %v3677 = vsel %vm1853, %v3645, %v3154
      %v3678 = vsel %vm1853, %v3646, %v3156
      %v3679 = vsel %vm1886, %v3647, %v3190
      %v3680 = vsel %vm1886, %v3648, %v3192
      %v3681 = vsel %vm1886, %v3649, %v3194
      %v3682 = vsel %vm1886, %v3650, %v3196
      %v3683 = vsel %vm1886, %v3651, %v3198
      %v3684 = vsel %vm1886, %v3652, %v3200
      %v3685 = vsel %vm1886, %v3653, %v3202
      %v3686 = vsel %vm1886, %v3654, %v3204
      %v3687 = vsel %vm1886, %v3655, %v3206
      %v3688 = vsel %vm1886, %v3656, %v3208
      %v3689 = vsel %vm1886, %v3657, %v3210
      %v3690 = vsel %vm1886, %v3658, %v3212
      %v3691 = vsel %vm1886, %v3659, %v3214
      %v3692 = vsel %vm1886, %v3660, %v3216
      %v3693 = vsel %vm1886, %v3661, %v3218
      %v3694 = vsel %vm1886, %v3662, %v3220
      %v3695 = vsel %vm1886, %v3663, %v3222
      %v3696 = vsel %vm1886, %v3664, %v3224
      %v3697 = vsel %vm1886, %v3665, %v3226
      %v3698 = vsel %vm1886, %v3666, %v3228
      %v3699 = vsel %vm1886, %v3667, %v3230
      %v3700 = vsel %vm1886, %v3668, %v3232
      %v3701 = vsel %vm1886, %v3669, %v3234
      %v3702 = vsel %vm1886, %v3670, %v3236
      %v3703 = vsel %vm1886, %v3671, %v3238
      %v3704 = vsel %vm1886, %v3672, %v3240
      %v3705 = vsel %vm1886, %v3673, %v3242
      %v3706 = vsel %vm1886, %v3674, %v3244
      %v3707 = vsel %vm1886, %v3675, %v3246
      %v3708 = vsel %vm1886, %v3676, %v3248
      %v3709 = vsel %vm1886, %v3677, %v3250
      %v3710 = vsel %vm1886, %v3678, %v3252
      %v3711 = vsel %vm1919, %v3679, %v3286
      %v3712 = vsel %vm1919, %v3680, %v3288
      %v3713 = vsel %vm1919, %v3681, %v3290
      %v3714 = vsel %vm1919, %v3682, %v3292
      %v3715 = vsel %vm1919, %v3683, %v3294
      %v3716 = vsel %vm1919, %v3684, %v3296
      %v3717 = vsel %vm1919, %v3685, %v3298
      %v3718 = vsel %vm1919, %v3686, %v3300
      %v3719 = vsel %vm1919, %v3687, %v3302
      %v3720 = vsel %vm1919, %v3688, %v3304
      %v3721 = vsel %vm1919, %v3689, %v3306
      %v3722 = vsel %vm1919, %v3690, %v3308
      %v3723 = vsel %vm1919, %v3691, %v3310
      %v3724 = vsel %vm1919, %v3692, %v3312
      %v3725 = vsel %vm1919, %v3693, %v3314
      %v3726 = vsel %vm1919, %v3694, %v3316
      %v3727 = vsel %vm1919, %v3695, %v3318
      %v3728 = vsel %vm1919, %v3696, %v3320
      %v3729 = vsel %vm1919, %v3697, %v3322
      %v3730 = vsel %vm1919, %v3698, %v3324
      %v3731 = vsel %vm1919, %v3699, %v3326
      %v3732 = vsel %vm1919, %v3700, %v3328
      %v3733 = vsel %vm1919, %v3701, %v3330
      %v3734 = vsel %vm1919, %v3702, %v3332
      %v3735 = vsel %vm1919, %v3703, %v3334
      %v3736 = vsel %vm1919, %v3704, %v3336
      %v3737 = vsel %vm1919, %v3705, %v3338
      %v3738 = vsel %vm1919, %v3706, %v3340
      %v3739 = vsel %vm1919, %v3707, %v3342
      %v3740 = vsel %vm1919, %v3708, %v3344
      %v3741 = vsel %vm1919, %v3709, %v1528
      %v3742 = vsel %vm1919, %v3710, %v1530
      %v3743 = vsel %vm1952, %v3711, %v3376
      %v3744 = vsel %vm1952, %v3712, %v3378
      %v3745 = vsel %vm1952, %v3713, %v3380
      %v3746 = vsel %vm1952, %v3714, %v3382
      %v3747 = vsel %vm1952, %v3715, %v3384
      %v3748 = vsel %vm1952, %v3716, %v3386
      %v3749 = vsel %vm1952, %v3717, %v3388
      %v3750 = vsel %vm1952, %v3718, %v3390
      %v3751 = vsel %vm1952, %v3719, %v3392
      %v3752 = vsel %vm1952, %v3720, %v3394
      %v3753 = vsel %vm1952, %v3721, %v3396
      %v3754 = vsel %vm1952, %v3722, %v3398
      %v3755 = vsel %vm1952, %v3723, %v3400
      %v3756 = vsel %vm1952, %v3724, %v3402
      %v3757 = vsel %vm1952, %v3725, %v3404
      %v3758 = vsel %vm1952, %v3726, %v3406
      %v3759 = vsel %vm1952, %v3727, %v3408
      %v3760 = vsel %vm1952, %v3728, %v3410
      %v3761 = vsel %vm1952, %v3729, %v3412
      %v3762 = vsel %vm1952, %v3730, %v3414
      %v3763 = vsel %vm1952, %v3731, %v3416
      %v3764 = vsel %vm1952, %v3732, %v3418
      %v3765 = vsel %vm1952, %v3733, %v3420
      %v3766 = vsel %vm1952, %v3734, %v3422
      %v3767 = vsel %vm1952, %v3735, %v3424
      %v3768 = vsel %vm1952, %v3736, %v3426
      %v3769 = vsel %vm1952, %v3737, %v3428
      %v3770 = vsel %vm1952, %v3738, %v3430
      %v3771 = vsel %vm1952, %v3739, %v3432
      %v3772 = vsel %vm1952, %v3740, %v3434
      %v3773 = vsel %vm1952, %v3741, %v1624
      %v3774 = vsel %vm1952, %v3742, %v1626
      %v3775 = vsel %vm1985, %v3743, %v3466
      %v3776 = vsel %vm1985, %v3744, %v3468
      %v3777 = vsel %vm1985, %v3745, %v3470
      %v3778 = vsel %vm1985, %v3746, %v3472
      %v3779 = vsel %vm1985, %v3747, %v3474
      %v3780 = vsel %vm1985, %v3748, %v3476
      %v3781 = vsel %vm1985, %v3749, %v3478
      %v3782 = vsel %vm1985, %v3750, %v3480
      %v3783 = vsel %vm1985, %v3751, %v3482
      %v3784 = vsel %vm1985, %v3752, %v3484
      %v3785 = vsel %vm1985, %v3753, %v3486
      %v3786 = vsel %vm1985, %v3754, %v3488
      %v3787 = vsel %vm1985, %v3755, %v3490
      %v3788 = vsel %vm1985, %v3756, %v3492
      %v3789 = vsel %vm1985, %v3757, %v3494
      %v3790 = vsel %vm1985, %v3758, %v3496
      %v3791 = vsel %vm1985, %v3759, %v3498
      %v3792 = vsel %vm1985, %v3760, %v3500
      %v3793 = vsel %vm1985, %v3761, %v3502
      %v3794 = vsel %vm1985, %v3762, %v3504
      %v3795 = vsel %vm1985, %v3763, %v3506
      %v3796 = vsel %vm1985, %v3764, %v3508
      %v3797 = vsel %vm1985, %v3765, %v3510
      %v3798 = vsel %vm1985, %v3766, %v3512
      %v3799 = vsel %vm1985, %v3767, %v3514
      %v3800 = vsel %vm1985, %v3768, %v3516
      %v3801 = vsel %vm1985, %v3769, %v3518
      %v3802 = vsel %vm1985, %v3770, %v3520
      %v3803 = vsel %vm1985, %v3771, %v3522
      %v3804 = vsel %vm1985, %v3772, %v3524
      %v3805 = vsel %vm1985, %v3773, %v1720
      %v3806 = vsel %vm1985, %v3774, %v1722
      %v3807 = vpack.c.bf16 %v3776, %v3775
      %v3808 = vpack.c.bf16 %v3778, %v3777
      %v3809 = vpack.c.bf16 %v3780, %v3779
      %v3810 = vpack.c.bf16 %v3782, %v3781
      %v3811 = vpack.c.bf16 %v3784, %v3783
      %v3812 = vpack.c.bf16 %v3786, %v3785
      %v3813 = vpack.c.bf16 %v3788, %v3787
      %v3814 = vpack.c.bf16 %v3790, %v3789
      %v3815 = vpack.c.bf16 %v3792, %v3791
      %v3816 = vpack.c.bf16 %v3794, %v3793
      %v3817 = vpack.c.bf16 %v3796, %v3795
      %v3818 = vpack.c.bf16 %v3798, %v3797
      %v3819 = vpack.c.bf16 %v3800, %v3799
      %v3820 = vpack.c.bf16 %v3802, %v3801
      %v3821 = vpack.c.bf16 %v3804, %v3803
      %v3822 = vpack.c.bf16 %v3806, %v3805
      %s3823 = scalar_lea.vmem %s3, 20
      %v3824 = vld [vmem:[%s3823] sm:$0xf]
      %v3825 = vld [vmem:[%s3823 + $0x4] sm:$0xf]
      %v3826 = vld [vmem:[%s3823 + $0x8] sm:$0xf]
      %v3827 = vld [vmem:[%s3823 + $0xc] sm:$0xf]
      %v3828 = vld [vmem:[%s3823 + $0x10] sm:$0x3]
      %s3829 = scalar_lea.vmem %s4, 1
      %v3830 = vld [vmem:[%s3829] sm:$0x1]
      %v3832 = vlaneseq
      %v3833 = vshrl.u32 %v3832, 7
      %v3834 = vsub.s32 0, %v3833
      %v3835 = vrot.slane %v3830, %v3834
      %v3842 = vunpack.c.l.b16 %v3824
      %v3843 = vunpack.c.l.b16 %v3825
      %v3844 = vunpack.c.l.b16 %v3826
      %v3845 = vunpack.c.l.b16 %v3827
      %v3846 = vunpack.c.l.b16 %v3828
      %v3847 = vpack.c.b16 %v3843, %v3842
      %v3848 = vpack.c.b16 %v3845, %v3844
      %v3849 = vpack.c.b16 %v3846, %v3846
      %v3853 = vsel %vm2061, %v3807, 0
      %v3856 = vsel %vm2061, %v3808, 0
      %v3859 = vsel %vm2061, %v3809, 0
      %v3862 = vsel %vm2061, %v3810, 0
      %v3865 = vsel %vm2061, %v3811, 0
      %v3868 = vsel %vm2061, %v3812, 0
      %v3871 = vsel %vm2061, %v3813, 0
      %v3874 = vsel %vm2061, %v3814, 0
      %v3877 = vsel %vm2061, %v3815, 0
      %v3880 = vsel %vm2061, %v3816, 0
      %v3883 = vsel %vm2061, %v3817, 0
      %v3886 = vsel %vm2061, %v3818, 0
      %v3889 = vsel %vm2061, %v3819, 0
      %v3892 = vsel %vm2061, %v3820, 0
      %v3895 = vsel %vm2061, %v3821, 0
      %v3898 = vsel %vm2061, %v3822, 0
      %v3901 = vsel %vm385, %v3849, 0
      %3903 = vmatprep.subr.bf16.mxu0 0
      %3904 = vmatpush1.bf16.msra.mxu0 %v3847
      %3905 = vmatprep.subr.bf16.mxu0 0
      %3906 = vmatpush1.bf16.msra.mxu0 %v3848
      %3907 = vmatprep.subr.bf16.mxu0 0
      %3908 = vmatpush1.bf16.msra.mxu0 %v3901
      %3909 = vmatprep.subr.bf16.mxu0 0
      %3910 = vmatpush1.bf16.msra.mxu0 0
      %3911 = vmatprep.subr.bf16.mxu0 0
      %3912 = vmatpush1.bf16.msra.mxu0 0
      %3913 = vmatprep.subr.bf16.mxu0 0
      %3914 = vmatpush1.bf16.msra.mxu0 0
      %3915 = vmatprep.subr.bf16.mxu0 0
      %3916 = vmatpush1.bf16.msra.mxu0 0
      %3917 = vmatprep.subr.bf16.mxu0 0
      %3918 = vmatpush1.bf16.msra.mxu0 0
      %3919 = vmatprep.subr.bf16.mxu0 0
      %3920 = vmatpush1.bf16.msra.mxu0 0
      %3921 = vmatprep.subr.bf16.mxu0 0
      %3922 = vmatpush1.bf16.msra.mxu0 0
      %3923 = vmatprep.subr.bf16.mxu0 0
      %3924 = vmatpush1.bf16.msra.mxu0 0
      %3925 = vmatprep.subr.bf16.mxu0 0
      %3926 = vmatpush1.bf16.msra.mxu0 0
      %3927 = vmatprep.subr.bf16.mxu0 0
      %3928 = vmatpush1.bf16.msra.mxu0 0
      %3929 = vmatprep.subr.bf16.mxu0 0
      %3930 = vmatpush1.bf16.msra.mxu0 0
      %3931 = vmatprep.subr.bf16.mxu0 0
      %3932 = vmatpush1.bf16.msra.mxu0 0
      %3933 = vmatprep.subr.bf16.mxu0 0
      %3934 = vmatpush1.bf16.msra.mxu0 0
      %3935 = vmatprep.mubr.bf16.mxu0 0
      %3936 = vmatmul.mubr.bf16.gmra.mrb[0].mxu0 %v3853
      %v3937 = vpop.f32.mrb[0].mxu0
      %v3938 = vadd.f32 %v3835, %v3937
      %v3939 = vpop.f32.mrb[0].mxu0
      %v3940 = vpop.f32.mrb[0].mxu0
      %v3941 = vadd.f32 %v3835, %v3940
      %v3942 = vpop.f32.mrb[0].mxu0
      %3943 = vmatprep.mubr.bf16.mxu0 0
      %3944 = vmatmul.mubr.bf16.gmra.mrb[0].mxu0 %v3856
      %v3945 = vpop.f32.mrb[0].mxu0
      %v3946 = vadd.f32 %v3835, %v3945
      %v3947 = vpop.f32.mrb[0].mxu0
      %v3948 = vpop.f32.mrb[0].mxu0
      %v3949 = vadd.f32 %v3835, %v3948
      %v3950 = vpop.f32.mrb[0].mxu0
      %3951 = vmatprep.mubr.bf16.mxu0 0
      %3952 = vmatmul.mubr.bf16.gmra.mrb[0].mxu0 %v3859
      %v3953 = vpop.f32.mrb[0].mxu0
      %v3954 = vadd.f32 %v3835, %v3953
      %v3955 = vpop.f32.mrb[0].mxu0
      %v3956 = vpop.f32.mrb[0].mxu0
      %v3957 = vadd.f32 %v3835, %v3956
      %v3958 = vpop.f32.mrb[0].mxu0
      %3959 = vmatprep.mubr.bf16.mxu0 0
      %3960 = vmatmul.mubr.bf16.gmra.mrb[0].mxu0 %v3862
      %v3961 = vpop.f32.mrb[0].mxu0
      %v3962 = vadd.f32 %v3835, %v3961
      %v3963 = vpop.f32.mrb[0].mxu0
      %v3964 = vpop.f32.mrb[0].mxu0
      %v3965 = vadd.f32 %v3835, %v3964
      %v3966 = vpop.f32.mrb[0].mxu0
      %3967 = vmatprep.mubr.bf16.mxu0 0
      %3968 = vmatmul.mubr.bf16.gmra.mrb[0].mxu0 %v3865
      %v3969 = vpop.f32.mrb[0].mxu0
      %v3970 = vadd.f32 %v3835, %v3969
      %v3971 = vpop.f32.mrb[0].mxu0
      %v3972 = vpop.f32.mrb[0].mxu0
      %v3973 = vadd.f32 %v3835, %v3972
      %v3974 = vpop.f32.mrb[0].mxu0
      %3975 = vmatprep.mubr.bf16.mxu0 0
      %3976 = vmatmul.mubr.bf16.gmra.mrb[0].mxu0 %v3868
      %v3977 = vpop.f32.mrb[0].mxu0
      %v3978 = vadd.f32 %v3835, %v3977
      %v3979 = vpop.f32.mrb[0].mxu0
      %v3980 = vpop.f32.mrb[0].mxu0
      %v3981 = vadd.f32 %v3835, %v3980
      %v3982 = vpop.f32.mrb[0].mxu0
      %3983 = vmatprep.mubr.bf16.mxu0 0
      %3984 = vmatmul.mubr.bf16.gmra.mrb[0].mxu0 %v3871
      %v3985 = vpop.f32.mrb[0].mxu0
      %v3986 = vadd.f32 %v3835, %v3985
      %v3987 = vpop.f32.mrb[0].mxu0
      %v3988 = vpop.f32.mrb[0].mxu0
      %v3989 = vadd.f32 %v3835, %v3988
      %v3990 = vpop.f32.mrb[0].mxu0
      %3991 = vmatprep.mubr.bf16.mxu0 0
      %3992 = vmatmul.mubr.bf16.gmra.mrb[0].mxu0 %v3874
      %v3993 = vpop.f32.mrb[0].mxu0
      %v3994 = vadd.f32 %v3835, %v3993
      %v3995 = vpop.f32.mrb[0].mxu0
      %v3996 = vpop.f32.mrb[0].mxu0
      %v3997 = vadd.f32 %v3835, %v3996
      %v3998 = vpop.f32.mrb[0].mxu0
      %3999 = vmatprep.mubr.bf16.mxu0 0
      %4000 = vmatmul.mubr.bf16.gmra.mrb[0].mxu0 %v3877
      %v4001 = vpop.f32.mrb[0].mxu0
      %v4002 = vadd.f32 %v3835, %v4001
      %v4003 = vpop.f32.mrb[0].mxu0
      %v4004 = vpop.f32.mrb[0].mxu0
      %v4005 = vadd.f32 %v3835, %v4004
      %v4006 = vpop.f32.mrb[0].mxu0
      %4007 = vmatprep.mubr.bf16.mxu0 0
      %4008 = vmatmul.mubr.bf16.gmra.mrb[0].mxu0 %v3880
      %v4009 = vpop.f32.mrb[0].mxu0
      %v4010 = vadd.f32 %v3835, %v4009
      %v4011 = vpop.f32.mrb[0].mxu0
      %v4012 = vpop.f32.mrb[0].mxu0
      %v4013 = vadd.f32 %v3835, %v4012
      %v4014 = vpop.f32.mrb[0].mxu0
      %4015 = vmatprep.mubr.bf16.mxu0 0
      %4016 = vmatmul.mubr.bf16.gmra.mrb[0].mxu0 %v3883
      %v4017 = vpop.f32.mrb[0].mxu0
      %v4018 = vadd.f32 %v3835, %v4017
      %v4019 = vpop.f32.mrb[0].mxu0
      %v4020 = vpop.f32.mrb[0].mxu0
      %v4021 = vadd.f32 %v3835, %v4020
      %v4022 = vpop.f32.mrb[0].mxu0
      %4023 = vmatprep.mubr.bf16.mxu0 0
      %4024 = vmatmul.mubr.bf16.gmra.mrb[0].mxu0 %v3886
      %v4025 = vpop.f32.mrb[0].mxu0
      %v4026 = vadd.f32 %v3835, %v4025
      %v4027 = vpop.f32.mrb[0].mxu0
      %v4028 = vpop.f32.mrb[0].mxu0
      %v4029 = vadd.f32 %v3835, %v4028
      %v4030 = vpop.f32.mrb[0].mxu0
      %4031 = vmatprep.mubr.bf16.mxu0 0
      %4032 = vmatmul.mubr.bf16.gmra.mrb[0].mxu0 %v3889
      %v4033 = vpop.f32.mrb[0].mxu0
      %v4034 = vadd.f32 %v3835, %v4033
      %v4035 = vpop.f32.mrb[0].mxu0
      %v4036 = vpop.f32.mrb[0].mxu0
      %v4037 = vadd.f32 %v3835, %v4036
      %v4038 = vpop.f32.mrb[0].mxu0
      %4039 = vmatprep.mubr.bf16.mxu0 0
      %4040 = vmatmul.mubr.bf16.gmra.mrb[0].mxu0 %v3892
      %v4041 = vpop.f32.mrb[0].mxu0
      %v4042 = vadd.f32 %v3835, %v4041
      %v4043 = vpop.f32.mrb[0].mxu0
      %v4044 = vpop.f32.mrb[0].mxu0
      %v4045 = vadd.f32 %v3835, %v4044
      %v4046 = vpop.f32.mrb[0].mxu0
      %4047 = vmatprep.mubr.bf16.mxu0 0
      %4048 = vmatmul.mubr.bf16.gmra.mrb[0].mxu0 %v3895
      %v4049 = vpop.f32.mrb[0].mxu0
      %v4050 = vadd.f32 %v3835, %v4049
      %v4051 = vpop.f32.mrb[0].mxu0
      %v4052 = vpop.f32.mrb[0].mxu0
      %v4053 = vadd.f32 %v3835, %v4052
      %v4054 = vpop.f32.mrb[0].mxu0
      %4055 = vmatprep.mubr.bf16.mxu0 0
      %4056 = vmatmul.mubr.bf16.gmra.mrb[0].mxu0 %v3898
      %v4057 = vpop.f32.mrb[0].mxu0
      %v4058 = vadd.f32 %v3835, %v4057
      %v4059 = vpop.f32.mrb[0].mxu0
      %v4060 = vpop.f32.mrb[0].mxu0
      %v4061 = vadd.f32 %v3835, %v4060
      %v4062 = vpop.f32.mrb[0].mxu0
      %4063 = vdwg.mxu0
      %v4064 = vmax.f32 %v3938, 0.0
      %v4065 = vmax.f32 %v3941, 0.0
      %v4066 = vmax.f32 %v3946, 0.0
      %v4067 = vmax.f32 %v3949, 0.0
      %v4068 = vmax.f32 %v3954, 0.0
      %v4069 = vmax.f32 %v3957, 0.0
      %v4070 = vmax.f32 %v3962, 0.0
      %v4071 = vmax.f32 %v3965, 0.0
      %v4072 = vmax.f32 %v3970, 0.0
      %v4073 = vmax.f32 %v3973, 0.0
      %v4074 = vmax.f32 %v3978, 0.0
      %v4075 = vmax.f32 %v3981, 0.0
      %v4076 = vmax.f32 %v3986, 0.0
      %v4077 = vmax.f32 %v3989, 0.0
      %v4078 = vmax.f32 %v3994, 0.0
      %v4079 = vmax.f32 %v3997, 0.0
      %v4080 = vmax.f32 %v4002, 0.0
      %v4081 = vmax.f32 %v4005, 0.0
      %v4082 = vmax.f32 %v4010, 0.0
      %v4083 = vmax.f32 %v4013, 0.0
      %v4084 = vmax.f32 %v4018, 0.0
      %v4085 = vmax.f32 %v4021, 0.0
      %v4086 = vmax.f32 %v4026, 0.0
      %v4087 = vmax.f32 %v4029, 0.0
      %v4088 = vmax.f32 %v4034, 0.0
      %v4089 = vmax.f32 %v4037, 0.0
      %v4090 = vmax.f32 %v4042, 0.0
      %v4091 = vmax.f32 %v4045, 0.0
      %v4092 = vmax.f32 %v4050, 0.0
      %v4093 = vmax.f32 %v4053, 0.0
      %v4094 = vmax.f32 %v4058, 0.0
      %v4095 = vmax.f32 %v4061, 0.0
      %v4096 = vmin.f32 %v4064, 20.0
      %v4097 = vmin.f32 %v4065, 20.0
      %v4098 = vmin.f32 %v4066, 20.0
      %v4099 = vmin.f32 %v4067, 20.0
      %v4100 = vmin.f32 %v4068, 20.0
      %v4101 = vmin.f32 %v4069, 20.0
      %v4102 = vmin.f32 %v4070, 20.0
      %v4103 = vmin.f32 %v4071, 20.0
      %v4104 = vmin.f32 %v4072, 20.0
      %v4105 = vmin.f32 %v4073, 20.0
      %v4106 = vmin.f32 %v4074, 20.0
      %v4107 = vmin.f32 %v4075, 20.0
      %v4108 = vmin.f32 %v4076, 20.0
      %v4109 = vmin.f32 %v4077, 20.0
      %v4110 = vmin.f32 %v4078, 20.0
      %v4111 = vmin.f32 %v4079, 20.0
      %v4112 = vmin.f32 %v4080, 20.0
      %v4113 = vmin.f32 %v4081, 20.0
      %v4114 = vmin.f32 %v4082, 20.0
      %v4115 = vmin.f32 %v4083, 20.0
      %v4116 = vmin.f32 %v4084, 20.0
      %v4117 = vmin.f32 %v4085, 20.0
      %v4118 = vmin.f32 %v4086, 20.0
      %v4119 = vmin.f32 %v4087, 20.0
      %v4120 = vmin.f32 %v4088, 20.0
      %v4121 = vmin.f32 %v4089, 20.0
      %v4122 = vmin.f32 %v4090, 20.0
      %v4123 = vmin.f32 %v4091, 20.0
      %v4124 = vmin.f32 %v4092, 20.0
      %v4125 = vmin.f32 %v4093, 20.0
      %v4126 = vmin.f32 %v4094, 20.0
      %v4127 = vmin.f32 %v4095, 20.0
      %4160 = vrot.lane.b32.xlu0 %v4096, 4
      %v4161 = vpop.permute.xlu0 %4160
      %4162 = vrot.lane.b32.xlu0 %v4097, 4
      %v4163 = vpop.permute.xlu0 %4162
      %4164 = vrot.lane.b32.xlu0 %v4098, 4
      %v4165 = vpop.permute.xlu0 %4164
      %4166 = vrot.lane.b32.xlu0 %v4099, 4
      %v4167 = vpop.permute.xlu0 %4166
      %4168 = vrot.lane.b32.xlu0 %v4100, 4
      %v4169 = vpop.permute.xlu0 %4168
      %4170 = vrot.lane.b32.xlu0 %v4101, 4
      %v4171 = vpop.permute.xlu0 %4170
      %4172 = vrot.lane.b32.xlu0 %v4102, 4
      %v4173 = vpop.permute.xlu0 %4172
      %4174 = vrot.lane.b32.xlu0 %v4103, 4
      %v4175 = vpop.permute.xlu0 %4174
      %4176 = vrot.lane.b32.xlu0 %v4104, 4
      %v4177 = vpop.permute.xlu0 %4176
      %4178 = vrot.lane.b32.xlu0 %v4105, 4
      %v4179 = vpop.permute.xlu0 %4178
      %4180 = vrot.lane.b32.xlu0 %v4106, 4
      %v4181 = vpop.permute.xlu0 %4180
      %4182 = vrot.lane.b32.xlu0 %v4107, 4
      %v4183 = vpop.permute.xlu0 %4182
      %4184 = vrot.lane.b32.xlu0 %v4108, 4
      %v4185 = vpop.permute.xlu0 %4184
      %4186 = vrot.lane.b32.xlu0 %v4109, 4
      %v4187 = vpop.permute.xlu0 %4186
      %4188 = vrot.lane.b32.xlu0 %v4110, 4
      %v4189 = vpop.permute.xlu0 %4188
      %4190 = vrot.lane.b32.xlu0 %v4111, 4
      %v4191 = vpop.permute.xlu0 %4190
      %4192 = vrot.lane.b32.xlu0 %v4112, 4
      %v4193 = vpop.permute.xlu0 %4192
      %4194 = vrot.lane.b32.xlu0 %v4113, 4
      %v4195 = vpop.permute.xlu0 %4194
      %4196 = vrot.lane.b32.xlu0 %v4114, 4
      %v4197 = vpop.permute.xlu0 %4196
      %4198 = vrot.lane.b32.xlu0 %v4115, 4
      %v4199 = vpop.permute.xlu0 %4198
      %4200 = vrot.lane.b32.xlu0 %v4116, 4
      %v4201 = vpop.permute.xlu0 %4200
      %4202 = vrot.lane.b32.xlu0 %v4117, 4
      %v4203 = vpop.permute.xlu0 %4202
      %4204 = vrot.lane.b32.xlu0 %v4118, 4
      %v4205 = vpop.permute.xlu0 %4204
      %4206 = vrot.lane.b32.xlu0 %v4119, 4
      %v4207 = vpop.permute.xlu0 %4206
      %4208 = vrot.lane.b32.xlu0 %v4120, 4
      %v4209 = vpop.permute.xlu0 %4208
      %4210 = vrot.lane.b32.xlu0 %v4121, 4
      %v4211 = vpop.permute.xlu0 %4210
      %4212 = vrot.lane.b32.xlu0 %v4122, 4
      %v4213 = vpop.permute.xlu0 %4212
      %4214 = vrot.lane.b32.xlu0 %v4123, 4
      %v4215 = vpop.permute.xlu0 %4214
      %4216 = vrot.lane.b32.xlu0 %v4124, 4
      %v4217 = vpop.permute.xlu0 %4216
      %4218 = vrot.lane.b32.xlu0 %v4125, 4
      %v4219 = vpop.permute.xlu0 %4218
      %4220 = vrot.lane.b32.xlu0 %v4126, 4
      %v4221 = vpop.permute.xlu0 %4220
      %4222 = vrot.lane.b32.xlu0 %v4127, 4
      %v4223 = vpop.permute.xlu0 %4222
      %v4256 = vsel %vm336, %v2306, %v4161
      %v4257 = vsel %vm336, %v2307, %v4163
      %v4258 = vsel %vm336, %v2308, %v4165
      %v4259 = vsel %vm336, %v2309, %v4167
      %v4260 = vsel %vm336, %v2310, %v4169
      %v4261 = vsel %vm336, %v2311, %v4171
      %v4262 = vsel %vm336, %v2312, %v4173
      %v4263 = vsel %vm336, %v2313, %v4175
      %v4264 = vsel %vm336, %v2314, %v4177
      %v4265 = vsel %vm336, %v2315, %v4179
      %v4266 = vsel %vm336, %v2316, %v4181
      %v4267 = vsel %vm336, %v2317, %v4183
      %v4268 = vsel %vm336, %v2318, %v4185
      %v4269 = vsel %vm336, %v2319, %v4187
      %v4270 = vsel %vm336, %v2320, %v4189
      %v4271 = vsel %vm336, %v2321, %v4191
      %v4272 = vsel %vm336, %v2322, %v4193
      %v4273 = vsel %vm336, %v2323, %v4195
      %v4274 = vsel %vm336, %v2324, %v4197
      %v4275 = vsel %vm336, %v2325, %v4199
      %v4276 = vsel %vm336, %v2326, %v4201
      %v4277 = vsel %vm336, %v2327, %v4203
      %v4278 = vsel %vm336, %v2328, %v4205
      %v4279 = vsel %vm336, %v2329, %v4207
      %v4280 = vsel %vm336, %v2330, %v4209
      %v4281 = vsel %vm336, %v2331, %v4211
      %v4282 = vsel %vm336, %v2332, %v4213
      %v4283 = vsel %vm336, %v2333, %v4215
      %v4284 = vsel %vm336, %v2334, %v4217
      %v4285 = vsel %vm336, %v2335, %v4219
      %v4286 = vsel %vm336, %v2336, %v4221
      %v4287 = vsel %vm336, %v2337, %v4223
      %v4288 = vpack.c.bf16 %v4257, %v4256
      %v4289 = vpack.c.bf16 %v4259, %v4258
      %v4290 = vpack.c.bf16 %v4261, %v4260
      %v4291 = vpack.c.bf16 %v4263, %v4262
      %v4292 = vpack.c.bf16 %v4265, %v4264
      %v4293 = vpack.c.bf16 %v4267, %v4266
      %v4294 = vpack.c.bf16 %v4269, %v4268
      %v4295 = vpack.c.bf16 %v4271, %v4270
      %v4296 = vpack.c.bf16 %v4273, %v4272
      %v4297 = vpack.c.bf16 %v4275, %v4274
      %v4298 = vpack.c.bf16 %v4277, %v4276
      %v4299 = vpack.c.bf16 %v4279, %v4278
      %v4300 = vpack.c.bf16 %v4281, %v4280
      %v4301 = vpack.c.bf16 %v4283, %v4282
      %v4302 = vpack.c.bf16 %v4285, %v4284
      %v4303 = vpack.c.bf16 %v4287, %v4286
      %v4304 = vld [vmem:[%s5] sm:$0xf]
      %v4305 = vld [vmem:[%s6] sm:$0x1]
      %v4307 = vlaneseq
      %v4308 = vshrl.u32 %v4307, 7
      %v4309 = vsub.s32 0, %v4308
      %v4310 = vrot.slane %v4305, %v4309
      %v4313 = vsel %vm1787, %v4288, 0
      %v4316 = vsel %vm1787, %v4289, 0
      %v4319 = vsel %vm1787, %v4290, 0
      %v4322 = vsel %vm1787, %v4291, 0
      %v4325 = vsel %vm1787, %v4292, 0
      %v4328 = vsel %vm1787, %v4293, 0
      %v4331 = vsel %vm1787, %v4294, 0
      %v4334 = vsel %vm1787, %v4295, 0
      %v4337 = vsel %vm1787, %v4296, 0
      %v4340 = vsel %vm1787, %v4297, 0
      %v4343 = vsel %vm1787, %v4298, 0
      %v4346 = vsel %vm1787, %v4299, 0
      %v4349 = vsel %vm1787, %v4300, 0
      %v4352 = vsel %vm1787, %v4301, 0
      %v4355 = vsel %vm1787, %v4302, 0
      %v4358 = vsel %vm1787, %v4303, 0
      %vm4360 = vcmask 1043456
      %v4362 = vsel %vm4360, %v4304, 0
      %4364 = vmatprep.subr.bf16.mxu0 0
      %4365 = vmatpush1.bf16.msra.mxu0 %v4362
      %4366 = vmatprep.subr.bf16.mxu0 0
      %4367 = vmatpush1.bf16.msra.mxu0 0
      %4368 = vmatprep.subr.bf16.mxu0 0
      %4369 = vmatpush1.bf16.msra.mxu0 0
      %4370 = vmatprep.subr.bf16.mxu0 0
      %4371 = vmatpush1.bf16.msra.mxu0 0
      %4372 = vmatprep.subr.bf16.mxu0 0
      %4373 = vmatpush1.bf16.msra.mxu0 0
      %4374 = vmatprep.subr.bf16.mxu0 0
      %4375 = vmatpush1.bf16.msra.mxu0 0
      %4376 = vmatprep.subr.bf16.mxu0 0
      %4377 = vmatpush1.bf16.msra.mxu0 0
      %4378 = vmatprep.subr.bf16.mxu0 0
      %4379 = vmatpush1.bf16.msra.mxu0 0
      %4380 = vmatprep.subr.bf16.mxu0 0
      %4381 = vmatpush1.bf16.msra.mxu0 0
      %4382 = vmatprep.subr.bf16.mxu0 0
      %4383 = vmatpush1.bf16.msra.mxu0 0
      %4384 = vmatprep.subr.bf16.mxu0 0
      %4385 = vmatpush1.bf16.msra.mxu0 0
      %4386 = vmatprep.subr.bf16.mxu0 0
      %4387 = vmatpush1.bf16.msra.mxu0 0
      %4388 = vmatprep.subr.bf16.mxu0 0
      %4389 = vmatpush1.bf16.msra.mxu0 0
      %4390 = vmatprep.subr.bf16.mxu0 0
      %4391 = vmatpush1.bf16.msra.mxu0 0
      %4392 = vmatprep.subr.bf16.mxu0 0
      %4393 = vmatpush1.bf16.msra.mxu0 0
      %4394 = vmatprep.subr.bf16.mxu0 0
      %4395 = vmatpush1.bf16.msra.mxu0 0
      %4396 = vmatprep.mubr.bf16.mxu0 0
      %4397 = vmatmul.mubr.bf16.gmra.mrb[0].mxu0 %v4313
      %v4398 = vpop.f32.mrb[0].mxu0
      %v4399 = vadd.f32 %v4310, %v4398
      %v4400 = vpop.f32.mrb[0].mxu0
      %v4401 = vpop.f32.mrb[0].mxu0
      %v4402 = vadd.f32 %v4310, %v4401
      %v4403 = vpop.f32.mrb[0].mxu0
      %4404 = vmatprep.mubr.bf16.mxu0 0
      %4405 = vmatmul.mubr.bf16.gmra.mrb[0].mxu0 %v4316
      %v4406 = vpop.f32.mrb[0].mxu0
      %v4407 = vadd.f32 %v4310, %v4406
      %v4408 = vpop.f32.mrb[0].mxu0
      %v4409 = vpop.f32.mrb[0].mxu0
      %v4410 = vadd.f32 %v4310, %v4409
      %v4411 = vpop.f32.mrb[0].mxu0
      %4412 = vmatprep.mubr.bf16.mxu0 0
      %4413 = vmatmul.mubr.bf16.gmra.mrb[0].mxu0 %v4319
      %v4414 = vpop.f32.mrb[0].mxu0
      %v4415 = vadd.f32 %v4310, %v4414
      %v4416 = vpop.f32.mrb[0].mxu0
      %v4417 = vpop.f32.mrb[0].mxu0
      %v4418 = vadd.f32 %v4310, %v4417
      %v4419 = vpop.f32.mrb[0].mxu0
      %4420 = vmatprep.mubr.bf16.mxu0 0
      %4421 = vmatmul.mubr.bf16.gmra.mrb[0].mxu0 %v4322
      %v4422 = vpop.f32.mrb[0].mxu0
      %v4423 = vadd.f32 %v4310, %v4422
      %v4424 = vpop.f32.mrb[0].mxu0
      %v4425 = vpop.f32.mrb[0].mxu0
      %v4426 = vadd.f32 %v4310, %v4425
      %v4427 = vpop.f32.mrb[0].mxu0
      %4428 = vmatprep.mubr.bf16.mxu0 0
      %4429 = vmatmul.mubr.bf16.gmra.mrb[0].mxu0 %v4325
      %v4430 = vpop.f32.mrb[0].mxu0
      %v4431 = vadd.f32 %v4310, %v4430
      %v4432 = vpop.f32.mrb[0].mxu0
      %v4433 = vpop.f32.mrb[0].mxu0
      %v4434 = vadd.f32 %v4310, %v4433
      %v4435 = vpop.f32.mrb[0].mxu0
      %4436 = vmatprep.mubr.bf16.mxu0 0
      %4437 = vmatmul.mubr.bf16.gmra.mrb[0].mxu0 %v4328
      %v4438 = vpop.f32.mrb[0].mxu0
      %v4439 = vadd.f32 %v4310, %v4438
      %v4440 = vpop.f32.mrb[0].mxu0
      %v4441 = vpop.f32.mrb[0].mxu0
      %v4442 = vadd.f32 %v4310, %v4441
      %v4443 = vpop.f32.mrb[0].mxu0
      %4444 = vmatprep.mubr.bf16.mxu0 0
      %4445 = vmatmul.mubr.bf16.gmra.mrb[0].mxu0 %v4331
      %v4446 = vpop.f32.mrb[0].mxu0
      %v4447 = vadd.f32 %v4310, %v4446
      %v4448 = vpop.f32.mrb[0].mxu0
      %v4449 = vpop.f32.mrb[0].mxu0
      %v4450 = vadd.f32 %v4310, %v4449
      %v4451 = vpop.f32.mrb[0].mxu0
      %4452 = vmatprep.mubr.bf16.mxu0 0
      %4453 = vmatmul.mubr.bf16.gmra.mrb[0].mxu0 %v4334
      %v4454 = vpop.f32.mrb[0].mxu0
      %v4455 = vadd.f32 %v4310, %v4454
      %v4456 = vpop.f32.mrb[0].mxu0
      %v4457 = vpop.f32.mrb[0].mxu0
      %v4458 = vadd.f32 %v4310, %v4457
      %v4459 = vpop.f32.mrb[0].mxu0
      %4460 = vmatprep.mubr.bf16.mxu0 0
      %4461 = vmatmul.mubr.bf16.gmra.mrb[0].mxu0 %v4337
      %v4462 = vpop.f32.mrb[0].mxu0
      %v4463 = vadd.f32 %v4310, %v4462
      %v4464 = vpop.f32.mrb[0].mxu0
      %v4465 = vpop.f32.mrb[0].mxu0
      %v4466 = vadd.f32 %v4310, %v4465
      %v4467 = vpop.f32.mrb[0].mxu0
      %4468 = vmatprep.mubr.bf16.mxu0 0
      %4469 = vmatmul.mubr.bf16.gmra.mrb[0].mxu0 %v4340
      %v4470 = vpop.f32.mrb[0].mxu0
      %v4471 = vadd.f32 %v4310, %v4470
      %v4472 = vpop.f32.mrb[0].mxu0
      %v4473 = vpop.f32.mrb[0].mxu0
      %v4474 = vadd.f32 %v4310, %v4473
      %v4475 = vpop.f32.mrb[0].mxu0
      %4476 = vmatprep.mubr.bf16.mxu0 0
      %4477 = vmatmul.mubr.bf16.gmra.mrb[0].mxu0 %v4343
      %v4478 = vpop.f32.mrb[0].mxu0
      %v4479 = vadd.f32 %v4310, %v4478
      %v4480 = vpop.f32.mrb[0].mxu0
      %v4481 = vpop.f32.mrb[0].mxu0
      %v4482 = vadd.f32 %v4310, %v4481
      %v4483 = vpop.f32.mrb[0].mxu0
      %4484 = vmatprep.mubr.bf16.mxu0 0
      %4485 = vmatmul.mubr.bf16.gmra.mrb[0].mxu0 %v4346
      %v4486 = vpop.f32.mrb[0].mxu0
      %v4487 = vadd.f32 %v4310, %v4486
      %v4488 = vpop.f32.mrb[0].mxu0
      %v4489 = vpop.f32.mrb[0].mxu0
      %v4490 = vadd.f32 %v4310, %v4489
      %v4491 = vpop.f32.mrb[0].mxu0
      %4492 = vmatprep.mubr.bf16.mxu0 0
      %4493 = vmatmul.mubr.bf16.gmra.mrb[0].mxu0 %v4349
      %v4494 = vpop.f32.mrb[0].mxu0
      %v4495 = vadd.f32 %v4310, %v4494
      %v4496 = vpop.f32.mrb[0].mxu0
      %v4497 = vpop.f32.mrb[0].mxu0
      %v4498 = vadd.f32 %v4310, %v4497
      %v4499 = vpop.f32.mrb[0].mxu0
      %4500 = vmatprep.mubr.bf16.mxu0 0
      %4501 = vmatmul.mubr.bf16.gmra.mrb[0].mxu0 %v4352
      %v4502 = vpop.f32.mrb[0].mxu0
      %v4503 = vadd.f32 %v4310, %v4502
      %v4504 = vpop.f32.mrb[0].mxu0
      %v4505 = vpop.f32.mrb[0].mxu0
      %v4506 = vadd.f32 %v4310, %v4505
      %v4507 = vpop.f32.mrb[0].mxu0
      %4508 = vmatprep.mubr.bf16.mxu0 0
      %4509 = vmatmul.mubr.bf16.gmra.mrb[0].mxu0 %v4355
      %v4510 = vpop.f32.mrb[0].mxu0
      %v4511 = vadd.f32 %v4310, %v4510
      %v4512 = vpop.f32.mrb[0].mxu0
      %v4513 = vpop.f32.mrb[0].mxu0
      %v4514 = vadd.f32 %v4310, %v4513
      %v4515 = vpop.f32.mrb[0].mxu0
      %4516 = vmatprep.mubr.bf16.mxu0 0
      %4517 = vmatmul.mubr.bf16.gmra.mrb[0].mxu0 %v4358
      %v4518 = vpop.f32.mrb[0].mxu0
      %v4519 = vadd.f32 %v4310, %v4518
      %v4520 = vpop.f32.mrb[0].mxu0
      %v4521 = vpop.f32.mrb[0].mxu0
      %v4522 = vadd.f32 %v4310, %v4521
      %v4523 = vpop.f32.mrb[0].mxu0
      %4524 = vdwg.mxu0
      %4557 = vrot.lane.b32.xlu0 %v424, 120
      %v4558 = vpop.permute.xlu0 %4557
      %4559 = vrot.lane.b32.xlu0 %v427, 120
      %v4560 = vpop.permute.xlu0 %4559
      %4561 = vrot.lane.b32.xlu0 %v432, 120
      %v4562 = vpop.permute.xlu0 %4561
      %4563 = vrot.lane.b32.xlu0 %v435, 120
      %v4564 = vpop.permute.xlu0 %4563
      %4565 = vrot.lane.b32.xlu0 %v440, 120
      %v4566 = vpop.permute.xlu0 %4565
      %4567 = vrot.lane.b32.xlu0 %v443, 120
      %v4568 = vpop.permute.xlu0 %4567
      %4569 = vrot.lane.b32.xlu0 %v448, 120
      %v4570 = vpop.permute.xlu0 %4569
      %4571 = vrot.lane.b32.xlu0 %v451, 120
      %v4572 = vpop.permute.xlu0 %4571
      %4573 = vrot.lane.b32.xlu0 %v456, 120
      %v4574 = vpop.permute.xlu0 %4573
      %4575 = vrot.lane.b32.xlu0 %v459, 120
      %v4576 = vpop.permute.xlu0 %4575
      %4577 = vrot.lane.b32.xlu0 %v464, 120
      %v4578 = vpop.permute.xlu0 %4577
      %4579 = vrot.lane.b32.xlu0 %v467, 120
      %v4580 = vpop.permute.xlu0 %4579
      %4581 = vrot.lane.b32.xlu0 %v472, 120
      %v4582 = vpop.permute.xlu0 %4581
      %4583 = vrot.lane.b32.xlu0 %v475, 120
      %v4584 = vpop.permute.xlu0 %4583
      %4585 = vrot.lane.b32.xlu0 %v480, 120
      %v4586 = vpop.permute.xlu0 %4585
      %4587 = vrot.lane.b32.xlu0 %v483, 120
      %v4588 = vpop.permute.xlu0 %4587
      %4589 = vrot.lane.b32.xlu0 %v488, 120
      %v4590 = vpop.permute.xlu0 %4589
      %4591 = vrot.lane.b32.xlu0 %v491, 120
      %v4592 = vpop.permute.xlu0 %4591
      %4593 = vrot.lane.b32.xlu0 %v496, 120
      %v4594 = vpop.permute.xlu0 %4593
      %4595 = vrot.lane.b32.xlu0 %v499, 120
      %v4596 = vpop.permute.xlu0 %4595
      %4597 = vrot.lane.b32.xlu0 %v504, 120
      %v4598 = vpop.permute.xlu0 %4597
      %4599 = vrot.lane.b32.xlu0 %v507, 120
      %v4600 = vpop.permute.xlu0 %4599
      %4601 = vrot.lane.b32.xlu0 %v512, 120
      %v4602 = vpop.permute.xlu0 %4601
      %4603 = vrot.lane.b32.xlu0 %v515, 120
      %v4604 = vpop.permute.xlu0 %4603
      %4605 = vrot.lane.b32.xlu0 %v520, 120
      %v4606 = vpop.permute.xlu0 %4605
      %4607 = vrot.lane.b32.xlu0 %v523, 120
      %v4608 = vpop.permute.xlu0 %4607
      %4609 = vrot.lane.b32.xlu0 %v528, 120
      %v4610 = vpop.permute.xlu0 %4609
      %4611 = vrot.lane.b32.xlu0 %v531, 120
      %v4612 = vpop.permute.xlu0 %4611
      %4613 = vrot.lane.b32.xlu0 %v536, 120
      %v4614 = vpop.permute.xlu0 %4613
      %4615 = vrot.lane.b32.xlu0 %v539, 120
      %v4616 = vpop.permute.xlu0 %4615
      %4617 = vrot.lane.b32.xlu0 %v544, 120
      %v4618 = vpop.permute.xlu0 %4617
      %4619 = vrot.lane.b32.xlu0 %v547, 120
      %v4620 = vpop.permute.xlu0 %4619
      %v4653 = vadd.f32 %v4399, %v4558
      %v4654 = vadd.f32 %v4402, %v4560
      %v4655 = vadd.f32 %v4407, %v4562
      %v4656 = vadd.f32 %v4410, %v4564
      %v4657 = vadd.f32 %v4415, %v4566
      %v4658 = vadd.f32 %v4418, %v4568
      %v4659 = vadd.f32 %v4423, %v4570
      %v4660 = vadd.f32 %v4426, %v4572
      %v4661 = vadd.f32 %v4431, %v4574
      %v4662 = vadd.f32 %v4434, %v4576
      %v4663 = vadd.f32 %v4439, %v4578
      %v4664 = vadd.f32 %v4442, %v4580
      %v4665 = vadd.f32 %v4447, %v4582
      %v4666 = vadd.f32 %v4450, %v4584
      %v4667 = vadd.f32 %v4455, %v4586
      %v4668 = vadd.f32 %v4458, %v4588
      %v4669 = vadd.f32 %v4463, %v4590
      %v4670 = vadd.f32 %v4466, %v4592
      %v4671 = vadd.f32 %v4471, %v4594
      %v4672 = vadd.f32 %v4474, %v4596
      %v4673 = vadd.f32 %v4479, %v4598
      %v4674 = vadd.f32 %v4482, %v4600
      %v4675 = vadd.f32 %v4487, %v4602
      %v4676 = vadd.f32 %v4490, %v4604
      %v4677 = vadd.f32 %v4495, %v4606
      %v4678 = vadd.f32 %v4498, %v4608
      %v4679 = vadd.f32 %v4503, %v4610
      %v4680 = vadd.f32 %v4506, %v4612
      %v4681 = vadd.f32 %v4511, %v4614
      %v4682 = vadd.f32 %v4514, %v4616
      %v4683 = vadd.f32 %v4519, %v4618
      %v4684 = vadd.f32 %v4522, %v4620
      %v4685 = vmax.f32 %v4653, 0.0
      %v4686 = vmax.f32 %v4654, 0.0
      %v4687 = vmax.f32 %v4655, 0.0
      %v4688 = vmax.f32 %v4656, 0.0
      %v4689 = vmax.f32 %v4657, 0.0
      %v4690 = vmax.f32 %v4658, 0.0
      %v4691 = vmax.f32 %v4659, 0.0
      %v4692 = vmax.f32 %v4660, 0.0
      %v4693 = vmax.f32 %v4661, 0.0
      %v4694 = vmax.f32 %v4662, 0.0
      %v4695 = vmax.f32 %v4663, 0.0
      %v4696 = vmax.f32 %v4664, 0.0
      %v4697 = vmax.f32 %v4665, 0.0
      %v4698 = vmax.f32 %v4666, 0.0
      %v4699 = vmax.f32 %v4667, 0.0
      %v4700 = vmax.f32 %v4668, 0.0
      %v4701 = vmax.f32 %v4669, 0.0
      %v4702 = vmax.f32 %v4670, 0.0
      %v4703 = vmax.f32 %v4671, 0.0
      %v4704 = vmax.f32 %v4672, 0.0
      %v4705 = vmax.f32 %v4673, 0.0
      %v4706 = vmax.f32 %v4674, 0.0
      %v4707 = vmax.f32 %v4675, 0.0
      %v4708 = vmax.f32 %v4676, 0.0
      %v4709 = vmax.f32 %v4677, 0.0
      %v4710 = vmax.f32 %v4678, 0.0
      %v4711 = vmax.f32 %v4679, 0.0
      %v4712 = vmax.f32 %v4680, 0.0
      %v4713 = vmax.f32 %v4681, 0.0
      %v4714 = vmax.f32 %v4682, 0.0
      %v4715 = vmax.f32 %v4683, 0.0
      %v4716 = vmax.f32 %v4684, 0.0
      %v4717 = vmin.f32 %v4685, 20.0
      %v4718 = vmin.f32 %v4686, 20.0
      %v4719 = vmin.f32 %v4687, 20.0
      %v4720 = vmin.f32 %v4688, 20.0
      %v4721 = vmin.f32 %v4689, 20.0
      %v4722 = vmin.f32 %v4690, 20.0
      %v4723 = vmin.f32 %v4691, 20.0
      %v4724 = vmin.f32 %v4692, 20.0
      %v4725 = vmin.f32 %v4693, 20.0
      %v4726 = vmin.f32 %v4694, 20.0
      %v4727 = vmin.f32 %v4695, 20.0
      %v4728 = vmin.f32 %v4696, 20.0
      %v4729 = vmin.f32 %v4697, 20.0
      %v4730 = vmin.f32 %v4698, 20.0
      %v4731 = vmin.f32 %v4699, 20.0
      %v4732 = vmin.f32 %v4700, 20.0
      %v4733 = vmin.f32 %v4701, 20.0
      %v4734 = vmin.f32 %v4702, 20.0
      %v4735 = vmin.f32 %v4703, 20.0
      %v4736 = vmin.f32 %v4704, 20.0
      %v4737 = vmin.f32 %v4705, 20.0
      %v4738 = vmin.f32 %v4706, 20.0
      %v4739 = vmin.f32 %v4707, 20.0
      %v4740 = vmin.f32 %v4708, 20.0
      %v4741 = vmin.f32 %v4709, 20.0
      %v4742 = vmin.f32 %v4710, 20.0
      %v4743 = vmin.f32 %v4711, 20.0
      %v4744 = vmin.f32 %v4712, 20.0
      %v4745 = vmin.f32 %v4713, 20.0
      %v4746 = vmin.f32 %v4714, 20.0
      %v4747 = vmin.f32 %v4715, 20.0
      %v4748 = vmin.f32 %v4716, 20.0
      %v4749 = vpack.c.bf16 %v4718, %v4717
      %v4750 = vpack.c.bf16 %v4720, %v4719
      %v4751 = vpack.c.bf16 %v4722, %v4721
      %v4752 = vpack.c.bf16 %v4724, %v4723
      %v4753 = vpack.c.bf16 %v4726, %v4725
      %v4754 = vpack.c.bf16 %v4728, %v4727
      %v4755 = vpack.c.bf16 %v4730, %v4729
      %v4756 = vpack.c.bf16 %v4732, %v4731
      %v4757 = vpack.c.bf16 %v4734, %v4733
      %v4758 = vpack.c.bf16 %v4736, %v4735
      %v4759 = vpack.c.bf16 %v4738, %v4737
      %v4760 = vpack.c.bf16 %v4740, %v4739
      %v4761 = vpack.c.bf16 %v4742, %v4741
      %v4762 = vpack.c.bf16 %v4744, %v4743
      %v4763 = vpack.c.bf16 %v4746, %v4745
      %v4764 = vpack.c.bf16 %v4748, %v4747
      %v4781 = vunpack.c.l.b16 %v4749
      %v4782 = vunpack.c.h.b16 %v4749
      %v4783 = vunpack.c.l.b16 %v4750
      %v4784 = vunpack.c.h.b16 %v4750
      %v4785 = vunpack.c.l.b16 %v4751
      %v4786 = vunpack.c.h.b16 %v4751
      %v4787 = vunpack.c.l.b16 %v4752
      %v4788 = vunpack.c.h.b16 %v4752
      %v4789 = vunpack.c.l.b16 %v4753
      %v4790 = vunpack.c.h.b16 %v4753
      %v4791 = vunpack.c.l.b16 %v4754
      %v4792 = vunpack.c.h.b16 %v4754
      %v4793 = vunpack.c.l.b16 %v4755
      %v4794 = vunpack.c.h.b16 %v4755
      %v4795 = vunpack.c.l.b16 %v4756
      %v4796 = vunpack.c.h.b16 %v4756
      %v4797 = vunpack.c.l.b16 %v4757
      %v4798 = vunpack.c.h.b16 %v4757
      %v4799 = vunpack.c.l.b16 %v4758
      %v4800 = vunpack.c.h.b16 %v4758
      %v4801 = vunpack.c.l.b16 %v4759
      %v4802 = vunpack.c.h.b16 %v4759
      %v4803 = vunpack.c.l.b16 %v4760
      %v4804 = vunpack.c.h.b16 %v4760
      %v4805 = vunpack.c.l.b16 %v4761
      %v4806 = vunpack.c.h.b16 %v4761
      %v4807 = vunpack.c.l.b16 %v4762
      %v4808 = vunpack.c.h.b16 %v4762
      %v4809 = vunpack.c.l.b16 %v4763
      %v4810 = vunpack.c.h.b16 %v4763
      %v4811 = vunpack.c.l.b16 %v4764
      %v4812 = vunpack.c.h.b16 %v4764
      %v4813 = vpack.c.b16 %v4781, %v4781
      %v4814 = vpack.c.b16 %v4782, %v4782
      %v4815 = vpack.c.b16 %v4783, %v4783
      %v4816 = vpack.c.b16 %v4784, %v4784
      %v4817 = vpack.c.b16 %v4785, %v4785
      %v4818 = vpack.c.b16 %v4786, %v4786
      %v4819 = vpack.c.b16 %v4787, %v4787
      %v4820 = vpack.c.b16 %v4788, %v4788
      %v4821 = vpack.c.b16 %v4789, %v4789
      %v4822 = vpack.c.b16 %v4790, %v4790
      %v4823 = vpack.c.b16 %v4791, %v4791
      %v4824 = vpack.c.b16 %v4792, %v4792
      %v4825 = vpack.c.b16 %v4793, %v4793
      %v4826 = vpack.c.b16 %v4794, %v4794
      %v4827 = vpack.c.b16 %v4795, %v4795
      %v4828 = vpack.c.b16 %v4796, %v4796
      %v4829 = vpack.c.b16 %v4797, %v4797
      %v4830 = vpack.c.b16 %v4798, %v4798
      %v4831 = vpack.c.b16 %v4799, %v4799
      %v4832 = vpack.c.b16 %v4800, %v4800
      %v4833 = vpack.c.b16 %v4801, %v4801
      %v4834 = vpack.c.b16 %v4802, %v4802
      %v4835 = vpack.c.b16 %v4803, %v4803
      %v4836 = vpack.c.b16 %v4804, %v4804
      %v4837 = vpack.c.b16 %v4805, %v4805
      %v4838 = vpack.c.b16 %v4806, %v4806
      %v4839 = vpack.c.b16 %v4807, %v4807
      %v4840 = vpack.c.b16 %v4808, %v4808
      %v4841 = vpack.c.b16 %v4809, %v4809
      %v4842 = vpack.c.b16 %v4810, %v4810
      %v4843 = vpack.c.b16 %v4811, %v4811
      %v4844 = vpack.c.b16 %v4812, %v4812
      %vm4877 = vcmask 125952
      %4878 = vst.msk [vmem:[%s278] sm:$0xf] %vm4877, %v4813
      %4879 = vst.msk [vmem:[%s278 + $0x4] sm:$0xf] %vm4877, %v4814
      %4880 = vst.msk [vmem:[%s278 + $0x8] sm:$0xf] %vm4877, %v4815
      %4881 = vst.msk [vmem:[%s278 + $0xc] sm:$0xf] %vm4877, %v4816
      %4882 = vst.msk [vmem:[%s278 + $0x10] sm:$0xf] %vm4877, %v4817
      %4883 = vst.msk [vmem:[%s278 + $0x14] sm:$0xf] %vm4877, %v4818
      %4884 = vst.msk [vmem:[%s278 + $0x18] sm:$0xf] %vm4877, %v4819
      %4885 = vst.msk [vmem:[%s278 + $0x1c] sm:$0xf] %vm4877, %v4820
      %4886 = vst.msk [vmem:[%s278 + $0x20] sm:$0xf] %vm4877, %v4821
      %4887 = vst.msk [vmem:[%s278 + $0x24] sm:$0xf] %vm4877, %v4822
      %4888 = vst.msk [vmem:[%s278 + $0x28] sm:$0xf] %vm4877, %v4823
      %4889 = vst.msk [vmem:[%s278 + $0x2c] sm:$0xf] %vm4877, %v4824
      %4890 = vst.msk [vmem:[%s278 + $0x30] sm:$0xf] %vm4877, %v4825
      %4891 = vst.msk [vmem:[%s278 + $0x34] sm:$0xf] %vm4877, %v4826
      %4892 = vst.msk [vmem:[%s278 + $0x38] sm:$0xf] %vm4877, %v4827
      %4893 = vst.msk [vmem:[%s278 + $0x3c] sm:$0xf] %vm4877, %v4828
      %4894 = vst.msk [vmem:[%s278 + $0x40] sm:$0xf] %vm4877, %v4829
      %4895 = vst.msk [vmem:[%s278 + $0x44] sm:$0xf] %vm4877, %v4830
      %4896 = vst.msk [vmem:[%s278 + $0x48] sm:$0xf] %vm4877, %v4831
      %4897 = vst.msk [vmem:[%s278 + $0x4c] sm:$0xf] %vm4877, %v4832
      %4898 = vst.msk [vmem:[%s278 + $0x50] sm:$0xf] %vm4877, %v4833
      %4899 = vst.msk [vmem:[%s278 + $0x54] sm:$0xf] %vm4877, %v4834
      %4900 = vst.msk [vmem:[%s278 + $0x58] sm:$0xf] %vm4877, %v4835
      %4901 = vst.msk [vmem:[%s278 + $0x5c] sm:$0xf] %vm4877, %v4836
      %4902 = vst.msk [vmem:[%s278 + $0x60] sm:$0xf] %vm4877, %v4837
      %4903 = vst.msk [vmem:[%s278 + $0x64] sm:$0xf] %vm4877, %v4838
      %4904 = vst.msk [vmem:[%s278 + $0x68] sm:$0xf] %vm4877, %v4839
      %4905 = vst.msk [vmem:[%s278 + $0x6c] sm:$0xf] %vm4877, %v4840
      %4906 = vst.msk [vmem:[%s278 + $0x70] sm:$0xf] %vm4877, %v4841
      %4907 = vst.msk [vmem:[%s278 + $0x74] sm:$0xf] %vm4877, %v4842
      %4908 = vst.msk [vmem:[%s278 + $0x78] sm:$0xf] %vm4877, %v4843
      %4909 = vst.msk [vmem:[%s278 + $0x7c] sm:$0xf] %vm4877, %v4844
      %p4910 = scmp.lt.s32.totalorder %s18, 1
      %s4911 = scalar_select %p4910, %s18, 1
      %s4912 = smul.addr %s4911, 32
      %s4913 = smul.addr %s4912, 4
      %s4914 = scalar_lea.vmem %s7, %s4913
      // Predicated region
      $region49: #{tpu_custom_call.1} parent=47 // pred_check
        %p4915 = pneg %p188
      $region50: #{tpu_custom_call.1} parent=47 // pred_check_branch
        %4917 = sbr.rel (%p4915) target = $region52
      $region51: #{tpu_custom_call.1} parent=47 // pred_region
        _
      $region52: #{tpu_custom_call.1} parent=47 // pred_fallthru
        _
    $region48: #{tpu_custom_call.1} parent=5 // pred_fallthru
      _
    %p4918 = scmp.le.s32.totalorder 2, %s13
    // Predicated region
    $region53: #{tpu_custom_call.1} parent=5 // pred_check
      %p4919 = pneg %p4918
    $region54: #{tpu_custom_call.1} parent=5 // pred_check_branch
      %4921 = sbr.rel (%p4919) target = $region56
    $region55: #{tpu_custom_call.1} parent=5 // pred_region
      %s4922 = ssub.s32 %s13, 2
      // Predicated region
      $region57: #{tpu_custom_call.1} parent=55 // pred_check
        %p4923 = pneg %p194
      $region58: #{tpu_custom_call.1} parent=55 // pred_check_branch
        %4925 = sbr.rel (%p4923) target = $region60
      $region59: #{tpu_custom_call.1} parent=55 // pred_region
        %p4926 = scmp.lt.s32.totalorder %s19, 1
        %s4927 = scalar_select %p4926, %s19, 1
        %s4928 = smul.addr %s4927, 32
        %s4929 = smul.addr %s4928, 4
        %s4930 = scalar_lea.vmem %s7, %s4929
      $region60: #{tpu_custom_call.1} parent=55 // pred_fallthru
        _
    $region56: #{tpu_custom_call.1} parent=5 // pred_fallthru
      _
  $region6: #{tpu_custom_call.1} parent=0 // loop_footer
    %s17 = sadd.s32 1, %s13
  $region7: #{tpu_custom_call.1} parent=0 // loop_footer_branch
    %12 = sbr.rel target = $region3
  $region8: #{tpu_custom_call.1} parent=0 // loop_exit
    _

</llo_original>
